<compile_context>
chip_gen: v6e
topology: v6e:2x2x1
jax: 0.10.0
libtpu: 0.0.40
codegen_flags: <defaults>
</compile_context>

<pallas_src>
import functools

import jax
import jax.numpy as jnp
from jax.experimental import pallas as pl
from jax.experimental.pallas import tpu as pltpu


def _round_up(a, b):
    return (a + b - 1) // b * b


def _silu(x):
    return x * jax.nn.sigmoid(x)


def noise_pred_kernel(
    # activations (tiled over batch)
    x_ref, vocab_ref, t_ref,
    # packed small vectors, f32, shape (11, 3L); rows:
    #   0: wt1 (time_mlp Linear(1,L) weight laid out as a length-L row)
    #   1: bt1   2: bt2
    #   3: bl1   4: bl2   5: bl3
    #   6: gamma 7: beta
    #   8: bn1   9: bn2  10: bn3
    vec_ref,
    # bf16 weight slabs (VMEM-resident across grid steps)
    wt2_ref,           # (L, L)       time_mlp second linear
    w33_ref,           # (4, 3L, 3L)  [layer.0, layer.3, layer.6, net.0]
    wn2_ref,           # (3L, 2L)     net.3
    wn3_ref,           # (2L, L)      net.6
    # output
    out_ref,
    # scratch
    z_ref,             # (block_m, 3L) f32
):
    f32 = jnp.float32
    bf16 = jnp.bfloat16
    L = x_ref.shape[1]

    wt1   = vec_ref[0:1, 0:L]
    bt1   = vec_ref[1:2, 0:L]
    bt2   = vec_ref[2:3, 0:L]
    bl1   = vec_ref[3:4, :]
    bl2   = vec_ref[4:5, :]
    bl3   = vec_ref[5:6, :]
    gamma = vec_ref[6:7, :]
    beta  = vec_ref[7:8, :]
    bn1   = vec_ref[8:9, :]
    bn2   = vec_ref[9:10, 0:2 * L]
    bn3   = vec_ref[10:11, 0:L]

    # ---- time_mlp: Linear(1,L) -> SiLU -> Linear(L,L) (elementwise in f32) ----
    t = t_ref[...]                                    # (M, 1) f32
    h = _silu(t * wt1 + bt1)                          # broadcasted outer product
    time_emb = (jnp.dot(h.astype(bf16), wt2_ref[...],
                        preferred_element_type=f32) + bt2)

    # ---- z = [x, vocab, time_emb]: lane-aligned slice-stores (no concat) ----
    z_ref[:, 0:L]     = x_ref[...]
    z_ref[:, L:2 * L] = vocab_ref[...]
    z_ref[:, 2 * L:]  = time_emb
    z = z_ref[...]                                    # (M, 3L) f32

    def layer_block(z):
        # self.layer — Dropout layers are identity in eval mode.
        h = _silu(jnp.dot(z.astype(bf16), w33_ref[0],
                          preferred_element_type=f32) + bl1)
        h = _silu(jnp.dot(h.astype(bf16), w33_ref[1],
                          preferred_element_type=f32) + bl2)
        return jnp.dot(h.astype(bf16), w33_ref[2],
                       preferred_element_type=f32) + bl3

    def layer_norm(z):
        # PyTorch LayerNorm: biased variance, eps = 1e-5, f32 math.
        mean = jnp.mean(z, axis=-1, keepdims=True)
        c = z - mean
        var = jnp.mean(c * c, axis=-1, keepdims=True)
        return c * jax.lax.rsqrt(var + 1e-5) * gamma + beta

    # The PyTorch module reuses self.layer and self.norm for both blocks.
    z = layer_norm(layer_block(z) + z)
    z = layer_norm(layer_block(z) + z)

    # ---- net: Linear(3L,3L) -> SiLU -> Linear(3L,2L) -> SiLU -> Linear(2L,L) ----
    h = _silu(jnp.dot(z.astype(bf16), w33_ref[3],
                      preferred_element_type=f32) + bn1)
    h = _silu(jnp.dot(h.astype(bf16), wn2_ref[...],
                      preferred_element_type=f32) + bn2)
    out_ref[...] = (jnp.dot(h.astype(bf16), wn3_ref[...],
                            preferred_element_type=f32) + bn3)


def init_params(len_seq, key):
    """Deterministic synthetic parameters (shapes mirror the PyTorch __init__).

    Weights are stored (in_features, out_features): y = x @ W + b.
    """
    L, D3, D2 = len_seq, len_seq * 3, len_seq * 2
    keys = iter(jax.random.split(key, 32))

    def w(shape):
        return 0.02 * jax.random.normal(next(keys), shape, dtype=jnp.float32)

    def b(n):
        return 0.01 * jax.random.normal(next(keys), (n,), dtype=jnp.float32)

    return dict(
        # time_mlp
        wt1=w((1, L)), bt1=b(L), wt2=w((L, L)), bt2=b(L),
        # layer (shared by both residual blocks, as in the PyTorch module)
        wl1=w((D3, D3)), bl1=b(D3), wl2=w((D3, D3)), bl2=b(D3),
        wl3=w((D3, D3)), bl3=b(D3),
        # norm (shared)
        gamma=1.0 + 0.1 * jax.random.normal(next(keys), (D3,), dtype=jnp.float32),
        beta=0.1 * jax.random.normal(next(keys), (D3,), dtype=jnp.float32),
        # net
        wn1=w((D3, D3)), bn1=b(D3), wn2=w((D3, D2)), bn2=b(D2),
        wn3=w((D2, L)), bn3=b(L),
    )


def pack_params(p, len_seq):
    """Pack params into consolidated kernel inputs: (vecs_f32, wt2, w33, wn2, wn3)."""
    D3 = 3 * len_seq
    bf16 = jnp.bfloat16

    def row(v):
        v = jnp.asarray(v, jnp.float32).reshape(-1)
        return jnp.pad(v, (0, D3 - v.shape[0]))

    vecs = jnp.stack([
        row(p["wt1"]), row(p["bt1"]), row(p["bt2"]),
        row(p["bl1"]), row(p["bl2"]), row(p["bl3"]),
        row(p["gamma"]), row(p["beta"]),
        row(p["bn1"]), row(p["bn2"]), row(p["bn3"]),
    ], axis=0)                                                   # (11, 3L) f32

    w33 = jnp.stack([p["wl1"], p["wl2"], p["wl3"], p["wn1"]], axis=0).astype(bf16)
    return vecs, p["wt2"].astype(bf16), w33, p["wn2"].astype(bf16), p["wn3"].astype(bf16)


@functools.partial(jax.jit, static_argnames=("block_m",))
def noise_predictor_forward(params, x, vocab, t, *, block_m=None):
    """x: (B, L), vocab: (B, L), t: (B,).  Returns noise_pred: (B, L) f32."""
    B, L = x.shape
    D3, D2 = 3 * L, 2 * L
    # TODO(synk): support len_seq that is not a multiple of the 128-lane width
    # (needs lane padding of the feature axis for the aligned slice stores).
    assert L % 128 == 0

    vecs, wt2, w33, wn2, wn3 = pack_params(params, L)

    # Batch tiling: MXU-sized row tiles; "parallel" lets v7x shard across 2 TCs.
    if block_m is None:
        block_m = min(256, _round_up(B, 8))
    B_pad = _round_up(B, block_m)

    f32 = jnp.float32
    x_p = jnp.zeros((B_pad, L), f32).at[:B].set(x.astype(f32))
    v_p = jnp.zeros((B_pad, L), f32).at[:B].set(vocab.astype(f32))
    t_p = jnp.zeros((B_pad, 1), f32).at[:B].set(t.reshape(B, 1).astype(f32))

    # All weights stay VMEM-resident; guard against the smallest VMEM (v7x).
    weight_bytes = 2 * (L * L + 4 * D3 * D3 + D3 * D2 + D2 * L) + 4 * 11 * D3
    assert weight_bytes < 24 * 1024 * 1024, (
        "TODO(synk): add a K/N-tiled weight path once the all-in-VMEM "
        "assumption breaks (v7x: 64 MiB physical / 32 MiB scoped VMEM)")

    row_map = lambda i: (i, 0)
    const2 = lambda i: (0, 0)
    const3 = lambda i: (0, 0, 0)

    out = pl.pallas_call(
        noise_pred_kernel,
        out_shape=jax.ShapeDtypeStruct((B_pad, L), f32),
        grid=(B_pad // block_m,),
        in_specs=[
            pl.BlockSpec((block_m, L), row_map),    # x
            pl.BlockSpec((block_m, L), row_map),    # vocab
            pl.BlockSpec((block_m, 1), row_map),    # t
            pl.BlockSpec((11, D3), const2),         # packed vectors (f32)
            pl.BlockSpec((L, L), const2),           # wt2 (bf16)
            pl.BlockSpec((4, D3, D3), const3),      # 3Lx3L weight stack (bf16)
            pl.BlockSpec((D3, D2), const2),         # wn2 (bf16)
            pl.BlockSpec((D2, L), const2),          # wn3 (bf16)
        ],
        out_specs=pl.BlockSpec((block_m, L), row_map),
        scratch_shapes=[pltpu.VMEM((block_m, D3), f32)],
        compiler_params=pltpu.CompilerParams(
            dimension_semantics=("parallel",),
            vmem_limit_bytes=32 * 1024 * 1024,
        ),
    )(x_p, v_p, t_p, vecs, wt2, w33, wn2, wn3)

    # TODO(synk): for repeated diffusion steps with fixed params, keep the
    # weight slabs resident across calls (cross-pallas_call residency / P10)
    # instead of re-DMAing ~1.7 MiB of bf16 weights per step.
    return out[:B]


def reference_forward(p, x, vocab, t):
    """Pure-JAX reference with the same bf16-weight / f32-accumulate recipe."""
    f32 = jnp.float32
    bf16 = jnp.bfloat16

    def dot(a, w):
        return jnp.dot(a.astype(bf16), w.astype(bf16), preferred_element_type=f32)

    t2 = t.reshape(-1, 1).astype(f32)
    h = _silu(t2 * p["wt1"] + p["bt1"])
    time_emb = dot(h, p["wt2"]) + p["bt2"]
    z = jnp.concatenate([x.astype(f32), vocab.astype(f32), time_emb], axis=1)

    def layer(z):
        h = _silu(dot(z, p["wl1"]) + p["bl1"])
        h = _silu(dot(h, p["wl2"]) + p["bl2"])
        return dot(h, p["wl3"]) + p["bl3"]

    def norm(z):
        m = jnp.mean(z, axis=-1, keepdims=True)
        c = z - m
        v = jnp.mean(c * c, axis=-1, keepdims=True)
        return c * jax.lax.rsqrt(v + 1e-5) * p["gamma"] + p["beta"]

    z = norm(layer(z) + z)
    z = norm(layer(z) + z)
    h = _silu(dot(z, p["wn1"]) + p["bn1"])
    h = _silu(dot(h, p["wn2"]) + p["bn2"])
    return dot(h, p["wn3"]) + p["bn3"]


if __name__ == "__main__":
    B, L = 8, 128   # batch, len_seq (len_seq == hidden_dim)

    key = jax.random.PRNGKey(0)
    k_x, k_v, k_t, k_p = jax.random.split(key, 4)

    x = jax.random.normal(k_x, (B, L), dtype=jnp.float32)
    vocab = jax.random.normal(k_v, (B, L), dtype=jnp.float32)
    t = jax.random.randint(k_t, (B,), 0, 1000).astype(jnp.float32)

    params = init_params(L, k_p)

    out = jax.block_until_ready(noise_predictor_forward(params, x, vocab, t))
    assert out.shape == (B, L) and out.dtype == jnp.float32
    assert bool(jnp.all(jnp.isfinite(out)))

    ref = jax.block_until_ready(reference_forward(params, x, vocab, t))
    assert bool(jnp.allclose(out, ref, atol=5e-2, rtol=5e-2)), (
        "max abs diff vs reference: %f" % float(jnp.max(jnp.abs(out - ref))))

    print("KERNEL_OK")
</pallas_src>

<mosaic_0001>
module attributes {stable_mosaic.version = 11 : i64} {
  func.func @noise_pred_kernel(%arg0: i32, %arg1: memref<8x128xf32, #tpu.memory_space<vmem>>, %arg2: memref<8x128xf32, #tpu.memory_space<vmem>>, %arg3: memref<8x1xf32, #tpu.memory_space<vmem>>, %arg4: memref<11x384xf32, #tpu.memory_space<vmem>>, %arg5: memref<128x128xbf16, #tpu.memory_space<vmem>>, %arg6: memref<4x384x384xbf16, #tpu.memory_space<vmem>>, %arg7: memref<384x256xbf16, #tpu.memory_space<vmem>>, %arg8: memref<256x128xbf16, #tpu.memory_space<vmem>>, %arg9: memref<8x128xf32, #tpu.memory_space<vmem>>, %arg10: memref<8x384xf32, #tpu.memory_space<vmem>>) attributes {dimension_semantics = [#tpu.dimension_semantics<parallel>], iteration_bounds = array<i64: 1>, scalar_prefetch = 0 : i64, scratch_operands = 1 : i64, tpu.core_type = #tpu.core_type<tc>, window_params = [{transform_indices = @transform_0, window_bounds = array<i64: 8, 128>}, {transform_indices = @transform_1, window_bounds = array<i64: 8, 128>}, {transform_indices = @transform_2, window_bounds = array<i64: 8, 1>}, {pipeline_mode = #tpu.pipeline_mode<synchronous>, transform_indices = @transform_3, window_bounds = array<i64: 11, 384>}, {pipeline_mode = #tpu.pipeline_mode<synchronous>, transform_indices = @transform_4, window_bounds = array<i64: 128, 128>}, {pipeline_mode = #tpu.pipeline_mode<synchronous>, transform_indices = @transform_5, window_bounds = array<i64: 4, 384, 384>}, {pipeline_mode = #tpu.pipeline_mode<synchronous>, transform_indices = @transform_6, window_bounds = array<i64: 384, 256>}, {pipeline_mode = #tpu.pipeline_mode<synchronous>, transform_indices = @transform_7, window_bounds = array<i64: 256, 128>}, {transform_indices = @transform_8, window_bounds = array<i64: 8, 128>}]} {
    %c0 = arith.constant 0 : index
    %c0_0 = arith.constant 0 : index
    %0 = vector.load %arg4[%c0, %c0_0] : memref<11x384xf32, #tpu.memory_space<vmem>>, vector<1x128xf32>
    %c1 = arith.constant 1 : index
    %c0_1 = arith.constant 0 : index
    %1 = vector.load %arg4[%c1, %c0_1] : memref<11x384xf32, #tpu.memory_space<vmem>>, vector<1x128xf32>
    %c2 = arith.constant 2 : index
    %c0_2 = arith.constant 0 : index
    %2 = vector.load %arg4[%c2, %c0_2] : memref<11x384xf32, #tpu.memory_space<vmem>>, vector<1x128xf32>
    %c3 = arith.constant 3 : index
    %c0_3 = arith.constant 0 : index
    %3 = vector.load %arg4[%c3, %c0_3] : memref<11x384xf32, #tpu.memory_space<vmem>>, vector<1x384xf32>
    %c4 = arith.constant 4 : index
    %c0_4 = arith.constant 0 : index
    %4 = vector.load %arg4[%c4, %c0_4] : memref<11x384xf32, #tpu.memory_space<vmem>>, vector<1x384xf32>
    %c5 = arith.constant 5 : index
    %c0_5 = arith.constant 0 : index
    %5 = vector.load %arg4[%c5, %c0_5] : memref<11x384xf32, #tpu.memory_space<vmem>>, vector<1x384xf32>
    %c6 = arith.constant 6 : index
    %c0_6 = arith.constant 0 : index
    %6 = vector.load %arg4[%c6, %c0_6] : memref<11x384xf32, #tpu.memory_space<vmem>>, vector<1x384xf32>
    %c7 = arith.constant 7 : index
    %c0_7 = arith.constant 0 : index
    %7 = vector.load %arg4[%c7, %c0_7] : memref<11x384xf32, #tpu.memory_space<vmem>>, vector<1x384xf32>
    %c8 = arith.constant 8 : index
    %c0_8 = arith.constant 0 : index
    %8 = vector.load %arg4[%c8, %c0_8] : memref<11x384xf32, #tpu.memory_space<vmem>>, vector<1x384xf32>
    %c9 = arith.constant 9 : index
    %c0_9 = arith.constant 0 : index
    %9 = vector.load %arg4[%c9, %c0_9] : memref<11x384xf32, #tpu.memory_space<vmem>>, vector<1x256xf32>
    %c10 = arith.constant 10 : index
    %c0_10 = arith.constant 0 : index
    %10 = vector.load %arg4[%c10, %c0_10] : memref<11x384xf32, #tpu.memory_space<vmem>>, vector<1x128xf32>
    %c0_11 = arith.constant 0 : index
    %c0_12 = arith.constant 0 : index
    %11 = vector.load %arg3[%c0_11, %c0_12] : memref<8x1xf32, #tpu.memory_space<vmem>>, vector<8x1xf32>
    %12 = vector.broadcast %11 : vector<8x1xf32> to vector<8x128xf32>
    %13 = vector.broadcast %0 : vector<1x128xf32> to vector<8x128xf32>
    %14 = arith.mulf %12, %13 : vector<8x128xf32>
    %15 = vector.broadcast %1 : vector<1x128xf32> to vector<8x128xf32>
    %16 = arith.addf %14, %15 : vector<8x128xf32>
    %17 = arith.negf %16 : vector<8x128xf32>
    %18 = math.exp %17 : vector<8x128xf32>
    %cst = arith.constant 1.000000e+00 : f32
    %19 = vector.broadcast %cst : f32 to vector<8x128xf32>
    %20 = arith.addf %19, %18 : vector<8x128xf32>
    %21 = arith.divf %19, %20 : vector<8x128xf32>
    %22 = arith.mulf %16, %21 : vector<8x128xf32>
    %23 = arith.truncf %22 : vector<8x128xf32> to vector<8x128xbf16>
    %c0_13 = arith.constant 0 : index
    %c0_14 = arith.constant 0 : index
    %24 = vector.load %arg5[%c0_13, %c0_14] : memref<128x128xbf16, #tpu.memory_space<vmem>>, vector<128x128xbf16>
    %cst_15 = arith.constant dense<0.000000e+00> : vector<8x128xf32>
    %25 = tpu.matmul %23, %24, %cst_15 {dimension_numbers = #tpu.dot_dimension_numbers<[1], [0], [0], [1], [0, 0, 1, 1], [], []>} : vector<8x128xbf16>, vector<128x128xbf16>, vector<8x128xf32> -> vector<8x128xf32>
    %26 = vector.broadcast %2 : vector<1x128xf32> to vector<8x128xf32>
    %27 = arith.addf %25, %26 : vector<8x128xf32>
    %c0_16 = arith.constant 0 : index
    %c0_17 = arith.constant 0 : index
    %28 = vector.load %arg1[%c0_16, %c0_17] : memref<8x128xf32, #tpu.memory_space<vmem>>, vector<8x128xf32>
    %c0_18 = arith.constant 0 : index
    %c0_19 = arith.constant 0 : index
    %29 = vector.load %arg10[%c0_18, %c0_19] : memref<8x384xf32, #tpu.memory_space<vmem>>, vector<8x128xf32>
    tpu.vector_store %arg10[%c0_18, %c0_19], %28 {strides = array<i32>} : memref<8x384xf32, #tpu.memory_space<vmem>>, vector<8x128xf32>,
    %c0_20 = arith.constant 0 : index
    %c0_21 = arith.constant 0 : index
    %30 = vector.load %arg2[%c0_20, %c0_21] : memref<8x128xf32, #tpu.memory_space<vmem>>, vector<8x128xf32>
    %c0_22 = arith.constant 0 : index
    %c128 = arith.constant 128 : index
    %31 = vector.load %arg10[%c0_22, %c128] : memref<8x384xf32, #tpu.memory_space<vmem>>, vector<8x128xf32>
    tpu.vector_store %arg10[%c0_22, %c128], %30 {strides = array<i32>} : memref<8x384xf32, #tpu.memory_space<vmem>>, vector<8x128xf32>,
    %c0_23 = arith.constant 0 : index
    %c256 = arith.constant 256 : index
    %32 = vector.load %arg10[%c0_23, %c256] : memref<8x384xf32, #tpu.memory_space<vmem>>, vector<8x128xf32>
    tpu.vector_store %arg10[%c0_23, %c256], %27 {strides = array<i32>} : memref<8x384xf32, #tpu.memory_space<vmem>>, vector<8x128xf32>,
    %c0_24 = arith.constant 0 : index
    %c0_25 = arith.constant 0 : index
    %33 = vector.load %arg10[%c0_24, %c0_25] : memref<8x384xf32, #tpu.memory_space<vmem>>, vector<8x384xf32>
    %34 = arith.truncf %33 : vector<8x384xf32> to vector<8x384xbf16>
    %c0_26 = arith.constant 0 : index
    %c0_27 = arith.constant 0 : index
    %c0_28 = arith.constant 0 : index
    %35 = vector.load %arg6[%c0_26, %c0_27, %c0_28] : memref<4x384x384xbf16, #tpu.memory_space<vmem>>, vector<1x384x384xbf16>
    %36 = vector.shape_cast %35 : vector<1x384x384xbf16> to vector<384x384xbf16>
    %cst_29 = arith.constant dense<0.000000e+00> : vector<8x384xf32>
    %37 = tpu.matmul %34, %36, %cst_29 {dimension_numbers = #tpu.dot_dimension_numbers<[1], [0], [0], [1], [0, 0, 1, 1], [], []>} : vector<8x384xbf16>, vector<384x384xbf16>, vector<8x384xf32> -> vector<8x384xf32>
    %38 = vector.broadcast %3 : vector<1x384xf32> to vector<8x384xf32>
    %39 = arith.addf %37, %38 : vector<8x384xf32>
    %40 = arith.negf %39 : vector<8x384xf32>
    %41 = math.exp %40 : vector<8x384xf32>
    %cst_30 = arith.constant 1.000000e+00 : f32
    %42 = vector.broadcast %cst_30 : f32 to vector<8x384xf32>
    %43 = arith.addf %42, %41 : vector<8x384xf32>
    %44 = arith.divf %42, %43 : vector<8x384xf32>
    %45 = arith.mulf %39, %44 : vector<8x384xf32>
    %46 = arith.truncf %45 : vector<8x384xf32> to vector<8x384xbf16>
    %c1_31 = arith.constant 1 : index
    %c0_32 = arith.constant 0 : index
    %c0_33 = arith.constant 0 : index
    %47 = vector.load %arg6[%c1_31, %c0_32, %c0_33] : memref<4x384x384xbf16, #tpu.memory_space<vmem>>, vector<1x384x384xbf16>
    %48 = vector.shape_cast %47 : vector<1x384x384xbf16> to vector<384x384xbf16>
    %cst_34 = arith.constant dense<0.000000e+00> : vector<8x384xf32>
    %49 = tpu.matmul %46, %48, %cst_34 {dimension_numbers = #tpu.dot_dimension_numbers<[1], [0], [0], [1], [0, 0, 1, 1], [], []>} : vector<8x384xbf16>, vector<384x384xbf16>, vector<8x384xf32> -> vector<8x384xf32>
    %50 = vector.broadcast %4 : vector<1x384xf32> to vector<8x384xf32>
    %51 = arith.addf %49, %50 : vector<8x384xf32>
    %52 = arith.negf %51 : vector<8x384xf32>
    %53 = math.exp %52 : vector<8x384xf32>
    %cst_35 = arith.constant 1.000000e+00 : f32
    %54 = vector.broadcast %cst_35 : f32 to vector<8x384xf32>
    %55 = arith.addf %54, %53 : vector<8x384xf32>
    %56 = arith.divf %54, %55 : vector<8x384xf32>
    %57 = arith.mulf %51, %56 : vector<8x384xf32>
    %58 = arith.truncf %57 : vector<8x384xf32> to vector<8x384xbf16>
    %c2_36 = arith.constant 2 : index
    %c0_37 = arith.constant 0 : index
    %c0_38 = arith.constant 0 : index
    %59 = vector.load %arg6[%c2_36, %c0_37, %c0_38] : memref<4x384x384xbf16, #tpu.memory_space<vmem>>, vector<1x384x384xbf16>
    %60 = vector.shape_cast %59 : vector<1x384x384xbf16> to vector<384x384xbf16>
    %cst_39 = arith.constant dense<0.000000e+00> : vector<8x384xf32>
    %61 = tpu.matmul %58, %60, %cst_39 {dimension_numbers = #tpu.dot_dimension_numbers<[1], [0], [0], [1], [0, 0, 1, 1], [], []>} : vector<8x384xbf16>, vector<384x384xbf16>, vector<8x384xf32> -> vector<8x384xf32>
    %62 = vector.broadcast %5 : vector<1x384xf32> to vector<8x384xf32>
    %63 = arith.addf %61, %62 : vector<8x384xf32>
    %64 = arith.addf %63, %33 : vector<8x384xf32>
    %cst_40 = arith.constant dense<0.000000e+00> : vector<8xf32>
    %65 = vector.multi_reduction <add>, %64, %cst_40 [1] : vector<8x384xf32> to vector<8xf32>
    %66 = vector.shape_cast %65 : vector<8xf32> to vector<8x1xf32>
    %cst_41 = arith.constant 3.840000e+02 : f32
    %67 = vector.broadcast %cst_41 : f32 to vector<8x1xf32>
    %68 = arith.divf %66, %67 : vector<8x1xf32>
    %69 = vector.broadcast %68 : vector<8x1xf32> to vector<8x384xf32>
    %70 = arith.subf %64, %69 : vector<8x384xf32>
    %71 = arith.mulf %70, %70 : vector<8x384xf32>
    %cst_42 = arith.constant dense<0.000000e+00> : vector<8xf32>
    %72 = vector.multi_reduction <add>, %71, %cst_42 [1] : vector<8x384xf32> to vector<8xf32>
    %73 = vector.shape_cast %72 : vector<8xf32> to vector<8x1xf32>
    %cst_43 = arith.constant 3.840000e+02 : f32
    %74 = vector.broadcast %cst_43 : f32 to vector<8x1xf32>
    %75 = arith.divf %73, %74 : vector<8x1xf32>
    %cst_44 = arith.constant 9.99999974E-6 : f32
    %76 = vector.broadcast %cst_44 : f32 to vector<8x1xf32>
    %77 = arith.addf %75, %76 : vector<8x1xf32>
    %78 = math.rsqrt %77 : vector<8x1xf32>
    %79 = vector.broadcast %78 : vector<8x1xf32> to vector<8x384xf32>
    %80 = arith.mulf %70, %79 : vector<8x384xf32>
    %81 = vector.broadcast %6 : vector<1x384xf32> to vector<8x384xf32>
    %82 = arith.mulf %80, %81 : vector<8x384xf32>
    %83 = vector.broadcast %7 : vector<1x384xf32> to vector<8x384xf32>
    %84 = arith.addf %82, %83 : vector<8x384xf32>
    %85 = arith.truncf %84 : vector<8x384xf32> to vector<8x384xbf16>
    %c0_45 = arith.constant 0 : index
    %c0_46 = arith.constant 0 : index
    %c0_47 = arith.constant 0 : index
    %86 = vector.load %arg6[%c0_45, %c0_46, %c0_47] : memref<4x384x384xbf16, #tpu.memory_space<vmem>>, vector<1x384x384xbf16>
    %87 = vector.shape_cast %86 : vector<1x384x384xbf16> to vector<384x384xbf16>
    %cst_48 = arith.constant dense<0.000000e+00> : vector<8x384xf32>
    %88 = tpu.matmul %85, %87, %cst_48 {dimension_numbers = #tpu.dot_dimension_numbers<[1], [0], [0], [1], [0, 0, 1, 1], [], []>} : vector<8x384xbf16>, vector<384x384xbf16>, vector<8x384xf32> -> vector<8x384xf32>
    %89 = vector.broadcast %3 : vector<1x384xf32> to vector<8x384xf32>
    %90 = arith.addf %88, %89 : vector<8x384xf32>
    %91 = arith.negf %90 : vector<8x384xf32>
    %92 = math.exp %91 : vector<8x384xf32>
    %cst_49 = arith.constant 1.000000e+00 : f32
    %93 = vector.broadcast %cst_49 : f32 to vector<8x384xf32>
    %94 = arith.addf %93, %92 : vector<8x384xf32>
    %95 = arith.divf %93, %94 : vector<8x384xf32>
    %96 = arith.mulf %90, %95 : vector<8x384xf32>
    %97 = arith.truncf %96 : vector<8x384xf32> to vector<8x384xbf16>
    %c1_50 = arith.constant 1 : index
    %c0_51 = arith.constant 0 : index
    %c0_52 = arith.constant 0 : index
    %98 = vector.load %arg6[%c1_50, %c0_51, %c0_52] : memref<4x384x384xbf16, #tpu.memory_space<vmem>>, vector<1x384x384xbf16>
    %99 = vector.shape_cast %98 : vector<1x384x384xbf16> to vector<384x384xbf16>
    %cst_53 = arith.constant dense<0.000000e+00> : vector<8x384xf32>
    %100 = tpu.matmul %97, %99, %cst_53 {dimension_numbers = #tpu.dot_dimension_numbers<[1], [0], [0], [1], [0, 0, 1, 1], [], []>} : vector<8x384xbf16>, vector<384x384xbf16>, vector<8x384xf32> -> vector<8x384xf32>
    %101 = vector.broadcast %4 : vector<1x384xf32> to vector<8x384xf32>
    %102 = arith.addf %100, %101 : vector<8x384xf32>
    %103 = arith.negf %102 : vector<8x384xf32>
    %104 = math.exp %103 : vector<8x384xf32>
    %cst_54 = arith.constant 1.000000e+00 : f32
    %105 = vector.broadcast %cst_54 : f32 to vector<8x384xf32>
    %106 = arith.addf %105, %104 : vector<8x384xf32>
    %107 = arith.divf %105, %106 : vector<8x384xf32>
    %108 = arith.mulf %102, %107 : vector<8x384xf32>
    %109 = arith.truncf %108 : vector<8x384xf32> to vector<8x384xbf16>
    %c2_55 = arith.constant 2 : index
    %c0_56 = arith.constant 0 : index
    %c0_57 = arith.constant 0 : index
    %110 = vector.load %arg6[%c2_55, %c0_56, %c0_57] : memref<4x384x384xbf16, #tpu.memory_space<vmem>>, vector<1x384x384xbf16>
    %111 = vector.shape_cast %110 : vector<1x384x384xbf16> to vector<384x384xbf16>
    %cst_58 = arith.constant dense<0.000000e+00> : vector<8x384xf32>
    %112 = tpu.matmul %109, %111, %cst_58 {dimension_numbers = #tpu.dot_dimension_numbers<[1], [0], [0], [1], [0, 0, 1, 1], [], []>} : vector<8x384xbf16>, vector<384x384xbf16>, vector<8x384xf32> -> vector<8x384xf32>
    %113 = vector.broadcast %5 : vector<1x384xf32> to vector<8x384xf32>
    %114 = arith.addf %112, %113 : vector<8x384xf32>
    %115 = arith.addf %114, %84 : vector<8x384xf32>
    %cst_59 = arith.constant dense<0.000000e+00> : vector<8xf32>
    %116 = vector.multi_reduction <add>, %115, %cst_59 [1] : vector<8x384xf32> to vector<8xf32>
    %117 = vector.shape_cast %116 : vector<8xf32> to vector<8x1xf32>
    %cst_60 = arith.constant 3.840000e+02 : f32
    %118 = vector.broadcast %cst_60 : f32 to vector<8x1xf32>
    %119 = arith.divf %117, %118 : vector<8x1xf32>
    %120 = vector.broadcast %119 : vector<8x1xf32> to vector<8x384xf32>
    %121 = arith.subf %115, %120 : vector<8x384xf32>
    %122 = arith.mulf %121, %121 : vector<8x384xf32>
    %cst_61 = arith.constant dense<0.000000e+00> : vector<8xf32>
    %123 = vector.multi_reduction <add>, %122, %cst_61 [1] : vector<8x384xf32> to vector<8xf32>
    %124 = vector.shape_cast %123 : vector<8xf32> to vector<8x1xf32>
    %cst_62 = arith.constant 3.840000e+02 : f32
    %125 = vector.broadcast %cst_62 : f32 to vector<8x1xf32>
    %126 = arith.divf %124, %125 : vector<8x1xf32>
    %cst_63 = arith.constant 9.99999974E-6 : f32
    %127 = vector.broadcast %cst_63 : f32 to vector<8x1xf32>
    %128 = arith.addf %126, %127 : vector<8x1xf32>
    %129 = math.rsqrt %128 : vector<8x1xf32>
    %130 = vector.broadcast %129 : vector<8x1xf32> to vector<8x384xf32>
    %131 = arith.mulf %121, %130 : vector<8x384xf32>
    %132 = vector.broadcast %6 : vector<1x384xf32> to vector<8x384xf32>
    %133 = arith.mulf %131, %132 : vector<8x384xf32>
    %134 = vector.broadcast %7 : vector<1x384xf32> to vector<8x384xf32>
    %135 = arith.addf %133, %134 : vector<8x384xf32>
    %136 = arith.truncf %135 : vector<8x384xf32> to vector<8x384xbf16>
    %c3_64 = arith.constant 3 : index
    %c0_65 = arith.constant 0 : index
    %c0_66 = arith.constant 0 : index
    %137 = vector.load %arg6[%c3_64, %c0_65, %c0_66] : memref<4x384x384xbf16, #tpu.memory_space<vmem>>, vector<1x384x384xbf16>
    %138 = vector.shape_cast %137 : vector<1x384x384xbf16> to vector<384x384xbf16>
    %cst_67 = arith.constant dense<0.000000e+00> : vector<8x384xf32>
    %139 = tpu.matmul %136, %138, %cst_67 {dimension_numbers = #tpu.dot_dimension_numbers<[1], [0], [0], [1], [0, 0, 1, 1], [], []>} : vector<8x384xbf16>, vector<384x384xbf16>, vector<8x384xf32> -> vector<8x384xf32>
    %140 = vector.broadcast %8 : vector<1x384xf32> to vector<8x384xf32>
    %141 = arith.addf %139, %140 : vector<8x384xf32>
    %142 = arith.negf %141 : vector<8x384xf32>
    %143 = math.exp %142 : vector<8x384xf32>
    %cst_68 = arith.constant 1.000000e+00 : f32
    %144 = vector.broadcast %cst_68 : f32 to vector<8x384xf32>
    %145 = arith.addf %144, %143 : vector<8x384xf32>
    %146 = arith.divf %144, %145 : vector<8x384xf32>
    %147 = arith.mulf %141, %146 : vector<8x384xf32>
    %148 = arith.truncf %147 : vector<8x384xf32> to vector<8x384xbf16>
    %c0_69 = arith.constant 0 : index
    %c0_70 = arith.constant 0 : index
    %149 = vector.load %arg7[%c0_69, %c0_70] : memref<384x256xbf16, #tpu.memory_space<vmem>>, vector<384x256xbf16>
    %cst_71 = arith.constant dense<0.000000e+00> : vector<8x256xf32>
    %150 = tpu.matmul %148, %149, %cst_71 {dimension_numbers = #tpu.dot_dimension_numbers<[1], [0], [0], [1], [0, 0, 1, 1], [], []>} : vector<8x384xbf16>, vector<384x256xbf16>, vector<8x256xf32> -> vector<8x256xf32>
    %151 = vector.broadcast %9 : vector<1x256xf32> to vector<8x256xf32>
    %152 = arith.addf %150, %151 : vector<8x256xf32>
    %153 = arith.negf %152 : vector<8x256xf32>
    %154 = math.exp %153 : vector<8x256xf32>
    %cst_72 = arith.constant 1.000000e+00 : f32
    %155 = vector.broadcast %cst_72 : f32 to vector<8x256xf32>
    %156 = arith.addf %155, %154 : vector<8x256xf32>
    %157 = arith.divf %155, %156 : vector<8x256xf32>
    %158 = arith.mulf %152, %157 : vector<8x256xf32>
    %159 = arith.truncf %158 : vector<8x256xf32> to vector<8x256xbf16>
    %c0_73 = arith.constant 0 : index
    %c0_74 = arith.constant 0 : index
    %160 = vector.load %arg8[%c0_73, %c0_74] : memref<256x128xbf16, #tpu.memory_space<vmem>>, vector<256x128xbf16>
    %cst_75 = arith.constant dense<0.000000e+00> : vector<8x128xf32>
    %161 = tpu.matmul %159, %160, %cst_75 {dimension_numbers = #tpu.dot_dimension_numbers<[1], [0], [0], [1], [0, 0, 1, 1], [], []>} : vector<8x256xbf16>, vector<256x128xbf16>, vector<8x128xf32> -> vector<8x128xf32>
    %162 = vector.broadcast %10 : vector<1x128xf32> to vector<8x128xf32>
    %163 = arith.addf %161, %162 : vector<8x128xf32>
    %c0_76 = arith.constant 0 : index
    %c0_77 = arith.constant 0 : index
    %164 = vector.load %arg9[%c0_76, %c0_77] : memref<8x128xf32, #tpu.memory_space<vmem>>, vector<8x128xf32>
    tpu.vector_store %arg9[%c0_76, %c0_77], %163 {strides = array<i32>} : memref<8x128xf32, #tpu.memory_space<vmem>>, vector<8x128xf32>,
    return
  }
  func.func @transform_0(%arg0: i32) -> (i32, i32) {
    %c0_i32 = arith.constant 0 : i32
    %c0_i32_0 = arith.constant 0 : i32
    return %arg0, %c0_i32 : i32, i32
  }
  func.func @transform_1(%arg0: i32) -> (i32, i32) {
    %c0_i32 = arith.constant 0 : i32
    %c0_i32_0 = arith.constant 0 : i32
    return %arg0, %c0_i32 : i32, i32
  }
  func.func @transform_2(%arg0: i32) -> (i32, i32) {
    %c0_i32 = arith.constant 0 : i32
    %c0_i32_0 = arith.constant 0 : i32
    return %arg0, %c0_i32 : i32, i32
  }
  func.func @transform_3(%arg0: i32) -> (i32, i32) {
    %c0_i32 = arith.constant 0 : i32
    %c0_i32_0 = arith.constant 0 : i32
    %c0_i32_1 = arith.constant 0 : i32
    return %c0_i32, %c0_i32_0 : i32, i32
  }
  func.func @transform_4(%arg0: i32) -> (i32, i32) {
    %c0_i32 = arith.constant 0 : i32
    %c0_i32_0 = arith.constant 0 : i32
    %c0_i32_1 = arith.constant 0 : i32
    return %c0_i32, %c0_i32_0 : i32, i32
  }
  func.func @transform_5(%arg0: i32) -> (i32, i32, i32) {
    %c0_i32 = arith.constant 0 : i32
    %c0_i32_0 = arith.constant 0 : i32
    %c0_i32_1 = arith.constant 0 : i32
    %c0_i32_2 = arith.constant 0 : i32
    return %c0_i32, %c0_i32_0, %c0_i32_1 : i32, i32, i32
  }
  func.func @transform_6(%arg0: i32) -> (i32, i32) {
    %c0_i32 = arith.constant 0 : i32
    %c0_i32_0 = arith.constant 0 : i32
    %c0_i32_1 = arith.constant 0 : i32
    return %c0_i32, %c0_i32_0 : i32, i32
  }
  func.func @transform_7(%arg0: i32) -> (i32, i32) {
    %c0_i32 = arith.constant 0 : i32
    %c0_i32_0 = arith.constant 0 : i32
    %c0_i32_1 = arith.constant 0 : i32
    return %c0_i32, %c0_i32_0 : i32, i32
  }
  func.func @transform_8(%arg0: i32) -> (i32, i32) {
    %c0_i32 = arith.constant 0 : i32
    %c0_i32_0 = arith.constant 0 : i32
    return %arg0, %c0_i32 : i32, i32
  }
}

</mosaic_0001>

<llo_original>
// kernel: noise_predictor_forward.1
$region0: #{noise_predictor_forward.1}
  #allocation0 [shape = 'u32[]', space=smem, size = 0x4, offset = 0x4, fixed_abs, tag = 'smem constant byte address 0x4 - core index']
  #allocation1 [shape = 'u32[144,128]{1,0:T(1,128)}', space=vmem, size = 0x12000, scoped, tag = 'internal scratch']
  #allocation2 [shape = 'f32[8,384]{1,0:T(8,128)}', space=vmem, size = 0x3000, scoped, tag = 'scratch operand']
  %s0 = inlined_call_operand.vmem [shape: f32[8,128], index: 0, kind: input, shape index: {}]
  %s1 = inlined_call_operand.vmem [shape: f32[8,128], index: 1, kind: input, shape index: {}]
  %s2 = inlined_call_operand.vmem [shape: f32[8,1], index: 2, kind: input, shape index: {}]
  %s3 = inlined_call_operand.vmem [shape: f32[11,384], index: 3, kind: input, shape index: {}]
  %s4 = inlined_call_operand.vmem [shape: bf16[128,128], index: 4, kind: input, shape index: {}]
  %s5 = inlined_call_operand.vmem [shape: bf16[4,384,384], index: 5, kind: input, shape index: {}]
  %s6 = inlined_call_operand.vmem [shape: bf16[384,256], index: 6, kind: input, shape index: {}]
  %s7 = inlined_call_operand.vmem [shape: bf16[256,128], index: 7, kind: input, shape index: {}]
  %s8 = inlined_call_operand.hbm [shape: f32[8,128], index: 8, kind: output, shape index: {}]
  %s9 = sld [smem:[#allocation0]]
  $region42: #{noise_predictor_forward.1} parent=0
    _
  %s11 = ssub.s32 1, %s9
  %s12 = scalar_select 0, %s11, %s9
  $region1: #{noise_predictor_forward.1} parent=0
    #allocation3 [shape = 'u8[4096]{0}', space=vmem, size = 0x1000, scoped, tag = 'output window, operand 0, single buffered']
    #allocation4 [shape = 's32[1]{0}', space=sflag, size = 0x4, scoped, tag = 'scoped memory for noise_predictor_forward.1']
    %13 = vsyncpa [#allocation4], 0
    // Predicated region
    $region2: #{noise_predictor_forward.1} parent=1 // pred_check
      _
    $region3: #{noise_predictor_forward.1} parent=1 // pred_check_branch
      %15 = sbr.rel (0) target = $region5
    $region4: #{noise_predictor_forward.1} parent=1 // pred_region
      _
    $region5: #{noise_predictor_forward.1} parent=1 // pred_fallthru
      _
    // Predicated region
    $region6: #{noise_predictor_forward.1} parent=1 // pred_check
      _
    $region7: #{noise_predictor_forward.1} parent=1 // pred_check_branch
      %17 = sbr.rel (0) target = $region9
    $region8: #{noise_predictor_forward.1} parent=1 // pred_region
      _
    $region9: #{noise_predictor_forward.1} parent=1 // pred_fallthru
      _
    // Predicated region
    $region10: #{noise_predictor_forward.1} parent=1 // pred_check
      _
    $region11: #{noise_predictor_forward.1} parent=1 // pred_check_branch
      %19 = sbr.rel (0) target = $region13
    $region12: #{noise_predictor_forward.1} parent=1 // pred_region
      _
    $region13: #{noise_predictor_forward.1} parent=1 // pred_fallthru
      _
    // Predicated region
    $region14: #{noise_predictor_forward.1} parent=1 // pred_check
      _
    $region15: #{noise_predictor_forward.1} parent=1 // pred_check_branch
      %21 = sbr.rel (0) target = $region17
    $region16: #{noise_predictor_forward.1} parent=1 // pred_region
      _
    $region17: #{noise_predictor_forward.1} parent=1 // pred_fallthru
      _
    // Predicated region
    $region18: #{noise_predictor_forward.1} parent=1 // pred_check
      _
    $region19: #{noise_predictor_forward.1} parent=1 // pred_check_branch
      %23 = sbr.rel (0) target = $region21
    $region20: #{noise_predictor_forward.1} parent=1 // pred_region
      _
    $region21: #{noise_predictor_forward.1} parent=1 // pred_fallthru
      _
    // Predicated region
    $region22: #{noise_predictor_forward.1} parent=1 // pred_check
      _
    $region23: #{noise_predictor_forward.1} parent=1 // pred_check_branch
      %25 = sbr.rel (0) target = $region25
    $region24: #{noise_predictor_forward.1} parent=1 // pred_region
      _
    $region25: #{noise_predictor_forward.1} parent=1 // pred_fallthru
      _
    // Predicated region
    $region26: #{noise_predictor_forward.1} parent=1 // pred_check
      _
    $region27: #{noise_predictor_forward.1} parent=1 // pred_check_branch
      %27 = sbr.rel (0) target = $region29
    $region28: #{noise_predictor_forward.1} parent=1 // pred_region
      _
    $region29: #{noise_predictor_forward.1} parent=1 // pred_fallthru
      _
    // Predicated region
    $region30: #{noise_predictor_forward.1} parent=1 // pred_check
      _
    $region31: #{noise_predictor_forward.1} parent=1 // pred_check_branch
      %29 = sbr.rel (0) target = $region33
    $region32: #{noise_predictor_forward.1} parent=1 // pred_region
      _
    $region33: #{noise_predictor_forward.1} parent=1 // pred_fallthru
      _
    %v31 = vld [vmem:[%s3] ss:$0 sm:$0xff]
    %v32 = vld [vmem:[%s3 + $0x1] ss:$0 sm:$0xff]
    %v33 = vld [vmem:[%s3 + $0x2] ss:$0 sm:$0xff]
    %s34 = scalar_lea.vmem %s3, 3
    %v35 = vld [vmem:[%s34] ss:$8 sm:$0x7]
    %s36 = scalar_lea.vmem %s3, 4
    %v37 = vld [vmem:[%s36] ss:$8 sm:$0x7]
    %s38 = scalar_lea.vmem %s3, 5
    %v39 = vld [vmem:[%s38] ss:$8 sm:$0x7]
    %s40 = scalar_lea.vmem %s3, 6
    %v41 = vld [vmem:[%s40] ss:$8 sm:$0x7]
    %s42 = scalar_lea.vmem %s3, 7
    %v43 = vld [vmem:[%s42] ss:$8 sm:$0x7]
    %s44 = scalar_lea.vmem %s3, 24
    %v45 = vld [vmem:[%s44] ss:$8 sm:$0x7]
    %s46 = scalar_lea.vmem %s3, 25
    %v47 = vld [vmem:[%s46] ss:$8 sm:$0x3]
    %v48 = vld [vmem:[%s3 + $0x1a] ss:$0 sm:$0xff]
    %v49 = vld [vmem:[%s2] sm:$0xff]
    %51 = vset.pattern.permute.xlu0 0
    %52 = vperm.xlu0 %51, %v49
    %v53 = vpop.permute.xlu0 %52
    %v55 = vmul.f32 %v53, %v31
    %v56 = vadd.f32 %v55, %v32
    %v57 = vxor.u32 %v56, 2147483648
    %v58 = vmul.f32 %v57, 1.442695
    %v59 = vpow.pop %v58
    %v60 = vadd.f32 %v59, 1.0
    %v61 = vrcp.pop %v60
    %v62 = vmul.f32 1.0, %v61
    %v63 = vmul.f32 %v56, %v62
    %v64 = vpack.c.bf16 %v63, %v63
    %v65 = vld [vmem:[%s4] sm:$0xf]
    %v66 = vld [vmem:[%s4 + $0x4] sm:$0xf]
    %v67 = vld [vmem:[%s4 + $0x8] sm:$0xf]
    %v68 = vld [vmem:[%s4 + $0xc] sm:$0xf]
    %v69 = vld [vmem:[%s4 + $0x10] sm:$0xf]
    %v70 = vld [vmem:[%s4 + $0x14] sm:$0xf]
    %v71 = vld [vmem:[%s4 + $0x18] sm:$0xf]
    %v72 = vld [vmem:[%s4 + $0x1c] sm:$0xf]
    %v73 = vld [vmem:[%s4 + $0x20] sm:$0xf]
    %v74 = vld [vmem:[%s4 + $0x24] sm:$0xf]
    %v75 = vld [vmem:[%s4 + $0x28] sm:$0xf]
    %v76 = vld [vmem:[%s4 + $0x2c] sm:$0xf]
    %v77 = vld [vmem:[%s4 + $0x30] sm:$0xf]
    %v78 = vld [vmem:[%s4 + $0x34] sm:$0xf]
    %v79 = vld [vmem:[%s4 + $0x38] sm:$0xf]
    %v80 = vld [vmem:[%s4 + $0x3c] sm:$0xf]
    %v97 = vunpack.c.l.b16 %v65
    %v98 = vunpack.c.l.b16 %v66
    %v99 = vunpack.c.l.b16 %v67
    %v100 = vunpack.c.l.b16 %v68
    %v101 = vunpack.c.l.b16 %v69
    %v102 = vunpack.c.l.b16 %v70
    %v103 = vunpack.c.l.b16 %v71
    %v104 = vunpack.c.l.b16 %v72
    %v105 = vunpack.c.l.b16 %v73
    %v106 = vunpack.c.l.b16 %v74
    %v107 = vunpack.c.l.b16 %v75
    %v108 = vunpack.c.l.b16 %v76
    %v109 = vunpack.c.l.b16 %v77
    %v110 = vunpack.c.l.b16 %v78
    %v111 = vunpack.c.l.b16 %v79
    %v112 = vunpack.c.l.b16 %v80
    %v113 = vpack.c.b16 %v98, %v97
    %v114 = vpack.c.b16 %v100, %v99
    %v115 = vpack.c.b16 %v102, %v101
    %v116 = vpack.c.b16 %v104, %v103
    %v117 = vpack.c.b16 %v106, %v105
    %v118 = vpack.c.b16 %v108, %v107
    %v119 = vpack.c.b16 %v110, %v109
    %v120 = vpack.c.b16 %v112, %v111
    %129 = vmatprep.subr.bf16.mxu0 0
    %130 = vmatpush1.bf16.msra.mxu0 %v120
    %131 = vmatprep.subr.bf16.mxu0 0
    %132 = vmatpush1.bf16.msra.mxu0 %v119
    %133 = vmatprep.subr.bf16.mxu0 0
    %134 = vmatpush1.bf16.msra.mxu0 %v118
    %135 = vmatprep.subr.bf16.mxu0 0
    %136 = vmatpush1.bf16.msra.mxu0 %v117
    %137 = vmatprep.subr.bf16.mxu0 0
    %138 = vmatpush1.bf16.msra.mxu0 %v116
    %139 = vmatprep.subr.bf16.mxu0 0
    %140 = vmatpush1.bf16.msra.mxu0 %v115
    %141 = vmatprep.subr.bf16.mxu0 0
    %142 = vmatpush1.bf16.msra.mxu0 %v114
    %143 = vmatprep.subr.bf16.mxu0 0
    %144 = vmatpush1.bf16.msra.mxu0 %v113
    %145 = vmatprep.subr.bf16.mxu0 0
    %146 = vmatpush2.bf16.msra.mxu0 0
    %147 = vmatprep.subr.bf16.mxu0 0
    %148 = vmatpush2.bf16.msra.mxu0 0
    %149 = vmatprep.subr.bf16.mxu0 0
    %150 = vmatpush2.bf16.msra.mxu0 0
    %151 = vmatprep.subr.bf16.mxu0 0
    %152 = vmatpush2.bf16.msra.mxu0 0
    %153 = vmatprep.subr.bf16.mxu0 0
    %154 = vmatpush2.bf16.msra.mxu0 0
    %155 = vmatprep.subr.bf16.mxu0 0
    %156 = vmatpush2.bf16.msra.mxu0 0
    %157 = vmatprep.subr.bf16.mxu0 0
    %158 = vmatpush2.bf16.msra.mxu0 0
    %159 = vmatprep.subr.bf16.mxu0 0
    %160 = vmatpush2.bf16.msra.mxu0 0
    %161 = vmatprep.mubr.bf16.mxu0 0
    %162 = vmatmul.mubr.bf16.gmra.mxu0 %v64
    %v163 = vpop.f32.mrf.mxu0
    %v164 = vadd.f32 %v33, %v163
    %v165 = vpop.f32.mrf.mxu0
    %v166 = vpop.f32.mrf.mxu0
    %v167 = vpop.f32.mrf.mxu0
    %168 = vdwg.mxu0
    %v169 = vld [vmem:[%s0] sm:$0xff]
    %170 = vst [vmem:[#allocation2] sm:$0xff] %v169
    %v171 = vld [vmem:[%s1] sm:$0xff]
    %172 = vst [vmem:[#allocation2 + $0x8] sm:$0xff] %v171
    %173 = vst [vmem:[#allocation2 + $0x10] sm:$0xff] %v164
    %v174 = vld [vmem:[#allocation2] sm:$0xff]
    %v175 = vld [vmem:[#allocation2 + $0x8] sm:$0xff]
    %v176 = vld [vmem:[#allocation2 + $0x10] sm:$0xff]
    %v177 = vpack.c.bf16 %v174, %v174
    %v178 = vpack.c.bf16 %v175, %v175
    %v179 = vpack.c.bf16 %v176, %v176
    %v180 = vld [vmem:[%s5] sm:$0xff]
    %v181 = vld [vmem:[%s5 + $0x8] sm:$0xf]
    %v182 = vld [vmem:[%s5 + $0xc] sm:$0xff]
    %v183 = vld [vmem:[%s5 + $0x14] sm:$0xf]
    %v184 = vld [vmem:[%s5 + $0x18] sm:$0xff]
    %v185 = vld [vmem:[%s5 + $0x20] sm:$0xf]
    %v186 = vld [vmem:[%s5 + $0x24] sm:$0xff]
    %v187 = vld [vmem:[%s5 + $0x2c] sm:$0xf]
    %v188 = vld [vmem:[%s5 + $0x30] sm:$0xff]
    %v189 = vld [vmem:[%s5 + $0x38] sm:$0xf]
    %v190 = vld [vmem:[%s5 + $0x3c] sm:$0xff]
    %v191 = vld [vmem:[%s5 + $0x44] sm:$0xf]
    %v192 = vld [vmem:[%s5 + $0x48] sm:$0xff]
    %v193 = vld [vmem:[%s5 + $0x50] sm:$0xf]
    %v194 = vld [vmem:[%s5 + $0x54] sm:$0xff]
    %v195 = vld [vmem:[%s5 + $0x5c] sm:$0xf]
    %v196 = vld [vmem:[%s5 + $0x60] sm:$0xff]
    %v197 = vld [vmem:[%s5 + $0x68] sm:$0xf]
    %v198 = vld [vmem:[%s5 + $0x6c] sm:$0xff]
    %v199 = vld [vmem:[%s5 + $0x74] sm:$0xf]
    %v200 = vld [vmem:[%s5 + $0x78] sm:$0xff]
    %v201 = vld [vmem:[%s5 + $0x80] sm:$0xf]
    %v202 = vld [vmem:[%s5 + $0x84] sm:$0xff]
    %v203 = vld [vmem:[%s5 + $0x8c] sm:$0xf]
    %v204 = vld [vmem:[%s5 + $0x90] sm:$0xff]
    %v205 = vld [vmem:[%s5 + $0x98] sm:$0xf]
    %v206 = vld [vmem:[%s5 + $0x9c] sm:$0xff]
    %v207 = vld [vmem:[%s5 + $0xa4] sm:$0xf]
    %v208 = vld [vmem:[%s5 + $0xa8] sm:$0xff]
    %v209 = vld [vmem:[%s5 + $0xb0] sm:$0xf]
    %v210 = vld [vmem:[%s5 + $0xb4] sm:$0xff]
    %v211 = vld [vmem:[%s5 + $0xbc] sm:$0xf]
    %v212 = vld [vmem:[%s5 + $0xc0] sm:$0xff]
    %v213 = vld [vmem:[%s5 + $0xc8] sm:$0xf]
    %v214 = vld [vmem:[%s5 + $0xcc] sm:$0xff]
    %v215 = vld [vmem:[%s5 + $0xd4] sm:$0xf]
    %v216 = vld [vmem:[%s5 + $0xd8] sm:$0xff]
    %v217 = vld [vmem:[%s5 + $0xe0] sm:$0xf]
    %v218 = vld [vmem:[%s5 + $0xe4] sm:$0xff]
    %v219 = vld [vmem:[%s5 + $0xec] sm:$0xf]
    %v220 = vld [vmem:[%s5 + $0xf0] sm:$0xff]
    %v221 = vld [vmem:[%s5 + $0xf8] sm:$0xf]
    %v222 = vld [vmem:[%s5 + $0xfc] sm:$0xff]
    %v223 = vld [vmem:[%s5 + $0x104] sm:$0xf]
    %v224 = vld [vmem:[%s5 + $0x108] sm:$0xff]
    %v225 = vld [vmem:[%s5 + $0x110] sm:$0xf]
    %v226 = vld [vmem:[%s5 + $0x114] sm:$0xff]
    %v227 = vld [vmem:[%s5 + $0x11c] sm:$0xf]
    %v228 = vld [vmem:[%s5 + $0x120] sm:$0xff]
    %v229 = vld [vmem:[%s5 + $0x128] sm:$0xf]
    %v230 = vld [vmem:[%s5 + $0x12c] sm:$0xff]
    %v231 = vld [vmem:[%s5 + $0x134] sm:$0xf]
    %v232 = vld [vmem:[%s5 + $0x138] sm:$0xff]
    %v233 = vld [vmem:[%s5 + $0x140] sm:$0xf]
    %v234 = vld [vmem:[%s5 + $0x144] sm:$0xff]
    %v235 = vld [vmem:[%s5 + $0x14c] sm:$0xf]
    %v236 = vld [vmem:[%s5 + $0x150] sm:$0xff]
    %v237 = vld [vmem:[%s5 + $0x158] sm:$0xf]
    %v238 = vld [vmem:[%s5 + $0x15c] sm:$0xff]
    %v239 = vld [vmem:[%s5 + $0x164] sm:$0xf]
    %v240 = vld [vmem:[%s5 + $0x168] sm:$0xff]
    %v241 = vld [vmem:[%s5 + $0x170] sm:$0xf]
    %v242 = vld [vmem:[%s5 + $0x174] sm:$0xff]
    %v243 = vld [vmem:[%s5 + $0x17c] sm:$0xf]
    %v244 = vld [vmem:[%s5 + $0x180] sm:$0xff]
    %v245 = vld [vmem:[%s5 + $0x188] sm:$0xf]
    %v246 = vld [vmem:[%s5 + $0x18c] sm:$0xff]
    %v247 = vld [vmem:[%s5 + $0x194] sm:$0xf]
    %v248 = vld [vmem:[%s5 + $0x198] sm:$0xff]
    %v249 = vld [vmem:[%s5 + $0x1a0] sm:$0xf]
    %v250 = vld [vmem:[%s5 + $0x1a4] sm:$0xff]
    %v251 = vld [vmem:[%s5 + $0x1ac] sm:$0xf]
    %v252 = vld [vmem:[%s5 + $0x1b0] sm:$0xff]
    %v253 = vld [vmem:[%s5 + $0x1b8] sm:$0xf]
    %v254 = vld [vmem:[%s5 + $0x1bc] sm:$0xff]
    %v255 = vld [vmem:[%s5 + $0x1c4] sm:$0xf]
    %v256 = vld [vmem:[%s5 + $0x1c8] sm:$0xff]
    %v257 = vld [vmem:[%s5 + $0x1d0] sm:$0xf]
    %v258 = vld [vmem:[%s5 + $0x1d4] sm:$0xff]
    %v259 = vld [vmem:[%s5 + $0x1dc] sm:$0xf]
    %v260 = vld [vmem:[%s5 + $0x1e0] sm:$0xff]
    %v261 = vld [vmem:[%s5 + $0x1e8] sm:$0xf]
    %v262 = vld [vmem:[%s5 + $0x1ec] sm:$0xff]
    %v263 = vld [vmem:[%s5 + $0x1f4] sm:$0xf]
    %v264 = vld [vmem:[%s5 + $0x1f8] sm:$0xff]
    %v265 = vld [vmem:[%s5 + $0x200] sm:$0xf]
    %v266 = vld [vmem:[%s5 + $0x204] sm:$0xff]
    %v267 = vld [vmem:[%s5 + $0x20c] sm:$0xf]
    %v268 = vld [vmem:[%s5 + $0x210] sm:$0xff]
    %v269 = vld [vmem:[%s5 + $0x218] sm:$0xf]
    %v270 = vld [vmem:[%s5 + $0x21c] sm:$0xff]
    %v271 = vld [vmem:[%s5 + $0x224] sm:$0xf]
    %v272 = vld [vmem:[%s5 + $0x228] sm:$0xff]
    %v273 = vld [vmem:[%s5 + $0x230] sm:$0xf]
    %v274 = vld [vmem:[%s5 + $0x234] sm:$0xff]
    %v275 = vld [vmem:[%s5 + $0x23c] sm:$0xf]
    %v277 = vlaneseq
    %v278 = vshrl.u32 %v277, 7
    %v279 = vsub.s32 0, %v278
    %v280 = vrot.slane %v35, %v279
    %v281 = vlaneseq
    %v282 = vshrl.u32 %v281, 7
    %v283 = vsub.s32 1, %v282
    %v284 = vrot.slane %v35, %v283
    %v285 = vlaneseq
    %v286 = vshrl.u32 %v285, 7
    %v287 = vsub.s32 2, %v286
    %v288 = vrot.slane %v35, %v287
    %v388 = vunpack.c.l.b16 %v180
    %v389 = vunpack.c.h.b16 %v180
    %v390 = vunpack.c.l.b16 %v181
    %v391 = vunpack.c.l.b16 %v182
    %v392 = vunpack.c.h.b16 %v182
    %v393 = vunpack.c.l.b16 %v183
    %v394 = vunpack.c.l.b16 %v184
    %v395 = vunpack.c.h.b16 %v184
    %v396 = vunpack.c.l.b16 %v185
    %v397 = vunpack.c.l.b16 %v186
    %v398 = vunpack.c.h.b16 %v186
    %v399 = vunpack.c.l.b16 %v187
    %v400 = vunpack.c.l.b16 %v188
    %v401 = vunpack.c.h.b16 %v188
    %v402 = vunpack.c.l.b16 %v189
    %v403 = vunpack.c.l.b16 %v190
    %v404 = vunpack.c.h.b16 %v190
    %v405 = vunpack.c.l.b16 %v191
    %v406 = vunpack.c.l.b16 %v192
    %v407 = vunpack.c.h.b16 %v192
    %v408 = vunpack.c.l.b16 %v193
    %v409 = vunpack.c.l.b16 %v194
    %v410 = vunpack.c.h.b16 %v194
    %v411 = vunpack.c.l.b16 %v195
    %v412 = vunpack.c.l.b16 %v196
    %v413 = vunpack.c.h.b16 %v196
    %v414 = vunpack.c.l.b16 %v197
    %v415 = vunpack.c.l.b16 %v198
    %v416 = vunpack.c.h.b16 %v198
    %v417 = vunpack.c.l.b16 %v199
    %v418 = vunpack.c.l.b16 %v200
    %v419 = vunpack.c.h.b16 %v200
    %v420 = vunpack.c.l.b16 %v201
    %v421 = vunpack.c.l.b16 %v202
    %v422 = vunpack.c.h.b16 %v202
    %v423 = vunpack.c.l.b16 %v203
    %v424 = vunpack.c.l.b16 %v204
    %v425 = vunpack.c.h.b16 %v204
    %v426 = vunpack.c.l.b16 %v205
    %v427 = vunpack.c.l.b16 %v206
    %v428 = vunpack.c.h.b16 %v206
    %v429 = vunpack.c.l.b16 %v207
    %v430 = vunpack.c.l.b16 %v208
    %v431 = vunpack.c.h.b16 %v208
    %v432 = vunpack.c.l.b16 %v209
    %v433 = vunpack.c.l.b16 %v210
    %v434 = vunpack.c.h.b16 %v210
    %v435 = vunpack.c.l.b16 %v211
    %v436 = vunpack.c.l.b16 %v212
    %v437 = vunpack.c.h.b16 %v212
    %v438 = vunpack.c.l.b16 %v213
    %v439 = vunpack.c.l.b16 %v214
    %v440 = vunpack.c.h.b16 %v214
    %v441 = vunpack.c.l.b16 %v215
    %v442 = vunpack.c.l.b16 %v216
    %v443 = vunpack.c.h.b16 %v216
    %v444 = vunpack.c.l.b16 %v217
    %v445 = vunpack.c.l.b16 %v218
    %v446 = vunpack.c.h.b16 %v218
    %v447 = vunpack.c.l.b16 %v219
    %v448 = vunpack.c.l.b16 %v220
    %v449 = vunpack.c.h.b16 %v220
    %v450 = vunpack.c.l.b16 %v221
    %v451 = vunpack.c.l.b16 %v222
    %v452 = vunpack.c.h.b16 %v222
    %v453 = vunpack.c.l.b16 %v223
    %v454 = vunpack.c.l.b16 %v224
    %v455 = vunpack.c.h.b16 %v224
    %v456 = vunpack.c.l.b16 %v225
    %v457 = vunpack.c.l.b16 %v226
    %v458 = vunpack.c.h.b16 %v226
    %v459 = vunpack.c.l.b16 %v227
    %v460 = vunpack.c.l.b16 %v228
    %v461 = vunpack.c.h.b16 %v228
    %v462 = vunpack.c.l.b16 %v229
    %v463 = vunpack.c.l.b16 %v230
    %v464 = vunpack.c.h.b16 %v230
    %v465 = vunpack.c.l.b16 %v231
    %v466 = vunpack.c.l.b16 %v232
    %v467 = vunpack.c.h.b16 %v232
    %v468 = vunpack.c.l.b16 %v233
    %v469 = vunpack.c.l.b16 %v234
    %v470 = vunpack.c.h.b16 %v234
    %v471 = vunpack.c.l.b16 %v235
    %v472 = vunpack.c.l.b16 %v236
    %v473 = vunpack.c.h.b16 %v236
    %v474 = vunpack.c.l.b16 %v237
    %v475 = vunpack.c.l.b16 %v238
    %v476 = vunpack.c.h.b16 %v238
    %v477 = vunpack.c.l.b16 %v239
    %v478 = vunpack.c.l.b16 %v240
    %v479 = vunpack.c.h.b16 %v240
    %v480 = vunpack.c.l.b16 %v241
    %v481 = vunpack.c.l.b16 %v242
    %v482 = vunpack.c.h.b16 %v242
    %v483 = vunpack.c.l.b16 %v243
    %v484 = vunpack.c.l.b16 %v244
    %v485 = vunpack.c.h.b16 %v244
    %v486 = vunpack.c.l.b16 %v245
    %v487 = vunpack.c.l.b16 %v246
    %v488 = vunpack.c.h.b16 %v246
    %v489 = vunpack.c.l.b16 %v247
    %v490 = vunpack.c.l.b16 %v248
    %v491 = vunpack.c.h.b16 %v248
    %v492 = vunpack.c.l.b16 %v249
    %v493 = vunpack.c.l.b16 %v250
    %v494 = vunpack.c.h.b16 %v250
    %v495 = vunpack.c.l.b16 %v251
    %v496 = vunpack.c.l.b16 %v252
    %v497 = vunpack.c.h.b16 %v252
    %v498 = vunpack.c.l.b16 %v253
    %v499 = vunpack.c.l.b16 %v254
    %v500 = vunpack.c.h.b16 %v254
    %v501 = vunpack.c.l.b16 %v255
    %v502 = vunpack.c.l.b16 %v256
    %v503 = vunpack.c.h.b16 %v256
    %v504 = vunpack.c.l.b16 %v257
    %v505 = vunpack.c.l.b16 %v258
    %v506 = vunpack.c.h.b16 %v258
    %v507 = vunpack.c.l.b16 %v259
    %v508 = vunpack.c.l.b16 %v260
    %v509 = vunpack.c.h.b16 %v260
    %v510 = vunpack.c.l.b16 %v261
    %v511 = vunpack.c.l.b16 %v262
    %v512 = vunpack.c.h.b16 %v262
    %v513 = vunpack.c.l.b16 %v263
    %v514 = vunpack.c.l.b16 %v264
    %v515 = vunpack.c.h.b16 %v264
    %v516 = vunpack.c.l.b16 %v265
    %v517 = vunpack.c.l.b16 %v266
    %v518 = vunpack.c.h.b16 %v266
    %v519 = vunpack.c.l.b16 %v267
    %v520 = vunpack.c.l.b16 %v268
    %v521 = vunpack.c.h.b16 %v268
    %v522 = vunpack.c.l.b16 %v269
    %v523 = vunpack.c.l.b16 %v270
    %v524 = vunpack.c.h.b16 %v270
    %v525 = vunpack.c.l.b16 %v271
    %v526 = vunpack.c.l.b16 %v272
    %v527 = vunpack.c.h.b16 %v272
    %v528 = vunpack.c.l.b16 %v273
    %v529 = vunpack.c.l.b16 %v274
    %v530 = vunpack.c.h.b16 %v274
    %v531 = vunpack.c.l.b16 %v275
    %v532 = vpack.c.b16 %v391, %v388
    %v533 = vpack.c.b16 %v392, %v389
    %v534 = vpack.c.b16 %v393, %v390
    %v535 = vpack.c.b16 %v397, %v394
    %v536 = vpack.c.b16 %v398, %v395
    %v537 = vpack.c.b16 %v399, %v396
    %v538 = vpack.c.b16 %v403, %v400
    %v539 = vpack.c.b16 %v404, %v401
    %v540 = vpack.c.b16 %v405, %v402
    %v541 = vpack.c.b16 %v409, %v406
    %v542 = vpack.c.b16 %v410, %v407
    %v543 = vpack.c.b16 %v411, %v408
    %v544 = vpack.c.b16 %v415, %v412
    %v545 = vpack.c.b16 %v416, %v413
    %v546 = vpack.c.b16 %v417, %v414
    %v547 = vpack.c.b16 %v421, %v418
    %v548 = vpack.c.b16 %v422, %v419
    %v549 = vpack.c.b16 %v423, %v420
    %v550 = vpack.c.b16 %v427, %v424
    %v551 = vpack.c.b16 %v428, %v425
    %v552 = vpack.c.b16 %v429, %v426
    %v553 = vpack.c.b16 %v433, %v430
    %v554 = vpack.c.b16 %v434, %v431
    %v555 = vpack.c.b16 %v435, %v432
    %v556 = vpack.c.b16 %v439, %v436
    %v557 = vpack.c.b16 %v440, %v437
    %v558 = vpack.c.b16 %v441, %v438
    %v559 = vpack.c.b16 %v445, %v442
    %v560 = vpack.c.b16 %v446, %v443
    %v561 = vpack.c.b16 %v447, %v444
    %v562 = vpack.c.b16 %v451, %v448
    %v563 = vpack.c.b16 %v452, %v449
    %v564 = vpack.c.b16 %v453, %v450
    %v565 = vpack.c.b16 %v457, %v454
    %v566 = vpack.c.b16 %v458, %v455
    %v567 = vpack.c.b16 %v459, %v456
    %v568 = vpack.c.b16 %v463, %v460
    %v569 = vpack.c.b16 %v464, %v461
    %v570 = vpack.c.b16 %v465, %v462
    %v571 = vpack.c.b16 %v469, %v466
    %v572 = vpack.c.b16 %v470, %v467
    %v573 = vpack.c.b16 %v471, %v468
    %v574 = vpack.c.b16 %v475, %v472
    %v575 = vpack.c.b16 %v476, %v473
    %v576 = vpack.c.b16 %v477, %v474
    %v577 = vpack.c.b16 %v481, %v478
    %v578 = vpack.c.b16 %v482, %v479
    %v579 = vpack.c.b16 %v483, %v480
    %v580 = vpack.c.b16 %v487, %v484
    %v581 = vpack.c.b16 %v488, %v485
    %v582 = vpack.c.b16 %v489, %v486
    %v583 = vpack.c.b16 %v493, %v490
    %v584 = vpack.c.b16 %v494, %v491
    %v585 = vpack.c.b16 %v495, %v492
    %v586 = vpack.c.b16 %v499, %v496
    %v587 = vpack.c.b16 %v500, %v497
    %v588 = vpack.c.b16 %v501, %v498
    %v589 = vpack.c.b16 %v505, %v502
    %v590 = vpack.c.b16 %v506, %v503
    %v591 = vpack.c.b16 %v507, %v504
    %v592 = vpack.c.b16 %v511, %v508
    %v593 = vpack.c.b16 %v512, %v509
    %v594 = vpack.c.b16 %v513, %v510
    %v595 = vpack.c.b16 %v517, %v514
    %v596 = vpack.c.b16 %v518, %v515
    %v597 = vpack.c.b16 %v519, %v516
    %v598 = vpack.c.b16 %v523, %v520
    %v599 = vpack.c.b16 %v524, %v521
    %v600 = vpack.c.b16 %v525, %v522
    %v601 = vpack.c.b16 %v529, %v526
    %v602 = vpack.c.b16 %v530, %v527
    %v603 = vpack.c.b16 %v531, %v528
    %676 = vmatprep.subr.bf16.mxu0 %v554
    %677 = vmatpush1.bf16.msra.mxu0 %v553
    %678 = vmatprep.subr.bf16.mxu0 %v551
    %679 = vmatpush1.bf16.msra.mxu0 %v550
    %680 = vmatprep.subr.bf16.mxu0 %v548
    %681 = vmatpush1.bf16.msra.mxu0 %v547
    %682 = vmatprep.subr.bf16.mxu0 %v545
    %683 = vmatpush1.bf16.msra.mxu0 %v544
    %684 = vmatprep.subr.bf16.mxu0 %v542
    %685 = vmatpush1.bf16.msra.mxu0 %v541
    %686 = vmatprep.subr.bf16.mxu0 %v539
    %687 = vmatpush1.bf16.msra.mxu0 %v538
    %688 = vmatprep.subr.bf16.mxu0 %v536
    %689 = vmatpush1.bf16.msra.mxu0 %v535
    %690 = vmatprep.subr.bf16.mxu0 %v533
    %691 = vmatpush1.bf16.msra.mxu0 %v532
    %692 = vmatprep.subr.bf16.mxu0 %v578
    %693 = vmatpush2.bf16.msra.mxu0 %v577
    %694 = vmatprep.subr.bf16.mxu0 %v575
    %695 = vmatpush2.bf16.msra.mxu0 %v574
    %696 = vmatprep.subr.bf16.mxu0 %v572
    %697 = vmatpush2.bf16.msra.mxu0 %v571
    %698 = vmatprep.subr.bf16.mxu0 %v569
    %699 = vmatpush2.bf16.msra.mxu0 %v568
    %700 = vmatprep.subr.bf16.mxu0 %v566
    %701 = vmatpush2.bf16.msra.mxu0 %v565
    %702 = vmatprep.subr.bf16.mxu0 %v563
    %703 = vmatpush2.bf16.msra.mxu0 %v562
    %704 = vmatprep.subr.bf16.mxu0 %v560
    %705 = vmatpush2.bf16.msra.mxu0 %v559
    %706 = vmatprep.subr.bf16.mxu0 %v557
    %707 = vmatpush2.bf16.msra.mxu0 %v556
    %708 = vmatprep.mubr.bf16.mxu0 %v178
    %709 = vmatmul.mubr.bf16.gmra.mxu0 %v177
    %v710 = vpop.f32.mrf.mxu0
    %v711 = vadd.f32 %v280, %v710
    %v712 = vpop.f32.mrf.mxu0
    %v713 = vadd.f32 %v284, %v712
    %v714 = vpop.f32.mrf.mxu0
    %v715 = vpop.f32.mrf.mxu0
    %716 = vdwg.mxu0
    %717 = vmatprep.subr.bf16.mxu0 %v602
    %718 = vmatpush1.bf16.msra.mxu0 %v601
    %719 = vmatprep.subr.bf16.mxu0 %v599
    %720 = vmatpush1.bf16.msra.mxu0 %v598
    %721 = vmatprep.subr.bf16.mxu0 %v596
    %722 = vmatpush1.bf16.msra.mxu0 %v595
    %723 = vmatprep.subr.bf16.mxu0 %v593
    %724 = vmatpush1.bf16.msra.mxu0 %v592
    %725 = vmatprep.subr.bf16.mxu0 %v590
    %726 = vmatpush1.bf16.msra.mxu0 %v589
    %727 = vmatprep.subr.bf16.mxu0 %v587
    %728 = vmatpush1.bf16.msra.mxu0 %v586
    %729 = vmatprep.subr.bf16.mxu0 %v584
    %730 = vmatpush1.bf16.msra.mxu0 %v583
    %731 = vmatprep.subr.bf16.mxu0 %v581
    %732 = vmatpush1.bf16.msra.mxu0 %v580
    %733 = vmatprep.subr.bf16.mxu0 0
    %734 = vmatpush2.bf16.msra.mxu0 0
    %735 = vmatprep.subr.bf16.mxu0 0
    %736 = vmatpush2.bf16.msra.mxu0 0
    %737 = vmatprep.subr.bf16.mxu0 0
    %738 = vmatpush2.bf16.msra.mxu0 0
    %739 = vmatprep.subr.bf16.mxu0 0
    %740 = vmatpush2.bf16.msra.mxu0 0
    %741 = vmatprep.subr.bf16.mxu0 0
    %742 = vmatpush2.bf16.msra.mxu0 0
    %743 = vmatprep.subr.bf16.mxu0 0
    %744 = vmatpush2.bf16.msra.mxu0 0
    %745 = vmatprep.subr.bf16.mxu0 0
    %746 = vmatpush2.bf16.msra.mxu0 0
    %747 = vmatprep.subr.bf16.mxu0 0
    %748 = vmatpush2.bf16.msra.mxu0 0
    %749 = vmatprep.mubr.bf16.mxu0 0
    %750 = vmatmul.mubr.bf16.gmra.mxu0 %v179
    %v751 = vpop.f32.mrf.mxu0
    %v752 = vadd.f32 %v711, %v751
    %v753 = vpop.f32.mrf.mxu0
    %v754 = vadd.f32 %v713, %v753
    %v755 = vpop.f32.mrf.mxu0
    %v756 = vpop.f32.mrf.mxu0
    %757 = vdwg.mxu0
    %758 = vmatprep.subr.bf16.mxu0 0
    %759 = vmatpush1.bf16.msra.mxu0 %v555
    %760 = vmatprep.subr.bf16.mxu0 0
    %761 = vmatpush1.bf16.msra.mxu0 %v552
    %762 = vmatprep.subr.bf16.mxu0 0
    %763 = vmatpush1.bf16.msra.mxu0 %v549
    %764 = vmatprep.subr.bf16.mxu0 0
    %765 = vmatpush1.bf16.msra.mxu0 %v546
    %766 = vmatprep.subr.bf16.mxu0 0
    %767 = vmatpush1.bf16.msra.mxu0 %v543
    %768 = vmatprep.subr.bf16.mxu0 0
    %769 = vmatpush1.bf16.msra.mxu0 %v540
    %770 = vmatprep.subr.bf16.mxu0 0
    %771 = vmatpush1.bf16.msra.mxu0 %v537
    %772 = vmatprep.subr.bf16.mxu0 0
    %773 = vmatpush1.bf16.msra.mxu0 %v534
    %774 = vmatprep.subr.bf16.mxu0 0
    %775 = vmatpush2.bf16.msra.mxu0 %v579
    %776 = vmatprep.subr.bf16.mxu0 0
    %777 = vmatpush2.bf16.msra.mxu0 %v576
    %778 = vmatprep.subr.bf16.mxu0 0
    %779 = vmatpush2.bf16.msra.mxu0 %v573
    %780 = vmatprep.subr.bf16.mxu0 0
    %781 = vmatpush2.bf16.msra.mxu0 %v570
    %782 = vmatprep.subr.bf16.mxu0 0
    %783 = vmatpush2.bf16.msra.mxu0 %v567
    %784 = vmatprep.subr.bf16.mxu0 0
    %785 = vmatpush2.bf16.msra.mxu0 %v564
    %786 = vmatprep.subr.bf16.mxu0 0
    %787 = vmatpush2.bf16.msra.mxu0 %v561
    %788 = vmatprep.subr.bf16.mxu0 0
    %789 = vmatpush2.bf16.msra.mxu0 %v558
    %790 = vmatprep.mubr.bf16.mxu0 %v178
    %791 = vmatmul.mubr.bf16.gmra.mxu0 %v177
    %v792 = vpop.f32.mrf.mxu0
    %v793 = vadd.f32 %v288, %v792
    %v794 = vpop.f32.mrf.mxu0
    %v795 = vpop.f32.mrf.mxu0
    %v796 = vpop.f32.mrf.mxu0
    %797 = vdwg.mxu0
    %798 = vmatprep.subr.bf16.mxu0 0
    %799 = vmatpush1.bf16.msra.mxu0 %v603
    %800 = vmatprep.subr.bf16.mxu0 0
    %801 = vmatpush1.bf16.msra.mxu0 %v600
    %802 = vmatprep.subr.bf16.mxu0 0
    %803 = vmatpush1.bf16.msra.mxu0 %v597
    %804 = vmatprep.subr.bf16.mxu0 0
    %805 = vmatpush1.bf16.msra.mxu0 %v594
    %806 = vmatprep.subr.bf16.mxu0 0
    %807 = vmatpush1.bf16.msra.mxu0 %v591
    %808 = vmatprep.subr.bf16.mxu0 0
    %809 = vmatpush1.bf16.msra.mxu0 %v588
    %810 = vmatprep.subr.bf16.mxu0 0
    %811 = vmatpush1.bf16.msra.mxu0 %v585
    %812 = vmatprep.subr.bf16.mxu0 0
    %813 = vmatpush1.bf16.msra.mxu0 %v582
    %814 = vmatprep.subr.bf16.mxu0 0
    %815 = vmatpush2.bf16.msra.mxu0 0
    %816 = vmatprep.subr.bf16.mxu0 0
    %817 = vmatpush2.bf16.msra.mxu0 0
    %818 = vmatprep.subr.bf16.mxu0 0
    %819 = vmatpush2.bf16.msra.mxu0 0
    %820 = vmatprep.subr.bf16.mxu0 0
    %821 = vmatpush2.bf16.msra.mxu0 0
    %822 = vmatprep.subr.bf16.mxu0 0
    %823 = vmatpush2.bf16.msra.mxu0 0
    %824 = vmatprep.subr.bf16.mxu0 0
    %825 = vmatpush2.bf16.msra.mxu0 0
    %826 = vmatprep.subr.bf16.mxu0 0
    %827 = vmatpush2.bf16.msra.mxu0 0
    %828 = vmatprep.subr.bf16.mxu0 0
    %829 = vmatpush2.bf16.msra.mxu0 0
    %830 = vmatprep.mubr.bf16.mxu0 0
    %831 = vmatmul.mubr.bf16.gmra.mxu0 %v179
    %v832 = vpop.f32.mrf.mxu0
    %v833 = vadd.f32 %v793, %v832
    %v834 = vpop.f32.mrf.mxu0
    %v835 = vpop.f32.mrf.mxu0
    %v836 = vpop.f32.mrf.mxu0
    %837 = vdwg.mxu0
    %v838 = vxor.u32 %v752, 2147483648
    %v839 = vxor.u32 %v754, 2147483648
    %v840 = vxor.u32 %v833, 2147483648
    %v841 = vmul.f32 %v838, 1.442695
    %v842 = vpow.pop %v841
    %v843 = vmul.f32 %v839, 1.442695
    %v844 = vpow.pop %v843
    %v845 = vmul.f32 %v840, 1.442695
    %v846 = vpow.pop %v845
    %v847 = vadd.f32 %v842, 1.0
    %v848 = vadd.f32 %v844, 1.0
    %v849 = vadd.f32 %v846, 1.0
    %v850 = vrcp.pop %v847
    %v851 = vmul.f32 1.0, %v850
    %v852 = vrcp.pop %v848
    %v853 = vmul.f32 1.0, %v852
    %v854 = vrcp.pop %v849
    %v855 = vmul.f32 1.0, %v854
    %v856 = vmul.f32 %v752, %v851
    %v857 = vmul.f32 %v754, %v853
    %v858 = vmul.f32 %v833, %v855
    %v859 = vpack.c.bf16 %v856, %v856
    %v860 = vpack.c.bf16 %v857, %v857
    %v861 = vpack.c.bf16 %v858, %v858
    %s862 = scalar_lea.vmem %s5, 576
    %v863 = vld [vmem:[%s862] sm:$0xff]
    %v864 = vld [vmem:[%s862 + $0x8] sm:$0xf]
    %v865 = vld [vmem:[%s862 + $0xc] sm:$0xff]
    %v866 = vld [vmem:[%s862 + $0x14] sm:$0xf]
    %v867 = vld [vmem:[%s862 + $0x18] sm:$0xff]
    %v868 = vld [vmem:[%s862 + $0x20] sm:$0xf]
    %v869 = vld [vmem:[%s862 + $0x24] sm:$0xff]
    %v870 = vld [vmem:[%s862 + $0x2c] sm:$0xf]
    %v871 = vld [vmem:[%s862 + $0x30] sm:$0xff]
    %v872 = vld [vmem:[%s862 + $0x38] sm:$0xf]
    %v873 = vld [vmem:[%s862 + $0x3c] sm:$0xff]
    %v874 = vld [vmem:[%s862 + $0x44] sm:$0xf]
    %v875 = vld [vmem:[%s862 + $0x48] sm:$0xff]
    %v876 = vld [vmem:[%s862 + $0x50] sm:$0xf]
    %v877 = vld [vmem:[%s862 + $0x54] sm:$0xff]
    %v878 = vld [vmem:[%s862 + $0x5c] sm:$0xf]
    %v879 = vld [vmem:[%s862 + $0x60] sm:$0xff]
    %v880 = vld [vmem:[%s862 + $0x68] sm:$0xf]
    %v881 = vld [vmem:[%s862 + $0x6c] sm:$0xff]
    %v882 = vld [vmem:[%s862 + $0x74] sm:$0xf]
    %v883 = vld [vmem:[%s862 + $0x78] sm:$0xff]
    %v884 = vld [vmem:[%s862 + $0x80] sm:$0xf]
    %v885 = vld [vmem:[%s862 + $0x84] sm:$0xff]
    %v886 = vld [vmem:[%s862 + $0x8c] sm:$0xf]
    %v887 = vld [vmem:[%s862 + $0x90] sm:$0xff]
    %v888 = vld [vmem:[%s862 + $0x98] sm:$0xf]
    %v889 = vld [vmem:[%s862 + $0x9c] sm:$0xff]
    %v890 = vld [vmem:[%s862 + $0xa4] sm:$0xf]
    %v891 = vld [vmem:[%s862 + $0xa8] sm:$0xff]
    %v892 = vld [vmem:[%s862 + $0xb0] sm:$0xf]
    %v893 = vld [vmem:[%s862 + $0xb4] sm:$0xff]
    %v894 = vld [vmem:[%s862 + $0xbc] sm:$0xf]
    %v895 = vld [vmem:[%s862 + $0xc0] sm:$0xff]
    %v896 = vld [vmem:[%s862 + $0xc8] sm:$0xf]
    %v897 = vld [vmem:[%s862 + $0xcc] sm:$0xff]
    %v898 = vld [vmem:[%s862 + $0xd4] sm:$0xf]
    %v899 = vld [vmem:[%s862 + $0xd8] sm:$0xff]
    %v900 = vld [vmem:[%s862 + $0xe0] sm:$0xf]
    %v901 = vld [vmem:[%s862 + $0xe4] sm:$0xff]
    %v902 = vld [vmem:[%s862 + $0xec] sm:$0xf]
    %v903 = vld [vmem:[%s862 + $0xf0] sm:$0xff]
    %v904 = vld [vmem:[%s862 + $0xf8] sm:$0xf]
    %v905 = vld [vmem:[%s862 + $0xfc] sm:$0xff]
    %v906 = vld [vmem:[%s862 + $0x104] sm:$0xf]
    %v907 = vld [vmem:[%s862 + $0x108] sm:$0xff]
    %v908 = vld [vmem:[%s862 + $0x110] sm:$0xf]
    %v909 = vld [vmem:[%s862 + $0x114] sm:$0xff]
    %v910 = vld [vmem:[%s862 + $0x11c] sm:$0xf]
    %v911 = vld [vmem:[%s862 + $0x120] sm:$0xff]
    %v912 = vld [vmem:[%s862 + $0x128] sm:$0xf]
    %v913 = vld [vmem:[%s862 + $0x12c] sm:$0xff]
    %v914 = vld [vmem:[%s862 + $0x134] sm:$0xf]
    %v915 = vld [vmem:[%s862 + $0x138] sm:$0xff]
    %v916 = vld [vmem:[%s862 + $0x140] sm:$0xf]
    %v917 = vld [vmem:[%s862 + $0x144] sm:$0xff]
    %v918 = vld [vmem:[%s862 + $0x14c] sm:$0xf]
    %v919 = vld [vmem:[%s862 + $0x150] sm:$0xff]
    %v920 = vld [vmem:[%s862 + $0x158] sm:$0xf]
    %v921 = vld [vmem:[%s862 + $0x15c] sm:$0xff]
    %v922 = vld [vmem:[%s862 + $0x164] sm:$0xf]
    %v923 = vld [vmem:[%s862 + $0x168] sm:$0xff]
    %v924 = vld [vmem:[%s862 + $0x170] sm:$0xf]
    %v925 = vld [vmem:[%s862 + $0x174] sm:$0xff]
    %v926 = vld [vmem:[%s862 + $0x17c] sm:$0xf]
    %v927 = vld [vmem:[%s862 + $0x180] sm:$0xff]
    %v928 = vld [vmem:[%s862 + $0x188] sm:$0xf]
    %v929 = vld [vmem:[%s862 + $0x18c] sm:$0xff]
    %v930 = vld [vmem:[%s862 + $0x194] sm:$0xf]
    %v931 = vld [vmem:[%s862 + $0x198] sm:$0xff]
    %v932 = vld [vmem:[%s862 + $0x1a0] sm:$0xf]
    %v933 = vld [vmem:[%s862 + $0x1a4] sm:$0xff]
    %v934 = vld [vmem:[%s862 + $0x1ac] sm:$0xf]
    %v935 = vld [vmem:[%s862 + $0x1b0] sm:$0xff]
    %v936 = vld [vmem:[%s862 + $0x1b8] sm:$0xf]
    %v937 = vld [vmem:[%s862 + $0x1bc] sm:$0xff]
    %v938 = vld [vmem:[%s862 + $0x1c4] sm:$0xf]
    %v939 = vld [vmem:[%s862 + $0x1c8] sm:$0xff]
    %v940 = vld [vmem:[%s862 + $0x1d0] sm:$0xf]
    %v941 = vld [vmem:[%s862 + $0x1d4] sm:$0xff]
    %v942 = vld [vmem:[%s862 + $0x1dc] sm:$0xf]
    %v943 = vld [vmem:[%s862 + $0x1e0] sm:$0xff]
    %v944 = vld [vmem:[%s862 + $0x1e8] sm:$0xf]
    %v945 = vld [vmem:[%s862 + $0x1ec] sm:$0xff]
    %v946 = vld [vmem:[%s862 + $0x1f4] sm:$0xf]
    %v947 = vld [vmem:[%s862 + $0x1f8] sm:$0xff]
    %v948 = vld [vmem:[%s862 + $0x200] sm:$0xf]
    %v949 = vld [vmem:[%s862 + $0x204] sm:$0xff]
    %v950 = vld [vmem:[%s862 + $0x20c] sm:$0xf]
    %v951 = vld [vmem:[%s862 + $0x210] sm:$0xff]
    %v952 = vld [vmem:[%s862 + $0x218] sm:$0xf]
    %v953 = vld [vmem:[%s862 + $0x21c] sm:$0xff]
    %v954 = vld [vmem:[%s862 + $0x224] sm:$0xf]
    %v955 = vld [vmem:[%s862 + $0x228] sm:$0xff]
    %v956 = vld [vmem:[%s862 + $0x230] sm:$0xf]
    %v957 = vld [vmem:[%s862 + $0x234] sm:$0xff]
    %v958 = vld [vmem:[%s862 + $0x23c] sm:$0xf]
    %v960 = vlaneseq
    %v961 = vshrl.u32 %v960, 7
    %v962 = vsub.s32 0, %v961
    %v963 = vrot.slane %v37, %v962
    %v964 = vlaneseq
    %v965 = vshrl.u32 %v964, 7
    %v966 = vsub.s32 1, %v965
    %v967 = vrot.slane %v37, %v966
    %v968 = vlaneseq
    %v969 = vshrl.u32 %v968, 7
    %v970 = vsub.s32 2, %v969
    %v971 = vrot.slane %v37, %v970
    %v1071 = vunpack.c.l.b16 %v863
    %v1072 = vunpack.c.h.b16 %v863
    %v1073 = vunpack.c.l.b16 %v864
    %v1074 = vunpack.c.l.b16 %v865
    %v1075 = vunpack.c.h.b16 %v865
    %v1076 = vunpack.c.l.b16 %v866
    %v1077 = vunpack.c.l.b16 %v867
    %v1078 = vunpack.c.h.b16 %v867
    %v1079 = vunpack.c.l.b16 %v868
    %v1080 = vunpack.c.l.b16 %v869
    %v1081 = vunpack.c.h.b16 %v869
    %v1082 = vunpack.c.l.b16 %v870
    %v1083 = vunpack.c.l.b16 %v871
    %v1084 = vunpack.c.h.b16 %v871
    %v1085 = vunpack.c.l.b16 %v872
    %v1086 = vunpack.c.l.b16 %v873
    %v1087 = vunpack.c.h.b16 %v873
    %v1088 = vunpack.c.l.b16 %v874
    %v1089 = vunpack.c.l.b16 %v875
    %v1090 = vunpack.c.h.b16 %v875
    %v1091 = vunpack.c.l.b16 %v876
    %v1092 = vunpack.c.l.b16 %v877
    %v1093 = vunpack.c.h.b16 %v877
    %v1094 = vunpack.c.l.b16 %v878
    %v1095 = vunpack.c.l.b16 %v879
    %v1096 = vunpack.c.h.b16 %v879
    %v1097 = vunpack.c.l.b16 %v880
    %v1098 = vunpack.c.l.b16 %v881
    %v1099 = vunpack.c.h.b16 %v881
    %v1100 = vunpack.c.l.b16 %v882
    %v1101 = vunpack.c.l.b16 %v883
    %v1102 = vunpack.c.h.b16 %v883
    %v1103 = vunpack.c.l.b16 %v884
    %v1104 = vunpack.c.l.b16 %v885
    %v1105 = vunpack.c.h.b16 %v885
    %v1106 = vunpack.c.l.b16 %v886
    %v1107 = vunpack.c.l.b16 %v887
    %v1108 = vunpack.c.h.b16 %v887
    %v1109 = vunpack.c.l.b16 %v888
    %v1110 = vunpack.c.l.b16 %v889
    %v1111 = vunpack.c.h.b16 %v889
    %v1112 = vunpack.c.l.b16 %v890
    %v1113 = vunpack.c.l.b16 %v891
    %v1114 = vunpack.c.h.b16 %v891
    %v1115 = vunpack.c.l.b16 %v892
    %v1116 = vunpack.c.l.b16 %v893
    %v1117 = vunpack.c.h.b16 %v893
    %v1118 = vunpack.c.l.b16 %v894
    %v1119 = vunpack.c.l.b16 %v895
    %v1120 = vunpack.c.h.b16 %v895
    %v1121 = vunpack.c.l.b16 %v896
    %v1122 = vunpack.c.l.b16 %v897
    %v1123 = vunpack.c.h.b16 %v897
    %v1124 = vunpack.c.l.b16 %v898
    %v1125 = vunpack.c.l.b16 %v899
    %v1126 = vunpack.c.h.b16 %v899
    %v1127 = vunpack.c.l.b16 %v900
    %v1128 = vunpack.c.l.b16 %v901
    %v1129 = vunpack.c.h.b16 %v901
    %v1130 = vunpack.c.l.b16 %v902
    %v1131 = vunpack.c.l.b16 %v903
    %v1132 = vunpack.c.h.b16 %v903
    %v1133 = vunpack.c.l.b16 %v904
    %v1134 = vunpack.c.l.b16 %v905
    %v1135 = vunpack.c.h.b16 %v905
    %v1136 = vunpack.c.l.b16 %v906
    %v1137 = vunpack.c.l.b16 %v907
    %v1138 = vunpack.c.h.b16 %v907
    %v1139 = vunpack.c.l.b16 %v908
    %v1140 = vunpack.c.l.b16 %v909
    %v1141 = vunpack.c.h.b16 %v909
    %v1142 = vunpack.c.l.b16 %v910
    %v1143 = vunpack.c.l.b16 %v911
    %v1144 = vunpack.c.h.b16 %v911
    %v1145 = vunpack.c.l.b16 %v912
    %v1146 = vunpack.c.l.b16 %v913
    %v1147 = vunpack.c.h.b16 %v913
    %v1148 = vunpack.c.l.b16 %v914
    %v1149 = vunpack.c.l.b16 %v915
    %v1150 = vunpack.c.h.b16 %v915
    %v1151 = vunpack.c.l.b16 %v916
    %v1152 = vunpack.c.l.b16 %v917
    %v1153 = vunpack.c.h.b16 %v917
    %v1154 = vunpack.c.l.b16 %v918
    %v1155 = vunpack.c.l.b16 %v919
    %v1156 = vunpack.c.h.b16 %v919
    %v1157 = vunpack.c.l.b16 %v920
    %v1158 = vunpack.c.l.b16 %v921
    %v1159 = vunpack.c.h.b16 %v921
    %v1160 = vunpack.c.l.b16 %v922
    %v1161 = vunpack.c.l.b16 %v923
    %v1162 = vunpack.c.h.b16 %v923
    %v1163 = vunpack.c.l.b16 %v924
    %v1164 = vunpack.c.l.b16 %v925
    %v1165 = vunpack.c.h.b16 %v925
    %v1166 = vunpack.c.l.b16 %v926
    %v1167 = vunpack.c.l.b16 %v927
    %v1168 = vunpack.c.h.b16 %v927
    %v1169 = vunpack.c.l.b16 %v928
    %v1170 = vunpack.c.l.b16 %v929
    %v1171 = vunpack.c.h.b16 %v929
    %v1172 = vunpack.c.l.b16 %v930
    %v1173 = vunpack.c.l.b16 %v931
    %v1174 = vunpack.c.h.b16 %v931
    %v1175 = vunpack.c.l.b16 %v932
    %v1176 = vunpack.c.l.b16 %v933
    %v1177 = vunpack.c.h.b16 %v933
    %v1178 = vunpack.c.l.b16 %v934
    %v1179 = vunpack.c.l.b16 %v935
    %v1180 = vunpack.c.h.b16 %v935
    %v1181 = vunpack.c.l.b16 %v936
    %v1182 = vunpack.c.l.b16 %v937
    %v1183 = vunpack.c.h.b16 %v937
    %v1184 = vunpack.c.l.b16 %v938
    %v1185 = vunpack.c.l.b16 %v939
    %v1186 = vunpack.c.h.b16 %v939
    %v1187 = vunpack.c.l.b16 %v940
    %v1188 = vunpack.c.l.b16 %v941
    %v1189 = vunpack.c.h.b16 %v941
    %v1190 = vunpack.c.l.b16 %v942
    %v1191 = vunpack.c.l.b16 %v943
    %v1192 = vunpack.c.h.b16 %v943
    %v1193 = vunpack.c.l.b16 %v944
    %v1194 = vunpack.c.l.b16 %v945
    %v1195 = vunpack.c.h.b16 %v945
    %v1196 = vunpack.c.l.b16 %v946
    %v1197 = vunpack.c.l.b16 %v947
    %v1198 = vunpack.c.h.b16 %v947
    %v1199 = vunpack.c.l.b16 %v948
    %v1200 = vunpack.c.l.b16 %v949
    %v1201 = vunpack.c.h.b16 %v949
    %v1202 = vunpack.c.l.b16 %v950
    %v1203 = vunpack.c.l.b16 %v951
    %v1204 = vunpack.c.h.b16 %v951
    %v1205 = vunpack.c.l.b16 %v952
    %v1206 = vunpack.c.l.b16 %v953
    %v1207 = vunpack.c.h.b16 %v953
    %v1208 = vunpack.c.l.b16 %v954
    %v1209 = vunpack.c.l.b16 %v955
    %v1210 = vunpack.c.h.b16 %v955
    %v1211 = vunpack.c.l.b16 %v956
    %v1212 = vunpack.c.l.b16 %v957
    %v1213 = vunpack.c.h.b16 %v957
    %v1214 = vunpack.c.l.b16 %v958
    %v1215 = vpack.c.b16 %v1074, %v1071
    %v1216 = vpack.c.b16 %v1075, %v1072
    %v1217 = vpack.c.b16 %v1076, %v1073
    %v1218 = vpack.c.b16 %v1080, %v1077
    %v1219 = vpack.c.b16 %v1081, %v1078
    %v1220 = vpack.c.b16 %v1082, %v1079
    %v1221 = vpack.c.b16 %v1086, %v1083
    %v1222 = vpack.c.b16 %v1087, %v1084
    %v1223 = vpack.c.b16 %v1088, %v1085
    %v1224 = vpack.c.b16 %v1092, %v1089
    %v1225 = vpack.c.b16 %v1093, %v1090
    %v1226 = vpack.c.b16 %v1094, %v1091
    %v1227 = vpack.c.b16 %v1098, %v1095
    %v1228 = vpack.c.b16 %v1099, %v1096
    %v1229 = vpack.c.b16 %v1100, %v1097
    %v1230 = vpack.c.b16 %v1104, %v1101
    %v1231 = vpack.c.b16 %v1105, %v1102
    %v1232 = vpack.c.b16 %v1106, %v1103
    %v1233 = vpack.c.b16 %v1110, %v1107
    %v1234 = vpack.c.b16 %v1111, %v1108
    %v1235 = vpack.c.b16 %v1112, %v1109
    %v1236 = vpack.c.b16 %v1116, %v1113
    %v1237 = vpack.c.b16 %v1117, %v1114
    %v1238 = vpack.c.b16 %v1118, %v1115
    %v1239 = vpack.c.b16 %v1122, %v1119
    %v1240 = vpack.c.b16 %v1123, %v1120
    %v1241 = vpack.c.b16 %v1124, %v1121
    %v1242 = vpack.c.b16 %v1128, %v1125
    %v1243 = vpack.c.b16 %v1129, %v1126
    %v1244 = vpack.c.b16 %v1130, %v1127
    %v1245 = vpack.c.b16 %v1134, %v1131
    %v1246 = vpack.c.b16 %v1135, %v1132
    %v1247 = vpack.c.b16 %v1136, %v1133
    %v1248 = vpack.c.b16 %v1140, %v1137
    %v1249 = vpack.c.b16 %v1141, %v1138
    %v1250 = vpack.c.b16 %v1142, %v1139
    %v1251 = vpack.c.b16 %v1146, %v1143
    %v1252 = vpack.c.b16 %v1147, %v1144
    %v1253 = vpack.c.b16 %v1148, %v1145
    %v1254 = vpack.c.b16 %v1152, %v1149
    %v1255 = vpack.c.b16 %v1153, %v1150
    %v1256 = vpack.c.b16 %v1154, %v1151
    %v1257 = vpack.c.b16 %v1158, %v1155
    %v1258 = vpack.c.b16 %v1159, %v1156
    %v1259 = vpack.c.b16 %v1160, %v1157
    %v1260 = vpack.c.b16 %v1164, %v1161
    %v1261 = vpack.c.b16 %v1165, %v1162
    %v1262 = vpack.c.b16 %v1166, %v1163
    %v1263 = vpack.c.b16 %v1170, %v1167
    %v1264 = vpack.c.b16 %v1171, %v1168
    %v1265 = vpack.c.b16 %v1172, %v1169
    %v1266 = vpack.c.b16 %v1176, %v1173
    %v1267 = vpack.c.b16 %v1177, %v1174
    %v1268 = vpack.c.b16 %v1178, %v1175
    %v1269 = vpack.c.b16 %v1182, %v1179
    %v1270 = vpack.c.b16 %v1183, %v1180
    %v1271 = vpack.c.b16 %v1184, %v1181
    %v1272 = vpack.c.b16 %v1188, %v1185
    %v1273 = vpack.c.b16 %v1189, %v1186
    %v1274 = vpack.c.b16 %v1190, %v1187
    %v1275 = vpack.c.b16 %v1194, %v1191
    %v1276 = vpack.c.b16 %v1195, %v1192
    %v1277 = vpack.c.b16 %v1196, %v1193
    %v1278 = vpack.c.b16 %v1200, %v1197
    %v1279 = vpack.c.b16 %v1201, %v1198
    %v1280 = vpack.c.b16 %v1202, %v1199
    %v1281 = vpack.c.b16 %v1206, %v1203
    %v1282 = vpack.c.b16 %v1207, %v1204
    %v1283 = vpack.c.b16 %v1208, %v1205
    %v1284 = vpack.c.b16 %v1212, %v1209
    %v1285 = vpack.c.b16 %v1213, %v1210
    %v1286 = vpack.c.b16 %v1214, %v1211
    %1359 = vmatprep.subr.bf16.mxu0 %v1237
    %1360 = vmatpush1.bf16.msra.mxu0 %v1236
    %1361 = vmatprep.subr.bf16.mxu0 %v1234
    %1362 = vmatpush1.bf16.msra.mxu0 %v1233
    %1363 = vmatprep.subr.bf16.mxu0 %v1231
    %1364 = vmatpush1.bf16.msra.mxu0 %v1230
    %1365 = vmatprep.subr.bf16.mxu0 %v1228
    %1366 = vmatpush1.bf16.msra.mxu0 %v1227
    %1367 = vmatprep.subr.bf16.mxu0 %v1225
    %1368 = vmatpush1.bf16.msra.mxu0 %v1224
    %1369 = vmatprep.subr.bf16.mxu0 %v1222
    %1370 = vmatpush1.bf16.msra.mxu0 %v1221
    %1371 = vmatprep.subr.bf16.mxu0 %v1219
    %1372 = vmatpush1.bf16.msra.mxu0 %v1218
    %1373 = vmatprep.subr.bf16.mxu0 %v1216
    %1374 = vmatpush1.bf16.msra.mxu0 %v1215
    %1375 = vmatprep.subr.bf16.mxu0 %v1261
    %1376 = vmatpush2.bf16.msra.mxu0 %v1260
    %1377 = vmatprep.subr.bf16.mxu0 %v1258
    %1378 = vmatpush2.bf16.msra.mxu0 %v1257
    %1379 = vmatprep.subr.bf16.mxu0 %v1255
    %1380 = vmatpush2.bf16.msra.mxu0 %v1254
    %1381 = vmatprep.subr.bf16.mxu0 %v1252
    %1382 = vmatpush2.bf16.msra.mxu0 %v1251
    %1383 = vmatprep.subr.bf16.mxu0 %v1249
    %1384 = vmatpush2.bf16.msra.mxu0 %v1248
    %1385 = vmatprep.subr.bf16.mxu0 %v1246
    %1386 = vmatpush2.bf16.msra.mxu0 %v1245
    %1387 = vmatprep.subr.bf16.mxu0 %v1243
    %1388 = vmatpush2.bf16.msra.mxu0 %v1242
    %1389 = vmatprep.subr.bf16.mxu0 %v1240
    %1390 = vmatpush2.bf16.msra.mxu0 %v1239
    %1391 = vmatprep.mubr.bf16.mxu0 %v860
    %1392 = vmatmul.mubr.bf16.gmra.mxu0 %v859
    %v1393 = vpop.f32.mrf.mxu0
    %v1394 = vadd.f32 %v963, %v1393
    %v1395 = vpop.f32.mrf.mxu0
    %v1396 = vadd.f32 %v967, %v1395
    %v1397 = vpop.f32.mrf.mxu0
    %v1398 = vpop.f32.mrf.mxu0
    %1399 = vdwg.mxu0
    %1400 = vmatprep.subr.bf16.mxu0 %v1285
    %1401 = vmatpush1.bf16.msra.mxu0 %v1284
    %1402 = vmatprep.subr.bf16.mxu0 %v1282
    %1403 = vmatpush1.bf16.msra.mxu0 %v1281
    %1404 = vmatprep.subr.bf16.mxu0 %v1279
    %1405 = vmatpush1.bf16.msra.mxu0 %v1278
    %1406 = vmatprep.subr.bf16.mxu0 %v1276
    %1407 = vmatpush1.bf16.msra.mxu0 %v1275
    %1408 = vmatprep.subr.bf16.mxu0 %v1273
    %1409 = vmatpush1.bf16.msra.mxu0 %v1272
    %1410 = vmatprep.subr.bf16.mxu0 %v1270
    %1411 = vmatpush1.bf16.msra.mxu0 %v1269
    %1412 = vmatprep.subr.bf16.mxu0 %v1267
    %1413 = vmatpush1.bf16.msra.mxu0 %v1266
    %1414 = vmatprep.subr.bf16.mxu0 %v1264
    %1415 = vmatpush1.bf16.msra.mxu0 %v1263
    %1416 = vmatprep.subr.bf16.mxu0 0
    %1417 = vmatpush2.bf16.msra.mxu0 0
    %1418 = vmatprep.subr.bf16.mxu0 0
    %1419 = vmatpush2.bf16.msra.mxu0 0
    %1420 = vmatprep.subr.bf16.mxu0 0
    %1421 = vmatpush2.bf16.msra.mxu0 0
    %1422 = vmatprep.subr.bf16.mxu0 0
    %1423 = vmatpush2.bf16.msra.mxu0 0
    %1424 = vmatprep.subr.bf16.mxu0 0
    %1425 = vmatpush2.bf16.msra.mxu0 0
    %1426 = vmatprep.subr.bf16.mxu0 0
    %1427 = vmatpush2.bf16.msra.mxu0 0
    %1428 = vmatprep.subr.bf16.mxu0 0
    %1429 = vmatpush2.bf16.msra.mxu0 0
    %1430 = vmatprep.subr.bf16.mxu0 0
    %1431 = vmatpush2.bf16.msra.mxu0 0
    %1432 = vmatprep.mubr.bf16.mxu0 0
    %1433 = vmatmul.mubr.bf16.gmra.mxu0 %v861
    %v1434 = vpop.f32.mrf.mxu0
    %v1435 = vadd.f32 %v1394, %v1434
    %v1436 = vpop.f32.mrf.mxu0
    %v1437 = vadd.f32 %v1396, %v1436
    %v1438 = vpop.f32.mrf.mxu0
    %v1439 = vpop.f32.mrf.mxu0
    %1440 = vdwg.mxu0
    %1441 = vmatprep.subr.bf16.mxu0 0
    %1442 = vmatpush1.bf16.msra.mxu0 %v1238
    %1443 = vmatprep.subr.bf16.mxu0 0
    %1444 = vmatpush1.bf16.msra.mxu0 %v1235
    %1445 = vmatprep.subr.bf16.mxu0 0
    %1446 = vmatpush1.bf16.msra.mxu0 %v1232
    %1447 = vmatprep.subr.bf16.mxu0 0
    %1448 = vmatpush1.bf16.msra.mxu0 %v1229
    %1449 = vmatprep.subr.bf16.mxu0 0
    %1450 = vmatpush1.bf16.msra.mxu0 %v1226
    %1451 = vmatprep.subr.bf16.mxu0 0
    %1452 = vmatpush1.bf16.msra.mxu0 %v1223
    %1453 = vmatprep.subr.bf16.mxu0 0
    %1454 = vmatpush1.bf16.msra.mxu0 %v1220
    %1455 = vmatprep.subr.bf16.mxu0 0
    %1456 = vmatpush1.bf16.msra.mxu0 %v1217
    %1457 = vmatprep.subr.bf16.mxu0 0
    %1458 = vmatpush2.bf16.msra.mxu0 %v1262
    %1459 = vmatprep.subr.bf16.mxu0 0
    %1460 = vmatpush2.bf16.msra.mxu0 %v1259
    %1461 = vmatprep.subr.bf16.mxu0 0
    %1462 = vmatpush2.bf16.msra.mxu0 %v1256
    %1463 = vmatprep.subr.bf16.mxu0 0
    %1464 = vmatpush2.bf16.msra.mxu0 %v1253
    %1465 = vmatprep.subr.bf16.mxu0 0
    %1466 = vmatpush2.bf16.msra.mxu0 %v1250
    %1467 = vmatprep.subr.bf16.mxu0 0
    %1468 = vmatpush2.bf16.msra.mxu0 %v1247
    %1469 = vmatprep.subr.bf16.mxu0 0
    %1470 = vmatpush2.bf16.msra.mxu0 %v1244
    %1471 = vmatprep.subr.bf16.mxu0 0
    %1472 = vmatpush2.bf16.msra.mxu0 %v1241
    %1473 = vmatprep.mubr.bf16.mxu0 %v860
    %1474 = vmatmul.mubr.bf16.gmra.mxu0 %v859
    %v1475 = vpop.f32.mrf.mxu0
    %v1476 = vadd.f32 %v971, %v1475
    %v1477 = vpop.f32.mrf.mxu0
    %v1478 = vpop.f32.mrf.mxu0
    %v1479 = vpop.f32.mrf.mxu0
    %1480 = vdwg.mxu0
    %1481 = vmatprep.subr.bf16.mxu0 0
    %1482 = vmatpush1.bf16.msra.mxu0 %v1286
    %1483 = vmatprep.subr.bf16.mxu0 0
    %1484 = vmatpush1.bf16.msra.mxu0 %v1283
    %1485 = vmatprep.subr.bf16.mxu0 0
    %1486 = vmatpush1.bf16.msra.mxu0 %v1280
    %1487 = vmatprep.subr.bf16.mxu0 0
    %1488 = vmatpush1.bf16.msra.mxu0 %v1277
    %1489 = vmatprep.subr.bf16.mxu0 0
    %1490 = vmatpush1.bf16.msra.mxu0 %v1274
    %1491 = vmatprep.subr.bf16.mxu0 0
    %1492 = vmatpush1.bf16.msra.mxu0 %v1271
    %1493 = vmatprep.subr.bf16.mxu0 0
    %1494 = vmatpush1.bf16.msra.mxu0 %v1268
    %1495 = vmatprep.subr.bf16.mxu0 0
    %1496 = vmatpush1.bf16.msra.mxu0 %v1265
    %1497 = vmatprep.subr.bf16.mxu0 0
    %1498 = vmatpush2.bf16.msra.mxu0 0
    %1499 = vmatprep.subr.bf16.mxu0 0
    %1500 = vmatpush2.bf16.msra.mxu0 0
    %1501 = vmatprep.subr.bf16.mxu0 0
    %1502 = vmatpush2.bf16.msra.mxu0 0
    %1503 = vmatprep.subr.bf16.mxu0 0
    %1504 = vmatpush2.bf16.msra.mxu0 0
    %1505 = vmatprep.subr.bf16.mxu0 0
    %1506 = vmatpush2.bf16.msra.mxu0 0
    %1507 = vmatprep.subr.bf16.mxu0 0
    %1508 = vmatpush2.bf16.msra.mxu0 0
    %1509 = vmatprep.subr.bf16.mxu0 0
    %1510 = vmatpush2.bf16.msra.mxu0 0
    %1511 = vmatprep.subr.bf16.mxu0 0
    %1512 = vmatpush2.bf16.msra.mxu0 0
    %1513 = vmatprep.mubr.bf16.mxu0 0
    %1514 = vmatmul.mubr.bf16.gmra.mxu0 %v861
    %v1515 = vpop.f32.mrf.mxu0
    %v1516 = vadd.f32 %v1476, %v1515
    %v1517 = vpop.f32.mrf.mxu0
    %v1518 = vpop.f32.mrf.mxu0
    %v1519 = vpop.f32.mrf.mxu0
    %1520 = vdwg.mxu0
    %v1521 = vxor.u32 %v1435, 2147483648
    %v1522 = vxor.u32 %v1437, 2147483648
    %v1523 = vxor.u32 %v1516, 2147483648
    %v1524 = vmul.f32 %v1521, 1.442695
    %v1525 = vpow.pop %v1524
    %v1526 = vmul.f32 %v1522, 1.442695
    %v1527 = vpow.pop %v1526
    %v1528 = vmul.f32 %v1523, 1.442695
    %v1529 = vpow.pop %v1528
    %v1530 = vadd.f32 %v1525, 1.0
    %v1531 = vadd.f32 %v1527, 1.0
    %v1532 = vadd.f32 %v1529, 1.0
    %v1533 = vrcp.pop %v1530
    %v1534 = vmul.f32 1.0, %v1533
    %v1535 = vrcp.pop %v1531
    %v1536 = vmul.f32 1.0, %v1535
    %v1537 = vrcp.pop %v1532
    %v1538 = vmul.f32 1.0, %v1537
    %v1539 = vmul.f32 %v1435, %v1534
    %v1540 = vmul.f32 %v1437, %v1536
    %v1541 = vmul.f32 %v1516, %v1538
    %v1542 = vpack.c.bf16 %v1539, %v1539
    %v1543 = vpack.c.bf16 %v1540, %v1540
    %v1544 = vpack.c.bf16 %v1541, %v1541
    %s1545 = scalar_lea.vmem %s5, 1152
    %v1546 = vld [vmem:[%s1545] sm:$0xff]
    %v1547 = vld [vmem:[%s1545 + $0x8] sm:$0xf]
    %v1548 = vld [vmem:[%s1545 + $0xc] sm:$0xff]
    %v1549 = vld [vmem:[%s1545 + $0x14] sm:$0xf]
    %v1550 = vld [vmem:[%s1545 + $0x18] sm:$0xff]
    %v1551 = vld [vmem:[%s1545 + $0x20] sm:$0xf]
    %v1552 = vld [vmem:[%s1545 + $0x24] sm:$0xff]
    %v1553 = vld [vmem:[%s1545 + $0x2c] sm:$0xf]
    %v1554 = vld [vmem:[%s1545 + $0x30] sm:$0xff]
    %v1555 = vld [vmem:[%s1545 + $0x38] sm:$0xf]
    %v1556 = vld [vmem:[%s1545 + $0x3c] sm:$0xff]
    %v1557 = vld [vmem:[%s1545 + $0x44] sm:$0xf]
    %v1558 = vld [vmem:[%s1545 + $0x48] sm:$0xff]
    %v1559 = vld [vmem:[%s1545 + $0x50] sm:$0xf]
    %v1560 = vld [vmem:[%s1545 + $0x54] sm:$0xff]
    %v1561 = vld [vmem:[%s1545 + $0x5c] sm:$0xf]
    %v1562 = vld [vmem:[%s1545 + $0x60] sm:$0xff]
    %v1563 = vld [vmem:[%s1545 + $0x68] sm:$0xf]
    %v1564 = vld [vmem:[%s1545 + $0x6c] sm:$0xff]
    %v1565 = vld [vmem:[%s1545 + $0x74] sm:$0xf]
    %v1566 = vld [vmem:[%s1545 + $0x78] sm:$0xff]
    %v1567 = vld [vmem:[%s1545 + $0x80] sm:$0xf]
    %v1568 = vld [vmem:[%s1545 + $0x84] sm:$0xff]
    %v1569 = vld [vmem:[%s1545 + $0x8c] sm:$0xf]
    %v1570 = vld [vmem:[%s1545 + $0x90] sm:$0xff]
    %v1571 = vld [vmem:[%s1545 + $0x98] sm:$0xf]
    %v1572 = vld [vmem:[%s1545 + $0x9c] sm:$0xff]
    %v1573 = vld [vmem:[%s1545 + $0xa4] sm:$0xf]
    %v1574 = vld [vmem:[%s1545 + $0xa8] sm:$0xff]
    %v1575 = vld [vmem:[%s1545 + $0xb0] sm:$0xf]
    %v1576 = vld [vmem:[%s1545 + $0xb4] sm:$0xff]
    %v1577 = vld [vmem:[%s1545 + $0xbc] sm:$0xf]
    %v1578 = vld [vmem:[%s1545 + $0xc0] sm:$0xff]
    %v1579 = vld [vmem:[%s1545 + $0xc8] sm:$0xf]
    %v1580 = vld [vmem:[%s1545 + $0xcc] sm:$0xff]
    %v1581 = vld [vmem:[%s1545 + $0xd4] sm:$0xf]
    %v1582 = vld [vmem:[%s1545 + $0xd8] sm:$0xff]
    %v1583 = vld [vmem:[%s1545 + $0xe0] sm:$0xf]
    %v1584 = vld [vmem:[%s1545 + $0xe4] sm:$0xff]
    %v1585 = vld [vmem:[%s1545 + $0xec] sm:$0xf]
    %v1586 = vld [vmem:[%s1545 + $0xf0] sm:$0xff]
    %v1587 = vld [vmem:[%s1545 + $0xf8] sm:$0xf]
    %v1588 = vld [vmem:[%s1545 + $0xfc] sm:$0xff]
    %v1589 = vld [vmem:[%s1545 + $0x104] sm:$0xf]
    %v1590 = vld [vmem:[%s1545 + $0x108] sm:$0xff]
    %v1591 = vld [vmem:[%s1545 + $0x110] sm:$0xf]
    %v1592 = vld [vmem:[%s1545 + $0x114] sm:$0xff]
    %v1593 = vld [vmem:[%s1545 + $0x11c] sm:$0xf]
    %v1594 = vld [vmem:[%s1545 + $0x120] sm:$0xff]
    %v1595 = vld [vmem:[%s1545 + $0x128] sm:$0xf]
    %v1596 = vld [vmem:[%s1545 + $0x12c] sm:$0xff]
    %v1597 = vld [vmem:[%s1545 + $0x134] sm:$0xf]
    %v1598 = vld [vmem:[%s1545 + $0x138] sm:$0xff]
    %v1599 = vld [vmem:[%s1545 + $0x140] sm:$0xf]
    %v1600 = vld [vmem:[%s1545 + $0x144] sm:$0xff]
    %v1601 = vld [vmem:[%s1545 + $0x14c] sm:$0xf]
    %v1602 = vld [vmem:[%s1545 + $0x150] sm:$0xff]
    %v1603 = vld [vmem:[%s1545 + $0x158] sm:$0xf]
    %v1604 = vld [vmem:[%s1545 + $0x15c] sm:$0xff]
    %v1605 = vld [vmem:[%s1545 + $0x164] sm:$0xf]
    %v1606 = vld [vmem:[%s1545 + $0x168] sm:$0xff]
    %v1607 = vld [vmem:[%s1545 + $0x170] sm:$0xf]
    %v1608 = vld [vmem:[%s1545 + $0x174] sm:$0xff]
    %v1609 = vld [vmem:[%s1545 + $0x17c] sm:$0xf]
    %v1610 = vld [vmem:[%s1545 + $0x180] sm:$0xff]
    %v1611 = vld [vmem:[%s1545 + $0x188] sm:$0xf]
    %v1612 = vld [vmem:[%s1545 + $0x18c] sm:$0xff]
    %v1613 = vld [vmem:[%s1545 + $0x194] sm:$0xf]
    %v1614 = vld [vmem:[%s1545 + $0x198] sm:$0xff]
    %v1615 = vld [vmem:[%s1545 + $0x1a0] sm:$0xf]
    %v1616 = vld [vmem:[%s1545 + $0x1a4] sm:$0xff]
    %v1617 = vld [vmem:[%s1545 + $0x1ac] sm:$0xf]
    %v1618 = vld [vmem:[%s1545 + $0x1b0] sm:$0xff]
    %v1619 = vld [vmem:[%s1545 + $0x1b8] sm:$0xf]
    %v1620 = vld [vmem:[%s1545 + $0x1bc] sm:$0xff]
    %v1621 = vld [vmem:[%s1545 + $0x1c4] sm:$0xf]
    %v1622 = vld [vmem:[%s1545 + $0x1c8] sm:$0xff]
    %v1623 = vld [vmem:[%s1545 + $0x1d0] sm:$0xf]
    %v1624 = vld [vmem:[%s1545 + $0x1d4] sm:$0xff]
    %v1625 = vld [vmem:[%s1545 + $0x1dc] sm:$0xf]
    %v1626 = vld [vmem:[%s1545 + $0x1e0] sm:$0xff]
    %v1627 = vld [vmem:[%s1545 + $0x1e8] sm:$0xf]
    %v1628 = vld [vmem:[%s1545 + $0x1ec] sm:$0xff]
    %v1629 = vld [vmem:[%s1545 + $0x1f4] sm:$0xf]
    %v1630 = vld [vmem:[%s1545 + $0x1f8] sm:$0xff]
    %v1631 = vld [vmem:[%s1545 + $0x200] sm:$0xf]
    %v1632 = vld [vmem:[%s1545 + $0x204] sm:$0xff]
    %v1633 = vld [vmem:[%s1545 + $0x20c] sm:$0xf]
    %v1634 = vld [vmem:[%s1545 + $0x210] sm:$0xff]
    %v1635 = vld [vmem:[%s1545 + $0x218] sm:$0xf]
    %v1636 = vld [vmem:[%s1545 + $0x21c] sm:$0xff]
    %v1637 = vld [vmem:[%s1545 + $0x224] sm:$0xf]
    %v1638 = vld [vmem:[%s1545 + $0x228] sm:$0xff]
    %v1639 = vld [vmem:[%s1545 + $0x230] sm:$0xf]
    %v1640 = vld [vmem:[%s1545 + $0x234] sm:$0xff]
    %v1641 = vld [vmem:[%s1545 + $0x23c] sm:$0xf]
    %v1643 = vlaneseq
    %v1644 = vshrl.u32 %v1643, 7
    %v1645 = vsub.s32 0, %v1644
    %v1646 = vrot.slane %v39, %v1645
    %v1647 = vlaneseq
    %v1648 = vshrl.u32 %v1647, 7
    %v1649 = vsub.s32 1, %v1648
    %v1650 = vrot.slane %v39, %v1649
    %v1651 = vlaneseq
    %v1652 = vshrl.u32 %v1651, 7
    %v1653 = vsub.s32 2, %v1652
    %v1654 = vrot.slane %v39, %v1653
    %v1754 = vunpack.c.l.b16 %v1546
    %v1755 = vunpack.c.h.b16 %v1546
    %v1756 = vunpack.c.l.b16 %v1547
    %v1757 = vunpack.c.l.b16 %v1548
    %v1758 = vunpack.c.h.b16 %v1548
    %v1759 = vunpack.c.l.b16 %v1549
    %v1760 = vunpack.c.l.b16 %v1550
    %v1761 = vunpack.c.h.b16 %v1550
    %v1762 = vunpack.c.l.b16 %v1551
    %v1763 = vunpack.c.l.b16 %v1552
    %v1764 = vunpack.c.h.b16 %v1552
    %v1765 = vunpack.c.l.b16 %v1553
    %v1766 = vunpack.c.l.b16 %v1554
    %v1767 = vunpack.c.h.b16 %v1554
    %v1768 = vunpack.c.l.b16 %v1555
    %v1769 = vunpack.c.l.b16 %v1556
    %v1770 = vunpack.c.h.b16 %v1556
    %v1771 = vunpack.c.l.b16 %v1557
    %v1772 = vunpack.c.l.b16 %v1558
    %v1773 = vunpack.c.h.b16 %v1558
    %v1774 = vunpack.c.l.b16 %v1559
    %v1775 = vunpack.c.l.b16 %v1560
    %v1776 = vunpack.c.h.b16 %v1560
    %v1777 = vunpack.c.l.b16 %v1561
    %v1778 = vunpack.c.l.b16 %v1562
    %v1779 = vunpack.c.h.b16 %v1562
    %v1780 = vunpack.c.l.b16 %v1563
    %v1781 = vunpack.c.l.b16 %v1564
    %v1782 = vunpack.c.h.b16 %v1564
    %v1783 = vunpack.c.l.b16 %v1565
    %v1784 = vunpack.c.l.b16 %v1566
    %v1785 = vunpack.c.h.b16 %v1566
    %v1786 = vunpack.c.l.b16 %v1567
    %v1787 = vunpack.c.l.b16 %v1568
    %v1788 = vunpack.c.h.b16 %v1568
    %v1789 = vunpack.c.l.b16 %v1569
    %v1790 = vunpack.c.l.b16 %v1570
    %v1791 = vunpack.c.h.b16 %v1570
    %v1792 = vunpack.c.l.b16 %v1571
    %v1793 = vunpack.c.l.b16 %v1572
    %v1794 = vunpack.c.h.b16 %v1572
    %v1795 = vunpack.c.l.b16 %v1573
    %v1796 = vunpack.c.l.b16 %v1574
    %v1797 = vunpack.c.h.b16 %v1574
    %v1798 = vunpack.c.l.b16 %v1575
    %v1799 = vunpack.c.l.b16 %v1576
    %v1800 = vunpack.c.h.b16 %v1576
    %v1801 = vunpack.c.l.b16 %v1577
    %v1802 = vunpack.c.l.b16 %v1578
    %v1803 = vunpack.c.h.b16 %v1578
    %v1804 = vunpack.c.l.b16 %v1579
    %v1805 = vunpack.c.l.b16 %v1580
    %v1806 = vunpack.c.h.b16 %v1580
    %v1807 = vunpack.c.l.b16 %v1581
    %v1808 = vunpack.c.l.b16 %v1582
    %v1809 = vunpack.c.h.b16 %v1582
    %v1810 = vunpack.c.l.b16 %v1583
    %v1811 = vunpack.c.l.b16 %v1584
    %v1812 = vunpack.c.h.b16 %v1584
    %v1813 = vunpack.c.l.b16 %v1585
    %v1814 = vunpack.c.l.b16 %v1586
    %v1815 = vunpack.c.h.b16 %v1586
    %v1816 = vunpack.c.l.b16 %v1587
    %v1817 = vunpack.c.l.b16 %v1588
    %v1818 = vunpack.c.h.b16 %v1588
    %v1819 = vunpack.c.l.b16 %v1589
    %v1820 = vunpack.c.l.b16 %v1590
    %v1821 = vunpack.c.h.b16 %v1590
    %v1822 = vunpack.c.l.b16 %v1591
    %v1823 = vunpack.c.l.b16 %v1592
    %v1824 = vunpack.c.h.b16 %v1592
    %v1825 = vunpack.c.l.b16 %v1593
    %v1826 = vunpack.c.l.b16 %v1594
    %v1827 = vunpack.c.h.b16 %v1594
    %v1828 = vunpack.c.l.b16 %v1595
    %v1829 = vunpack.c.l.b16 %v1596
    %v1830 = vunpack.c.h.b16 %v1596
    %v1831 = vunpack.c.l.b16 %v1597
    %v1832 = vunpack.c.l.b16 %v1598
    %v1833 = vunpack.c.h.b16 %v1598
    %v1834 = vunpack.c.l.b16 %v1599
    %v1835 = vunpack.c.l.b16 %v1600
    %v1836 = vunpack.c.h.b16 %v1600
    %v1837 = vunpack.c.l.b16 %v1601
    %v1838 = vunpack.c.l.b16 %v1602
    %v1839 = vunpack.c.h.b16 %v1602
    %v1840 = vunpack.c.l.b16 %v1603
    %v1841 = vunpack.c.l.b16 %v1604
    %v1842 = vunpack.c.h.b16 %v1604
    %v1843 = vunpack.c.l.b16 %v1605
    %v1844 = vunpack.c.l.b16 %v1606
    %v1845 = vunpack.c.h.b16 %v1606
    %v1846 = vunpack.c.l.b16 %v1607
    %v1847 = vunpack.c.l.b16 %v1608
    %v1848 = vunpack.c.h.b16 %v1608
    %v1849 = vunpack.c.l.b16 %v1609
    %v1850 = vunpack.c.l.b16 %v1610
    %v1851 = vunpack.c.h.b16 %v1610
    %v1852 = vunpack.c.l.b16 %v1611
    %v1853 = vunpack.c.l.b16 %v1612
    %v1854 = vunpack.c.h.b16 %v1612
    %v1855 = vunpack.c.l.b16 %v1613
    %v1856 = vunpack.c.l.b16 %v1614
    %v1857 = vunpack.c.h.b16 %v1614
    %v1858 = vunpack.c.l.b16 %v1615
    %v1859 = vunpack.c.l.b16 %v1616
    %v1860 = vunpack.c.h.b16 %v1616
    %v1861 = vunpack.c.l.b16 %v1617
    %v1862 = vunpack.c.l.b16 %v1618
    %v1863 = vunpack.c.h.b16 %v1618
    %v1864 = vunpack.c.l.b16 %v1619
    %v1865 = vunpack.c.l.b16 %v1620
    %v1866 = vunpack.c.h.b16 %v1620
    %v1867 = vunpack.c.l.b16 %v1621
    %v1868 = vunpack.c.l.b16 %v1622
    %v1869 = vunpack.c.h.b16 %v1622
    %v1870 = vunpack.c.l.b16 %v1623
    %v1871 = vunpack.c.l.b16 %v1624
    %v1872 = vunpack.c.h.b16 %v1624
    %v1873 = vunpack.c.l.b16 %v1625
    %v1874 = vunpack.c.l.b16 %v1626
    %v1875 = vunpack.c.h.b16 %v1626
    %v1876 = vunpack.c.l.b16 %v1627
    %v1877 = vunpack.c.l.b16 %v1628
    %v1878 = vunpack.c.h.b16 %v1628
    %v1879 = vunpack.c.l.b16 %v1629
    %v1880 = vunpack.c.l.b16 %v1630
    %v1881 = vunpack.c.h.b16 %v1630
    %v1882 = vunpack.c.l.b16 %v1631
    %v1883 = vunpack.c.l.b16 %v1632
    %v1884 = vunpack.c.h.b16 %v1632
    %v1885 = vunpack.c.l.b16 %v1633
    %v1886 = vunpack.c.l.b16 %v1634
    %v1887 = vunpack.c.h.b16 %v1634
    %v1888 = vunpack.c.l.b16 %v1635
    %v1889 = vunpack.c.l.b16 %v1636
    %v1890 = vunpack.c.h.b16 %v1636
    %v1891 = vunpack.c.l.b16 %v1637
    %v1892 = vunpack.c.l.b16 %v1638
    %v1893 = vunpack.c.h.b16 %v1638
    %v1894 = vunpack.c.l.b16 %v1639
    %v1895 = vunpack.c.l.b16 %v1640
    %v1896 = vunpack.c.h.b16 %v1640
    %v1897 = vunpack.c.l.b16 %v1641
    %v1898 = vpack.c.b16 %v1757, %v1754
    %v1899 = vpack.c.b16 %v1758, %v1755
    %v1900 = vpack.c.b16 %v1759, %v1756
    %v1901 = vpack.c.b16 %v1763, %v1760
    %v1902 = vpack.c.b16 %v1764, %v1761
    %v1903 = vpack.c.b16 %v1765, %v1762
    %v1904 = vpack.c.b16 %v1769, %v1766
    %v1905 = vpack.c.b16 %v1770, %v1767
    %v1906 = vpack.c.b16 %v1771, %v1768
    %v1907 = vpack.c.b16 %v1775, %v1772
    %v1908 = vpack.c.b16 %v1776, %v1773
    %v1909 = vpack.c.b16 %v1777, %v1774
    %v1910 = vpack.c.b16 %v1781, %v1778
    %v1911 = vpack.c.b16 %v1782, %v1779
    %v1912 = vpack.c.b16 %v1783, %v1780
    %v1913 = vpack.c.b16 %v1787, %v1784
    %v1914 = vpack.c.b16 %v1788, %v1785
    %v1915 = vpack.c.b16 %v1789, %v1786
    %v1916 = vpack.c.b16 %v1793, %v1790
    %v1917 = vpack.c.b16 %v1794, %v1791
    %v1918 = vpack.c.b16 %v1795, %v1792
    %v1919 = vpack.c.b16 %v1799, %v1796
    %v1920 = vpack.c.b16 %v1800, %v1797
    %v1921 = vpack.c.b16 %v1801, %v1798
    %v1922 = vpack.c.b16 %v1805, %v1802
    %v1923 = vpack.c.b16 %v1806, %v1803
    %v1924 = vpack.c.b16 %v1807, %v1804
    %v1925 = vpack.c.b16 %v1811, %v1808
    %v1926 = vpack.c.b16 %v1812, %v1809
    %v1927 = vpack.c.b16 %v1813, %v1810
    %v1928 = vpack.c.b16 %v1817, %v1814
    %v1929 = vpack.c.b16 %v1818, %v1815
    %v1930 = vpack.c.b16 %v1819, %v1816
    %v1931 = vpack.c.b16 %v1823, %v1820
    %v1932 = vpack.c.b16 %v1824, %v1821
    %v1933 = vpack.c.b16 %v1825, %v1822
    %v1934 = vpack.c.b16 %v1829, %v1826
    %v1935 = vpack.c.b16 %v1830, %v1827
    %v1936 = vpack.c.b16 %v1831, %v1828
    %v1937 = vpack.c.b16 %v1835, %v1832
    %v1938 = vpack.c.b16 %v1836, %v1833
    %v1939 = vpack.c.b16 %v1837, %v1834
    %v1940 = vpack.c.b16 %v1841, %v1838
    %v1941 = vpack.c.b16 %v1842, %v1839
    %v1942 = vpack.c.b16 %v1843, %v1840
    %v1943 = vpack.c.b16 %v1847, %v1844
    %v1944 = vpack.c.b16 %v1848, %v1845
    %v1945 = vpack.c.b16 %v1849, %v1846
    %v1946 = vpack.c.b16 %v1853, %v1850
    %v1947 = vpack.c.b16 %v1854, %v1851
    %v1948 = vpack.c.b16 %v1855, %v1852
    %v1949 = vpack.c.b16 %v1859, %v1856
    %v1950 = vpack.c.b16 %v1860, %v1857
    %v1951 = vpack.c.b16 %v1861, %v1858
    %v1952 = vpack.c.b16 %v1865, %v1862
    %v1953 = vpack.c.b16 %v1866, %v1863
    %v1954 = vpack.c.b16 %v1867, %v1864
    %v1955 = vpack.c.b16 %v1871, %v1868
    %v1956 = vpack.c.b16 %v1872, %v1869
    %v1957 = vpack.c.b16 %v1873, %v1870
    %v1958 = vpack.c.b16 %v1877, %v1874
    %v1959 = vpack.c.b16 %v1878, %v1875
    %v1960 = vpack.c.b16 %v1879, %v1876
    %v1961 = vpack.c.b16 %v1883, %v1880
    %v1962 = vpack.c.b16 %v1884, %v1881
    %v1963 = vpack.c.b16 %v1885, %v1882
    %v1964 = vpack.c.b16 %v1889, %v1886
    %v1965 = vpack.c.b16 %v1890, %v1887
    %v1966 = vpack.c.b16 %v1891, %v1888
    %v1967 = vpack.c.b16 %v1895, %v1892
    %v1968 = vpack.c.b16 %v1896, %v1893
    %v1969 = vpack.c.b16 %v1897, %v1894
    %2042 = vmatprep.subr.bf16.mxu0 %v1920
    %2043 = vmatpush1.bf16.msra.mxu0 %v1919
    %2044 = vmatprep.subr.bf16.mxu0 %v1917
    %2045 = vmatpush1.bf16.msra.mxu0 %v1916
    %2046 = vmatprep.subr.bf16.mxu0 %v1914
    %2047 = vmatpush1.bf16.msra.mxu0 %v1913
    %2048 = vmatprep.subr.bf16.mxu0 %v1911
    %2049 = vmatpush1.bf16.msra.mxu0 %v1910
    %2050 = vmatprep.subr.bf16.mxu0 %v1908
    %2051 = vmatpush1.bf16.msra.mxu0 %v1907
    %2052 = vmatprep.subr.bf16.mxu0 %v1905
    %2053 = vmatpush1.bf16.msra.mxu0 %v1904
    %2054 = vmatprep.subr.bf16.mxu0 %v1902
    %2055 = vmatpush1.bf16.msra.mxu0 %v1901
    %2056 = vmatprep.subr.bf16.mxu0 %v1899
    %2057 = vmatpush1.bf16.msra.mxu0 %v1898
    %2058 = vmatprep.subr.bf16.mxu0 %v1944
    %2059 = vmatpush2.bf16.msra.mxu0 %v1943
    %2060 = vmatprep.subr.bf16.mxu0 %v1941
    %2061 = vmatpush2.bf16.msra.mxu0 %v1940
    %2062 = vmatprep.subr.bf16.mxu0 %v1938
    %2063 = vmatpush2.bf16.msra.mxu0 %v1937
    %2064 = vmatprep.subr.bf16.mxu0 %v1935
    %2065 = vmatpush2.bf16.msra.mxu0 %v1934
    %2066 = vmatprep.subr.bf16.mxu0 %v1932
    %2067 = vmatpush2.bf16.msra.mxu0 %v1931
    %2068 = vmatprep.subr.bf16.mxu0 %v1929
    %2069 = vmatpush2.bf16.msra.mxu0 %v1928
    %2070 = vmatprep.subr.bf16.mxu0 %v1926
    %2071 = vmatpush2.bf16.msra.mxu0 %v1925
    %2072 = vmatprep.subr.bf16.mxu0 %v1923
    %2073 = vmatpush2.bf16.msra.mxu0 %v1922
    %2074 = vmatprep.mubr.bf16.mxu0 %v1543
    %2075 = vmatmul.mubr.bf16.gmra.mxu0 %v1542
    %v2076 = vpop.f32.mrf.mxu0
    %v2077 = vadd.f32 %v1646, %v2076
    %v2078 = vpop.f32.mrf.mxu0
    %v2079 = vadd.f32 %v1650, %v2078
    %v2080 = vpop.f32.mrf.mxu0
    %v2081 = vpop.f32.mrf.mxu0
    %2082 = vdwg.mxu0
    %2083 = vmatprep.subr.bf16.mxu0 %v1968
    %2084 = vmatpush1.bf16.msra.mxu0 %v1967
    %2085 = vmatprep.subr.bf16.mxu0 %v1965
    %2086 = vmatpush1.bf16.msra.mxu0 %v1964
    %2087 = vmatprep.subr.bf16.mxu0 %v1962
    %2088 = vmatpush1.bf16.msra.mxu0 %v1961
    %2089 = vmatprep.subr.bf16.mxu0 %v1959
    %2090 = vmatpush1.bf16.msra.mxu0 %v1958
    %2091 = vmatprep.subr.bf16.mxu0 %v1956
    %2092 = vmatpush1.bf16.msra.mxu0 %v1955
    %2093 = vmatprep.subr.bf16.mxu0 %v1953
    %2094 = vmatpush1.bf16.msra.mxu0 %v1952
    %2095 = vmatprep.subr.bf16.mxu0 %v1950
    %2096 = vmatpush1.bf16.msra.mxu0 %v1949
    %2097 = vmatprep.subr.bf16.mxu0 %v1947
    %2098 = vmatpush1.bf16.msra.mxu0 %v1946
    %2099 = vmatprep.subr.bf16.mxu0 0
    %2100 = vmatpush2.bf16.msra.mxu0 0
    %2101 = vmatprep.subr.bf16.mxu0 0
    %2102 = vmatpush2.bf16.msra.mxu0 0
    %2103 = vmatprep.subr.bf16.mxu0 0
    %2104 = vmatpush2.bf16.msra.mxu0 0
    %2105 = vmatprep.subr.bf16.mxu0 0
    %2106 = vmatpush2.bf16.msra.mxu0 0
    %2107 = vmatprep.subr.bf16.mxu0 0
    %2108 = vmatpush2.bf16.msra.mxu0 0
    %2109 = vmatprep.subr.bf16.mxu0 0
    %2110 = vmatpush2.bf16.msra.mxu0 0
    %2111 = vmatprep.subr.bf16.mxu0 0
    %2112 = vmatpush2.bf16.msra.mxu0 0
    %2113 = vmatprep.subr.bf16.mxu0 0
    %2114 = vmatpush2.bf16.msra.mxu0 0
    %2115 = vmatprep.mubr.bf16.mxu0 0
    %2116 = vmatmul.mubr.bf16.gmra.mxu0 %v1544
    %v2117 = vpop.f32.mrf.mxu0
    %v2118 = vadd.f32 %v2077, %v2117
    %v2119 = vpop.f32.mrf.mxu0
    %v2120 = vadd.f32 %v2079, %v2119
    %v2121 = vpop.f32.mrf.mxu0
    %v2122 = vpop.f32.mrf.mxu0
    %2123 = vdwg.mxu0
    %2124 = vmatprep.subr.bf16.mxu0 0
    %2125 = vmatpush1.bf16.msra.mxu0 %v1921
    %2126 = vmatprep.subr.bf16.mxu0 0
    %2127 = vmatpush1.bf16.msra.mxu0 %v1918
    %2128 = vmatprep.subr.bf16.mxu0 0
    %2129 = vmatpush1.bf16.msra.mxu0 %v1915
    %2130 = vmatprep.subr.bf16.mxu0 0
    %2131 = vmatpush1.bf16.msra.mxu0 %v1912
    %2132 = vmatprep.subr.bf16.mxu0 0
    %2133 = vmatpush1.bf16.msra.mxu0 %v1909
    %2134 = vmatprep.subr.bf16.mxu0 0
    %2135 = vmatpush1.bf16.msra.mxu0 %v1906
    %2136 = vmatprep.subr.bf16.mxu0 0
    %2137 = vmatpush1.bf16.msra.mxu0 %v1903
    %2138 = vmatprep.subr.bf16.mxu0 0
    %2139 = vmatpush1.bf16.msra.mxu0 %v1900
    %2140 = vmatprep.subr.bf16.mxu0 0
    %2141 = vmatpush2.bf16.msra.mxu0 %v1945
    %2142 = vmatprep.subr.bf16.mxu0 0
    %2143 = vmatpush2.bf16.msra.mxu0 %v1942
    %2144 = vmatprep.subr.bf16.mxu0 0
    %2145 = vmatpush2.bf16.msra.mxu0 %v1939
    %2146 = vmatprep.subr.bf16.mxu0 0
    %2147 = vmatpush2.bf16.msra.mxu0 %v1936
    %2148 = vmatprep.subr.bf16.mxu0 0
    %2149 = vmatpush2.bf16.msra.mxu0 %v1933
    %2150 = vmatprep.subr.bf16.mxu0 0
    %2151 = vmatpush2.bf16.msra.mxu0 %v1930
    %2152 = vmatprep.subr.bf16.mxu0 0
    %2153 = vmatpush2.bf16.msra.mxu0 %v1927
    %2154 = vmatprep.subr.bf16.mxu0 0
    %2155 = vmatpush2.bf16.msra.mxu0 %v1924
    %2156 = vmatprep.mubr.bf16.mxu0 %v1543
    %2157 = vmatmul.mubr.bf16.gmra.mxu0 %v1542
    %v2158 = vpop.f32.mrf.mxu0
    %v2159 = vadd.f32 %v1654, %v2158
    %v2160 = vpop.f32.mrf.mxu0
    %v2161 = vpop.f32.mrf.mxu0
    %v2162 = vpop.f32.mrf.mxu0
    %2163 = vdwg.mxu0
    %2164 = vmatprep.subr.bf16.mxu0 0
    %2165 = vmatpush1.bf16.msra.mxu0 %v1969
    %2166 = vmatprep.subr.bf16.mxu0 0
    %2167 = vmatpush1.bf16.msra.mxu0 %v1966
    %2168 = vmatprep.subr.bf16.mxu0 0
    %2169 = vmatpush1.bf16.msra.mxu0 %v1963
    %2170 = vmatprep.subr.bf16.mxu0 0
    %2171 = vmatpush1.bf16.msra.mxu0 %v1960
    %2172 = vmatprep.subr.bf16.mxu0 0
    %2173 = vmatpush1.bf16.msra.mxu0 %v1957
    %2174 = vmatprep.subr.bf16.mxu0 0
    %2175 = vmatpush1.bf16.msra.mxu0 %v1954
    %2176 = vmatprep.subr.bf16.mxu0 0
    %2177 = vmatpush1.bf16.msra.mxu0 %v1951
    %2178 = vmatprep.subr.bf16.mxu0 0
    %2179 = vmatpush1.bf16.msra.mxu0 %v1948
    %2180 = vmatprep.subr.bf16.mxu0 0
    %2181 = vmatpush2.bf16.msra.mxu0 0
    %2182 = vmatprep.subr.bf16.mxu0 0
    %2183 = vmatpush2.bf16.msra.mxu0 0
    %2184 = vmatprep.subr.bf16.mxu0 0
    %2185 = vmatpush2.bf16.msra.mxu0 0
    %2186 = vmatprep.subr.bf16.mxu0 0
    %2187 = vmatpush2.bf16.msra.mxu0 0
    %2188 = vmatprep.subr.bf16.mxu0 0
    %2189 = vmatpush2.bf16.msra.mxu0 0
    %2190 = vmatprep.subr.bf16.mxu0 0
    %2191 = vmatpush2.bf16.msra.mxu0 0
    %2192 = vmatprep.subr.bf16.mxu0 0
    %2193 = vmatpush2.bf16.msra.mxu0 0
    %2194 = vmatprep.subr.bf16.mxu0 0
    %2195 = vmatpush2.bf16.msra.mxu0 0
    %2196 = vmatprep.mubr.bf16.mxu0 0
    %2197 = vmatmul.mubr.bf16.gmra.mxu0 %v1544
    %v2198 = vpop.f32.mrf.mxu0
    %v2199 = vadd.f32 %v2159, %v2198
    %v2200 = vpop.f32.mrf.mxu0
    %v2201 = vpop.f32.mrf.mxu0
    %v2202 = vpop.f32.mrf.mxu0
    %2203 = vdwg.mxu0
    %v2204 = vadd.f32 %v2118, %v174
    %v2205 = vadd.f32 %v2120, %v175
    %v2206 = vadd.f32 %v2199, %v176
    %v2207 = vadd.f32 %v2204, %v2205
    %v2208 = vadd.f32 %v2207, %v2206
    %2209 = vadd.xlane.f32.xlu0 %v2208
    %v2210 = vpop.xlane.xlu0 %2209
    %v2211 = vrcp.pop 384.0
    %v2212 = vmul.f32 %v2210, %v2211
    %v2213 = vsub.f32 %v2204, %v2212
    %v2214 = vsub.f32 %v2205, %v2212
    %v2215 = vsub.f32 %v2206, %v2212
    %v2216 = vmul.f32 %v2213, %v2213
    %v2217 = vmul.f32 %v2214, %v2214
    %v2218 = vmul.f32 %v2215, %v2215
    %v2219 = vadd.f32 %v2216, %v2217
    %v2220 = vadd.f32 %v2219, %v2218
    %2221 = vadd.xlane.f32.xlu0 %v2220
    %v2222 = vpop.xlane.xlu0 %2221
    %v2223 = vmul.f32 %v2222, %v2211
    %v2224 = vadd.f32 %v2223, 1e-05
    %v2225 = vrsqrt.pop %v2224
    %v2226 = vmul.f32 %v2213, %v2225
    %v2227 = vmul.f32 %v2214, %v2225
    %v2228 = vmul.f32 %v2215, %v2225
    %v2230 = vlaneseq
    %v2231 = vshrl.u32 %v2230, 7
    %v2232 = vsub.s32 0, %v2231
    %v2233 = vrot.slane %v41, %v2232
    %v2234 = vlaneseq
    %v2235 = vshrl.u32 %v2234, 7
    %v2236 = vsub.s32 1, %v2235
    %v2237 = vrot.slane %v41, %v2236
    %v2238 = vlaneseq
    %v2239 = vshrl.u32 %v2238, 7
    %v2240 = vsub.s32 2, %v2239
    %v2241 = vrot.slane %v41, %v2240
    %v2245 = vmul.f32 %v2226, %v2233
    %v2246 = vmul.f32 %v2227, %v2237
    %v2247 = vmul.f32 %v2228, %v2241
    %v2249 = vlaneseq
    %v2250 = vshrl.u32 %v2249, 7
    %v2251 = vsub.s32 0, %v2250
    %v2252 = vrot.slane %v43, %v2251
    %v2253 = vlaneseq
    %v2254 = vshrl.u32 %v2253, 7
    %v2255 = vsub.s32 1, %v2254
    %v2256 = vrot.slane %v43, %v2255
    %v2257 = vlaneseq
    %v2258 = vshrl.u32 %v2257, 7
    %v2259 = vsub.s32 2, %v2258
    %v2260 = vrot.slane %v43, %v2259
    %v2264 = vadd.f32 %v2245, %v2252
    %v2265 = vadd.f32 %v2246, %v2256
    %v2266 = vadd.f32 %v2247, %v2260
    %v2267 = vpack.c.bf16 %v2264, %v2264
    %v2268 = vpack.c.bf16 %v2265, %v2265
    %v2269 = vpack.c.bf16 %v2266, %v2266
    %2270 = vmatprep.subr.bf16.mxu0 %v554
    %2271 = vmatpush1.bf16.msra.mxu0 %v553
    %2272 = vmatprep.subr.bf16.mxu0 %v551
    %2273 = vmatpush1.bf16.msra.mxu0 %v550
    %2274 = vmatprep.subr.bf16.mxu0 %v548
    %2275 = vmatpush1.bf16.msra.mxu0 %v547
    %2276 = vmatprep.subr.bf16.mxu0 %v545
    %2277 = vmatpush1.bf16.msra.mxu0 %v544
    %2278 = vmatprep.subr.bf16.mxu0 %v542
    %2279 = vmatpush1.bf16.msra.mxu0 %v541
    %2280 = vmatprep.subr.bf16.mxu0 %v539
    %2281 = vmatpush1.bf16.msra.mxu0 %v538
    %2282 = vmatprep.subr.bf16.mxu0 %v536
    %2283 = vmatpush1.bf16.msra.mxu0 %v535
    %2284 = vmatprep.subr.bf16.mxu0 %v533
    %2285 = vmatpush1.bf16.msra.mxu0 %v532
    %2286 = vmatprep.subr.bf16.mxu0 %v578
    %2287 = vmatpush2.bf16.msra.mxu0 %v577
    %2288 = vmatprep.subr.bf16.mxu0 %v575
    %2289 = vmatpush2.bf16.msra.mxu0 %v574
    %2290 = vmatprep.subr.bf16.mxu0 %v572
    %2291 = vmatpush2.bf16.msra.mxu0 %v571
    %2292 = vmatprep.subr.bf16.mxu0 %v569
    %2293 = vmatpush2.bf16.msra.mxu0 %v568
    %2294 = vmatprep.subr.bf16.mxu0 %v566
    %2295 = vmatpush2.bf16.msra.mxu0 %v565
    %2296 = vmatprep.subr.bf16.mxu0 %v563
    %2297 = vmatpush2.bf16.msra.mxu0 %v562
    %2298 = vmatprep.subr.bf16.mxu0 %v560
    %2299 = vmatpush2.bf16.msra.mxu0 %v559
    %2300 = vmatprep.subr.bf16.mxu0 %v557
    %2301 = vmatpush2.bf16.msra.mxu0 %v556
    %2302 = vmatprep.mubr.bf16.mxu0 %v2268
    %2303 = vmatmul.mubr.bf16.gmra.mxu0 %v2267
    %v2304 = vpop.f32.mrf.mxu0
    %v2305 = vadd.f32 %v280, %v2304
    %v2306 = vpop.f32.mrf.mxu0
    %v2307 = vadd.f32 %v284, %v2306
    %v2308 = vpop.f32.mrf.mxu0
    %v2309 = vpop.f32.mrf.mxu0
    %2310 = vdwg.mxu0
    %2311 = vmatprep.subr.bf16.mxu0 %v602
    %2312 = vmatpush1.bf16.msra.mxu0 %v601
    %2313 = vmatprep.subr.bf16.mxu0 %v599
    %2314 = vmatpush1.bf16.msra.mxu0 %v598
    %2315 = vmatprep.subr.bf16.mxu0 %v596
    %2316 = vmatpush1.bf16.msra.mxu0 %v595
    %2317 = vmatprep.subr.bf16.mxu0 %v593
    %2318 = vmatpush1.bf16.msra.mxu0 %v592
    %2319 = vmatprep.subr.bf16.mxu0 %v590
    %2320 = vmatpush1.bf16.msra.mxu0 %v589
    %2321 = vmatprep.subr.bf16.mxu0 %v587
    %2322 = vmatpush1.bf16.msra.mxu0 %v586
    %2323 = vmatprep.subr.bf16.mxu0 %v584
    %2324 = vmatpush1.bf16.msra.mxu0 %v583
    %2325 = vmatprep.subr.bf16.mxu0 %v581
    %2326 = vmatpush1.bf16.msra.mxu0 %v580
    %2327 = vmatprep.subr.bf16.mxu0 0
    %2328 = vmatpush2.bf16.msra.mxu0 0
    %2329 = vmatprep.subr.bf16.mxu0 0
    %2330 = vmatpush2.bf16.msra.mxu0 0
    %2331 = vmatprep.subr.bf16.mxu0 0
    %2332 = vmatpush2.bf16.msra.mxu0 0
    %2333 = vmatprep.subr.bf16.mxu0 0
    %2334 = vmatpush2.bf16.msra.mxu0 0
    %2335 = vmatprep.subr.bf16.mxu0 0
    %2336 = vmatpush2.bf16.msra.mxu0 0
    %2337 = vmatprep.subr.bf16.mxu0 0
    %2338 = vmatpush2.bf16.msra.mxu0 0
    %2339 = vmatprep.subr.bf16.mxu0 0
    %2340 = vmatpush2.bf16.msra.mxu0 0
    %2341 = vmatprep.subr.bf16.mxu0 0
    %2342 = vmatpush2.bf16.msra.mxu0 0
    %2343 = vmatprep.mubr.bf16.mxu0 0
    %2344 = vmatmul.mubr.bf16.gmra.mxu0 %v2269
    %v2345 = vpop.f32.mrf.mxu0
    %v2346 = vadd.f32 %v2305, %v2345
    %v2347 = vpop.f32.mrf.mxu0
    %v2348 = vadd.f32 %v2307, %v2347
    %v2349 = vpop.f32.mrf.mxu0
    %v2350 = vpop.f32.mrf.mxu0
    %2351 = vdwg.mxu0
    %2352 = vmatprep.subr.bf16.mxu0 0
    %2353 = vmatpush1.bf16.msra.mxu0 %v555
    %2354 = vmatprep.subr.bf16.mxu0 0
    %2355 = vmatpush1.bf16.msra.mxu0 %v552
    %2356 = vmatprep.subr.bf16.mxu0 0
    %2357 = vmatpush1.bf16.msra.mxu0 %v549
    %2358 = vmatprep.subr.bf16.mxu0 0
    %2359 = vmatpush1.bf16.msra.mxu0 %v546
    %2360 = vmatprep.subr.bf16.mxu0 0
    %2361 = vmatpush1.bf16.msra.mxu0 %v543
    %2362 = vmatprep.subr.bf16.mxu0 0
    %2363 = vmatpush1.bf16.msra.mxu0 %v540
    %2364 = vmatprep.subr.bf16.mxu0 0
    %2365 = vmatpush1.bf16.msra.mxu0 %v537
    %2366 = vmatprep.subr.bf16.mxu0 0
    %2367 = vmatpush1.bf16.msra.mxu0 %v534
    %2368 = vmatprep.subr.bf16.mxu0 0
    %2369 = vmatpush2.bf16.msra.mxu0 %v579
    %2370 = vmatprep.subr.bf16.mxu0 0
    %2371 = vmatpush2.bf16.msra.mxu0 %v576
    %2372 = vmatprep.subr.bf16.mxu0 0
    %2373 = vmatpush2.bf16.msra.mxu0 %v573
    %2374 = vmatprep.subr.bf16.mxu0 0
    %2375 = vmatpush2.bf16.msra.mxu0 %v570
    %2376 = vmatprep.subr.bf16.mxu0 0
    %2377 = vmatpush2.bf16.msra.mxu0 %v567
    %2378 = vmatprep.subr.bf16.mxu0 0
    %2379 = vmatpush2.bf16.msra.mxu0 %v564
    %2380 = vmatprep.subr.bf16.mxu0 0
    %2381 = vmatpush2.bf16.msra.mxu0 %v561
    %2382 = vmatprep.subr.bf16.mxu0 0
    %2383 = vmatpush2.bf16.msra.mxu0 %v558
    %2384 = vmatprep.mubr.bf16.mxu0 %v2268
    %2385 = vmatmul.mubr.bf16.gmra.mxu0 %v2267
    %v2386 = vpop.f32.mrf.mxu0
    %v2387 = vadd.f32 %v288, %v2386
    %v2388 = vpop.f32.mrf.mxu0
    %v2389 = vpop.f32.mrf.mxu0
    %v2390 = vpop.f32.mrf.mxu0
    %2391 = vdwg.mxu0
    %2392 = vmatprep.subr.bf16.mxu0 0
    %2393 = vmatpush1.bf16.msra.mxu0 %v603
    %2394 = vmatprep.subr.bf16.mxu0 0
    %2395 = vmatpush1.bf16.msra.mxu0 %v600
    %2396 = vmatprep.subr.bf16.mxu0 0
    %2397 = vmatpush1.bf16.msra.mxu0 %v597
    %2398 = vmatprep.subr.bf16.mxu0 0
    %2399 = vmatpush1.bf16.msra.mxu0 %v594
    %2400 = vmatprep.subr.bf16.mxu0 0
    %2401 = vmatpush1.bf16.msra.mxu0 %v591
    %2402 = vmatprep.subr.bf16.mxu0 0
    %2403 = vmatpush1.bf16.msra.mxu0 %v588
    %2404 = vmatprep.subr.bf16.mxu0 0
    %2405 = vmatpush1.bf16.msra.mxu0 %v585
    %2406 = vmatprep.subr.bf16.mxu0 0
    %2407 = vmatpush1.bf16.msra.mxu0 %v582
    %2408 = vmatprep.subr.bf16.mxu0 0
    %2409 = vmatpush2.bf16.msra.mxu0 0
    %2410 = vmatprep.subr.bf16.mxu0 0
    %2411 = vmatpush2.bf16.msra.mxu0 0
    %2412 = vmatprep.subr.bf16.mxu0 0
    %2413 = vmatpush2.bf16.msra.mxu0 0
    %2414 = vmatprep.subr.bf16.mxu0 0
    %2415 = vmatpush2.bf16.msra.mxu0 0
    %2416 = vmatprep.subr.bf16.mxu0 0
    %2417 = vmatpush2.bf16.msra.mxu0 0
    %2418 = vmatprep.subr.bf16.mxu0 0
    %2419 = vmatpush2.bf16.msra.mxu0 0
    %2420 = vmatprep.subr.bf16.mxu0 0
    %2421 = vmatpush2.bf16.msra.mxu0 0
    %2422 = vmatprep.subr.bf16.mxu0 0
    %2423 = vmatpush2.bf16.msra.mxu0 0
    %2424 = vmatprep.mubr.bf16.mxu0 0
    %2425 = vmatmul.mubr.bf16.gmra.mxu0 %v2269
    %v2426 = vpop.f32.mrf.mxu0
    %v2427 = vadd.f32 %v2387, %v2426
    %v2428 = vpop.f32.mrf.mxu0
    %v2429 = vpop.f32.mrf.mxu0
    %v2430 = vpop.f32.mrf.mxu0
    %2431 = vdwg.mxu0
    %v2432 = vxor.u32 %v2346, 2147483648
    %v2433 = vxor.u32 %v2348, 2147483648
    %v2434 = vxor.u32 %v2427, 2147483648
    %v2435 = vmul.f32 %v2432, 1.442695
    %v2436 = vpow.pop %v2435
    %v2437 = vmul.f32 %v2433, 1.442695
    %v2438 = vpow.pop %v2437
    %v2439 = vmul.f32 %v2434, 1.442695
    %v2440 = vpow.pop %v2439
    %v2441 = vadd.f32 %v2436, 1.0
    %v2442 = vadd.f32 %v2438, 1.0
    %v2443 = vadd.f32 %v2440, 1.0
    %v2444 = vrcp.pop %v2441
    %v2445 = vmul.f32 1.0, %v2444
    %v2446 = vrcp.pop %v2442
    %v2447 = vmul.f32 1.0, %v2446
    %v2448 = vrcp.pop %v2443
    %v2449 = vmul.f32 1.0, %v2448
    %v2450 = vmul.f32 %v2346, %v2445
    %v2451 = vmul.f32 %v2348, %v2447
    %v2452 = vmul.f32 %v2427, %v2449
    %v2453 = vpack.c.bf16 %v2450, %v2450
    %v2454 = vpack.c.bf16 %v2451, %v2451
    %v2455 = vpack.c.bf16 %v2452, %v2452
    %2456 = vmatprep.subr.bf16.mxu0 %v1237
    %2457 = vmatpush1.bf16.msra.mxu0 %v1236
    %2458 = vmatprep.subr.bf16.mxu0 %v1234
    %2459 = vmatpush1.bf16.msra.mxu0 %v1233
    %2460 = vmatprep.subr.bf16.mxu0 %v1231
    %2461 = vmatpush1.bf16.msra.mxu0 %v1230
    %2462 = vmatprep.subr.bf16.mxu0 %v1228
    %2463 = vmatpush1.bf16.msra.mxu0 %v1227
    %2464 = vmatprep.subr.bf16.mxu0 %v1225
    %2465 = vmatpush1.bf16.msra.mxu0 %v1224
    %2466 = vmatprep.subr.bf16.mxu0 %v1222
    %2467 = vmatpush1.bf16.msra.mxu0 %v1221
    %2468 = vmatprep.subr.bf16.mxu0 %v1219
    %2469 = vmatpush1.bf16.msra.mxu0 %v1218
    %2470 = vmatprep.subr.bf16.mxu0 %v1216
    %2471 = vmatpush1.bf16.msra.mxu0 %v1215
    %2472 = vmatprep.subr.bf16.mxu0 %v1261
    %2473 = vmatpush2.bf16.msra.mxu0 %v1260
    %2474 = vmatprep.subr.bf16.mxu0 %v1258
    %2475 = vmatpush2.bf16.msra.mxu0 %v1257
    %2476 = vmatprep.subr.bf16.mxu0 %v1255
    %2477 = vmatpush2.bf16.msra.mxu0 %v1254
    %2478 = vmatprep.subr.bf16.mxu0 %v1252
    %2479 = vmatpush2.bf16.msra.mxu0 %v1251
    %2480 = vmatprep.subr.bf16.mxu0 %v1249
    %2481 = vmatpush2.bf16.msra.mxu0 %v1248
    %2482 = vmatprep.subr.bf16.mxu0 %v1246
    %2483 = vmatpush2.bf16.msra.mxu0 %v1245
    %2484 = vmatprep.subr.bf16.mxu0 %v1243
    %2485 = vmatpush2.bf16.msra.mxu0 %v1242
    %2486 = vmatprep.subr.bf16.mxu0 %v1240
    %2487 = vmatpush2.bf16.msra.mxu0 %v1239
    %2488 = vmatprep.mubr.bf16.mxu0 %v2454
    %2489 = vmatmul.mubr.bf16.gmra.mxu0 %v2453
    %v2490 = vpop.f32.mrf.mxu0
    %v2491 = vadd.f32 %v963, %v2490
    %v2492 = vpop.f32.mrf.mxu0
    %v2493 = vadd.f32 %v967, %v2492
    %v2494 = vpop.f32.mrf.mxu0
    %v2495 = vpop.f32.mrf.mxu0
    %2496 = vdwg.mxu0
    %2497 = vmatprep.subr.bf16.mxu0 %v1285
    %2498 = vmatpush1.bf16.msra.mxu0 %v1284
    %2499 = vmatprep.subr.bf16.mxu0 %v1282
    %2500 = vmatpush1.bf16.msra.mxu0 %v1281
    %2501 = vmatprep.subr.bf16.mxu0 %v1279
    %2502 = vmatpush1.bf16.msra.mxu0 %v1278
    %2503 = vmatprep.subr.bf16.mxu0 %v1276
    %2504 = vmatpush1.bf16.msra.mxu0 %v1275
    %2505 = vmatprep.subr.bf16.mxu0 %v1273
    %2506 = vmatpush1.bf16.msra.mxu0 %v1272
    %2507 = vmatprep.subr.bf16.mxu0 %v1270
    %2508 = vmatpush1.bf16.msra.mxu0 %v1269
    %2509 = vmatprep.subr.bf16.mxu0 %v1267
    %2510 = vmatpush1.bf16.msra.mxu0 %v1266
    %2511 = vmatprep.subr.bf16.mxu0 %v1264
    %2512 = vmatpush1.bf16.msra.mxu0 %v1263
    %2513 = vmatprep.subr.bf16.mxu0 0
    %2514 = vmatpush2.bf16.msra.mxu0 0
    %2515 = vmatprep.subr.bf16.mxu0 0
    %2516 = vmatpush2.bf16.msra.mxu0 0
    %2517 = vmatprep.subr.bf16.mxu0 0
    %2518 = vmatpush2.bf16.msra.mxu0 0
    %2519 = vmatprep.subr.bf16.mxu0 0
    %2520 = vmatpush2.bf16.msra.mxu0 0
    %2521 = vmatprep.subr.bf16.mxu0 0
    %2522 = vmatpush2.bf16.msra.mxu0 0
    %2523 = vmatprep.subr.bf16.mxu0 0
    %2524 = vmatpush2.bf16.msra.mxu0 0
    %2525 = vmatprep.subr.bf16.mxu0 0
    %2526 = vmatpush2.bf16.msra.mxu0 0
    %2527 = vmatprep.subr.bf16.mxu0 0
    %2528 = vmatpush2.bf16.msra.mxu0 0
    %2529 = vmatprep.mubr.bf16.mxu0 0
    %2530 = vmatmul.mubr.bf16.gmra.mxu0 %v2455
    %v2531 = vpop.f32.mrf.mxu0
    %v2532 = vadd.f32 %v2491, %v2531
    %v2533 = vpop.f32.mrf.mxu0
    %v2534 = vadd.f32 %v2493, %v2533
    %v2535 = vpop.f32.mrf.mxu0
    %v2536 = vpop.f32.mrf.mxu0
    %2537 = vdwg.mxu0
    %2538 = vmatprep.subr.bf16.mxu0 0
    %2539 = vmatpush1.bf16.msra.mxu0 %v1238
    %2540 = vmatprep.subr.bf16.mxu0 0
    %2541 = vmatpush1.bf16.msra.mxu0 %v1235
    %2542 = vmatprep.subr.bf16.mxu0 0
    %2543 = vmatpush1.bf16.msra.mxu0 %v1232
    %2544 = vmatprep.subr.bf16.mxu0 0
    %2545 = vmatpush1.bf16.msra.mxu0 %v1229
    %2546 = vmatprep.subr.bf16.mxu0 0
    %2547 = vmatpush1.bf16.msra.mxu0 %v1226
    %2548 = vmatprep.subr.bf16.mxu0 0
    %2549 = vmatpush1.bf16.msra.mxu0 %v1223
    %2550 = vmatprep.subr.bf16.mxu0 0
    %2551 = vmatpush1.bf16.msra.mxu0 %v1220
    %2552 = vmatprep.subr.bf16.mxu0 0
    %2553 = vmatpush1.bf16.msra.mxu0 %v1217
    %2554 = vmatprep.subr.bf16.mxu0 0
    %2555 = vmatpush2.bf16.msra.mxu0 %v1262
    %2556 = vmatprep.subr.bf16.mxu0 0
    %2557 = vmatpush2.bf16.msra.mxu0 %v1259
    %2558 = vmatprep.subr.bf16.mxu0 0
    %2559 = vmatpush2.bf16.msra.mxu0 %v1256
    %2560 = vmatprep.subr.bf16.mxu0 0
    %2561 = vmatpush2.bf16.msra.mxu0 %v1253
    %2562 = vmatprep.subr.bf16.mxu0 0
    %2563 = vmatpush2.bf16.msra.mxu0 %v1250
    %2564 = vmatprep.subr.bf16.mxu0 0
    %2565 = vmatpush2.bf16.msra.mxu0 %v1247
    %2566 = vmatprep.subr.bf16.mxu0 0
    %2567 = vmatpush2.bf16.msra.mxu0 %v1244
    %2568 = vmatprep.subr.bf16.mxu0 0
    %2569 = vmatpush2.bf16.msra.mxu0 %v1241
    %2570 = vmatprep.mubr.bf16.mxu0 %v2454
    %2571 = vmatmul.mubr.bf16.gmra.mxu0 %v2453
    %v2572 = vpop.f32.mrf.mxu0
    %v2573 = vadd.f32 %v971, %v2572
    %v2574 = vpop.f32.mrf.mxu0
    %v2575 = vpop.f32.mrf.mxu0
    %v2576 = vpop.f32.mrf.mxu0
    %2577 = vdwg.mxu0
    %2578 = vmatprep.subr.bf16.mxu0 0
    %2579 = vmatpush1.bf16.msra.mxu0 %v1286
    %2580 = vmatprep.subr.bf16.mxu0 0
    %2581 = vmatpush1.bf16.msra.mxu0 %v1283
    %2582 = vmatprep.subr.bf16.mxu0 0
    %2583 = vmatpush1.bf16.msra.mxu0 %v1280
    %2584 = vmatprep.subr.bf16.mxu0 0
    %2585 = vmatpush1.bf16.msra.mxu0 %v1277
    %2586 = vmatprep.subr.bf16.mxu0 0
    %2587 = vmatpush1.bf16.msra.mxu0 %v1274
    %2588 = vmatprep.subr.bf16.mxu0 0
    %2589 = vmatpush1.bf16.msra.mxu0 %v1271
    %2590 = vmatprep.subr.bf16.mxu0 0
    %2591 = vmatpush1.bf16.msra.mxu0 %v1268
    %2592 = vmatprep.subr.bf16.mxu0 0
    %2593 = vmatpush1.bf16.msra.mxu0 %v1265
    %2594 = vmatprep.subr.bf16.mxu0 0
    %2595 = vmatpush2.bf16.msra.mxu0 0
    %2596 = vmatprep.subr.bf16.mxu0 0
    %2597 = vmatpush2.bf16.msra.mxu0 0
    %2598 = vmatprep.subr.bf16.mxu0 0
    %2599 = vmatpush2.bf16.msra.mxu0 0
    %2600 = vmatprep.subr.bf16.mxu0 0
    %2601 = vmatpush2.bf16.msra.mxu0 0
    %2602 = vmatprep.subr.bf16.mxu0 0
    %2603 = vmatpush2.bf16.msra.mxu0 0
    %2604 = vmatprep.subr.bf16.mxu0 0
    %2605 = vmatpush2.bf16.msra.mxu0 0
    %2606 = vmatprep.subr.bf16.mxu0 0
    %2607 = vmatpush2.bf16.msra.mxu0 0
    %2608 = vmatprep.subr.bf16.mxu0 0
    %2609 = vmatpush2.bf16.msra.mxu0 0
    %2610 = vmatprep.mubr.bf16.mxu0 0
    %2611 = vmatmul.mubr.bf16.gmra.mxu0 %v2455
    %v2612 = vpop.f32.mrf.mxu0
    %v2613 = vadd.f32 %v2573, %v2612
    %v2614 = vpop.f32.mrf.mxu0
    %v2615 = vpop.f32.mrf.mxu0
    %v2616 = vpop.f32.mrf.mxu0
    %2617 = vdwg.mxu0
    %v2618 = vxor.u32 %v2532, 2147483648
    %v2619 = vxor.u32 %v2534, 2147483648
    %v2620 = vxor.u32 %v2613, 2147483648
    %v2621 = vmul.f32 %v2618, 1.442695
    %v2622 = vpow.pop %v2621
    %v2623 = vmul.f32 %v2619, 1.442695
    %v2624 = vpow.pop %v2623
    %v2625 = vmul.f32 %v2620, 1.442695
    %v2626 = vpow.pop %v2625
    %v2627 = vadd.f32 %v2622, 1.0
    %v2628 = vadd.f32 %v2624, 1.0
    %v2629 = vadd.f32 %v2626, 1.0
    %v2630 = vrcp.pop %v2627
    %v2631 = vmul.f32 1.0, %v2630
    %v2632 = vrcp.pop %v2628
    %v2633 = vmul.f32 1.0, %v2632
    %v2634 = vrcp.pop %v2629
    %v2635 = vmul.f32 1.0, %v2634
    %v2636 = vmul.f32 %v2532, %v2631
    %v2637 = vmul.f32 %v2534, %v2633
    %v2638 = vmul.f32 %v2613, %v2635
    %v2639 = vpack.c.bf16 %v2636, %v2636
    %v2640 = vpack.c.bf16 %v2637, %v2637
    %v2641 = vpack.c.bf16 %v2638, %v2638
    %2642 = vmatprep.subr.bf16.mxu0 %v1920
    %2643 = vmatpush1.bf16.msra.mxu0 %v1919
    %2644 = vmatprep.subr.bf16.mxu0 %v1917
    %2645 = vmatpush1.bf16.msra.mxu0 %v1916
    %2646 = vmatprep.subr.bf16.mxu0 %v1914
    %2647 = vmatpush1.bf16.msra.mxu0 %v1913
    %2648 = vmatprep.subr.bf16.mxu0 %v1911
    %2649 = vmatpush1.bf16.msra.mxu0 %v1910
    %2650 = vmatprep.subr.bf16.mxu0 %v1908
    %2651 = vmatpush1.bf16.msra.mxu0 %v1907
    %2652 = vmatprep.subr.bf16.mxu0 %v1905
    %2653 = vmatpush1.bf16.msra.mxu0 %v1904
    %2654 = vmatprep.subr.bf16.mxu0 %v1902
    %2655 = vmatpush1.bf16.msra.mxu0 %v1901
    %2656 = vmatprep.subr.bf16.mxu0 %v1899
    %2657 = vmatpush1.bf16.msra.mxu0 %v1898
    %2658 = vmatprep.subr.bf16.mxu0 %v1944
    %2659 = vmatpush2.bf16.msra.mxu0 %v1943
    %2660 = vmatprep.subr.bf16.mxu0 %v1941
    %2661 = vmatpush2.bf16.msra.mxu0 %v1940
    %2662 = vmatprep.subr.bf16.mxu0 %v1938
    %2663 = vmatpush2.bf16.msra.mxu0 %v1937
    %2664 = vmatprep.subr.bf16.mxu0 %v1935
    %2665 = vmatpush2.bf16.msra.mxu0 %v1934
    %2666 = vmatprep.subr.bf16.mxu0 %v1932
    %2667 = vmatpush2.bf16.msra.mxu0 %v1931
    %2668 = vmatprep.subr.bf16.mxu0 %v1929
    %2669 = vmatpush2.bf16.msra.mxu0 %v1928
    %2670 = vmatprep.subr.bf16.mxu0 %v1926
    %2671 = vmatpush2.bf16.msra.mxu0 %v1925
    %2672 = vmatprep.subr.bf16.mxu0 %v1923
    %2673 = vmatpush2.bf16.msra.mxu0 %v1922
    %2674 = vmatprep.mubr.bf16.mxu0 %v2640
    %2675 = vmatmul.mubr.bf16.gmra.mxu0 %v2639
    %v2676 = vpop.f32.mrf.mxu0
    %v2677 = vadd.f32 %v1646, %v2676
    %v2678 = vpop.f32.mrf.mxu0
    %v2679 = vadd.f32 %v1650, %v2678
    %v2680 = vpop.f32.mrf.mxu0
    %v2681 = vpop.f32.mrf.mxu0
    %2682 = vdwg.mxu0
    %2683 = vmatprep.subr.bf16.mxu0 %v1968
    %2684 = vmatpush1.bf16.msra.mxu0 %v1967
    %2685 = vmatprep.subr.bf16.mxu0 %v1965
    %2686 = vmatpush1.bf16.msra.mxu0 %v1964
    %2687 = vmatprep.subr.bf16.mxu0 %v1962
    %2688 = vmatpush1.bf16.msra.mxu0 %v1961
    %2689 = vmatprep.subr.bf16.mxu0 %v1959
    %2690 = vmatpush1.bf16.msra.mxu0 %v1958
    %2691 = vmatprep.subr.bf16.mxu0 %v1956
    %2692 = vmatpush1.bf16.msra.mxu0 %v1955
    %2693 = vmatprep.subr.bf16.mxu0 %v1953
    %2694 = vmatpush1.bf16.msra.mxu0 %v1952
    %2695 = vmatprep.subr.bf16.mxu0 %v1950
    %2696 = vmatpush1.bf16.msra.mxu0 %v1949
    %2697 = vmatprep.subr.bf16.mxu0 %v1947
    %2698 = vmatpush1.bf16.msra.mxu0 %v1946
    %2699 = vmatprep.subr.bf16.mxu0 0
    %2700 = vmatpush2.bf16.msra.mxu0 0
    %2701 = vmatprep.subr.bf16.mxu0 0
    %2702 = vmatpush2.bf16.msra.mxu0 0
    %2703 = vmatprep.subr.bf16.mxu0 0
    %2704 = vmatpush2.bf16.msra.mxu0 0
    %2705 = vmatprep.subr.bf16.mxu0 0
    %2706 = vmatpush2.bf16.msra.mxu0 0
    %2707 = vmatprep.subr.bf16.mxu0 0
    %2708 = vmatpush2.bf16.msra.mxu0 0
    %2709 = vmatprep.subr.bf16.mxu0 0
    %2710 = vmatpush2.bf16.msra.mxu0 0
    %2711 = vmatprep.subr.bf16.mxu0 0
    %2712 = vmatpush2.bf16.msra.mxu0 0
    %2713 = vmatprep.subr.bf16.mxu0 0
    %2714 = vmatpush2.bf16.msra.mxu0 0
    %2715 = vmatprep.mubr.bf16.mxu0 0
    %2716 = vmatmul.mubr.bf16.gmra.mxu0 %v2641
    %v2717 = vpop.f32.mrf.mxu0
    %v2718 = vadd.f32 %v2677, %v2717
    %v2719 = vpop.f32.mrf.mxu0
    %v2720 = vadd.f32 %v2679, %v2719
    %v2721 = vpop.f32.mrf.mxu0
    %v2722 = vpop.f32.mrf.mxu0
    %2723 = vdwg.mxu0
    %2724 = vmatprep.subr.bf16.mxu0 0
    %2725 = vmatpush1.bf16.msra.mxu0 %v1921
    %2726 = vmatprep.subr.bf16.mxu0 0
    %2727 = vmatpush1.bf16.msra.mxu0 %v1918
    %2728 = vmatprep.subr.bf16.mxu0 0
    %2729 = vmatpush1.bf16.msra.mxu0 %v1915
    %2730 = vmatprep.subr.bf16.mxu0 0
    %2731 = vmatpush1.bf16.msra.mxu0 %v1912
    %2732 = vmatprep.subr.bf16.mxu0 0
    %2733 = vmatpush1.bf16.msra.mxu0 %v1909
    %2734 = vmatprep.subr.bf16.mxu0 0
    %2735 = vmatpush1.bf16.msra.mxu0 %v1906
    %2736 = vmatprep.subr.bf16.mxu0 0
    %2737 = vmatpush1.bf16.msra.mxu0 %v1903
    %2738 = vmatprep.subr.bf16.mxu0 0
    %2739 = vmatpush1.bf16.msra.mxu0 %v1900
    %2740 = vmatprep.subr.bf16.mxu0 0
    %2741 = vmatpush2.bf16.msra.mxu0 %v1945
    %2742 = vmatprep.subr.bf16.mxu0 0
    %2743 = vmatpush2.bf16.msra.mxu0 %v1942
    %2744 = vmatprep.subr.bf16.mxu0 0
    %2745 = vmatpush2.bf16.msra.mxu0 %v1939
    %2746 = vmatprep.subr.bf16.mxu0 0
    %2747 = vmatpush2.bf16.msra.mxu0 %v1936
    %2748 = vmatprep.subr.bf16.mxu0 0
    %2749 = vmatpush2.bf16.msra.mxu0 %v1933
    %2750 = vmatprep.subr.bf16.mxu0 0
    %2751 = vmatpush2.bf16.msra.mxu0 %v1930
    %2752 = vmatprep.subr.bf16.mxu0 0
    %2753 = vmatpush2.bf16.msra.mxu0 %v1927
    %2754 = vmatprep.subr.bf16.mxu0 0
    %2755 = vmatpush2.bf16.msra.mxu0 %v1924
    %2756 = vmatprep.mubr.bf16.mxu0 %v2640
    %2757 = vmatmul.mubr.bf16.gmra.mxu0 %v2639
    %v2758 = vpop.f32.mrf.mxu0
    %v2759 = vadd.f32 %v1654, %v2758
    %v2760 = vpop.f32.mrf.mxu0
    %v2761 = vpop.f32.mrf.mxu0
    %v2762 = vpop.f32.mrf.mxu0
    %2763 = vdwg.mxu0
    %2764 = vmatprep.subr.bf16.mxu0 0
    %2765 = vmatpush1.bf16.msra.mxu0 %v1969
    %2766 = vmatprep.subr.bf16.mxu0 0
    %2767 = vmatpush1.bf16.msra.mxu0 %v1966
    %2768 = vmatprep.subr.bf16.mxu0 0
    %2769 = vmatpush1.bf16.msra.mxu0 %v1963
    %2770 = vmatprep.subr.bf16.mxu0 0
    %2771 = vmatpush1.bf16.msra.mxu0 %v1960
    %2772 = vmatprep.subr.bf16.mxu0 0
    %2773 = vmatpush1.bf16.msra.mxu0 %v1957
    %2774 = vmatprep.subr.bf16.mxu0 0
    %2775 = vmatpush1.bf16.msra.mxu0 %v1954
    %2776 = vmatprep.subr.bf16.mxu0 0
    %2777 = vmatpush1.bf16.msra.mxu0 %v1951
    %2778 = vmatprep.subr.bf16.mxu0 0
    %2779 = vmatpush1.bf16.msra.mxu0 %v1948
    %2780 = vmatprep.subr.bf16.mxu0 0
    %2781 = vmatpush2.bf16.msra.mxu0 0
    %2782 = vmatprep.subr.bf16.mxu0 0
    %2783 = vmatpush2.bf16.msra.mxu0 0
    %2784 = vmatprep.subr.bf16.mxu0 0
    %2785 = vmatpush2.bf16.msra.mxu0 0
    %2786 = vmatprep.subr.bf16.mxu0 0
    %2787 = vmatpush2.bf16.msra.mxu0 0
    %2788 = vmatprep.subr.bf16.mxu0 0
    %2789 = vmatpush2.bf16.msra.mxu0 0
    %2790 = vmatprep.subr.bf16.mxu0 0
    %2791 = vmatpush2.bf16.msra.mxu0 0
    %2792 = vmatprep.subr.bf16.mxu0 0
    %2793 = vmatpush2.bf16.msra.mxu0 0
    %2794 = vmatprep.subr.bf16.mxu0 0
    %2795 = vmatpush2.bf16.msra.mxu0 0
    %2796 = vmatprep.mubr.bf16.mxu0 0
    %2797 = vmatmul.mubr.bf16.gmra.mxu0 %v2641
    %v2798 = vpop.f32.mrf.mxu0
    %v2799 = vadd.f32 %v2759, %v2798
    %v2800 = vpop.f32.mrf.mxu0
    %v2801 = vpop.f32.mrf.mxu0
    %v2802 = vpop.f32.mrf.mxu0
    %2803 = vdwg.mxu0
    %v2804 = vadd.f32 %v2718, %v2264
    %v2805 = vadd.f32 %v2720, %v2265
    %v2806 = vadd.f32 %v2799, %v2266
    %v2807 = vadd.f32 %v2804, %v2805
    %v2808 = vadd.f32 %v2807, %v2806
    %2809 = vadd.xlane.f32.xlu0 %v2808
    %v2810 = vpop.xlane.xlu0 %2809
    %v2811 = vmul.f32 %v2810, %v2211
    %v2812 = vsub.f32 %v2804, %v2811
    %v2813 = vsub.f32 %v2805, %v2811
    %v2814 = vsub.f32 %v2806, %v2811
    %v2815 = vmul.f32 %v2812, %v2812
    %v2816 = vmul.f32 %v2813, %v2813
    %v2817 = vmul.f32 %v2814, %v2814
    %v2818 = vadd.f32 %v2815, %v2816
    %v2819 = vadd.f32 %v2818, %v2817
    %2820 = vadd.xlane.f32.xlu0 %v2819
    %v2821 = vpop.xlane.xlu0 %2820
    %v2822 = vmul.f32 %v2821, %v2211
    %v2823 = vadd.f32 %v2822, 1e-05
    %v2824 = vrsqrt.pop %v2823
    %v2825 = vmul.f32 %v2812, %v2824
    %v2826 = vmul.f32 %v2813, %v2824
    %v2827 = vmul.f32 %v2814, %v2824
    %v2828 = vmul.f32 %v2825, %v2233
    %v2829 = vmul.f32 %v2826, %v2237
    %v2830 = vmul.f32 %v2827, %v2241
    %v2831 = vadd.f32 %v2828, %v2252
    %v2832 = vadd.f32 %v2829, %v2256
    %v2833 = vadd.f32 %v2830, %v2260
    %v2834 = vpack.c.bf16 %v2831, %v2831
    %v2835 = vpack.c.bf16 %v2832, %v2832
    %v2836 = vpack.c.bf16 %v2833, %v2833
    %s2837 = scalar_lea.vmem %s5, 1728
    %v2838 = vld [vmem:[%s2837] sm:$0xff]
    %v2839 = vld [vmem:[%s2837 + $0x8] sm:$0xf]
    %v2840 = vld [vmem:[%s2837 + $0xc] sm:$0xff]
    %v2841 = vld [vmem:[%s2837 + $0x14] sm:$0xf]
    %v2842 = vld [vmem:[%s2837 + $0x18] sm:$0xff]
    %v2843 = vld [vmem:[%s2837 + $0x20] sm:$0xf]
    %v2844 = vld [vmem:[%s2837 + $0x24] sm:$0xff]
    %v2845 = vld [vmem:[%s2837 + $0x2c] sm:$0xf]
    %v2846 = vld [vmem:[%s2837 + $0x30] sm:$0xff]
    %v2847 = vld [vmem:[%s2837 + $0x38] sm:$0xf]
    %v2848 = vld [vmem:[%s2837 + $0x3c] sm:$0xff]
    %v2849 = vld [vmem:[%s2837 + $0x44] sm:$0xf]
    %v2850 = vld [vmem:[%s2837 + $0x48] sm:$0xff]
    %v2851 = vld [vmem:[%s2837 + $0x50] sm:$0xf]
    %v2852 = vld [vmem:[%s2837 + $0x54] sm:$0xff]
    %v2853 = vld [vmem:[%s2837 + $0x5c] sm:$0xf]
    %v2854 = vld [vmem:[%s2837 + $0x60] sm:$0xff]
    %v2855 = vld [vmem:[%s2837 + $0x68] sm:$0xf]
    %v2856 = vld [vmem:[%s2837 + $0x6c] sm:$0xff]
    %v2857 = vld [vmem:[%s2837 + $0x74] sm:$0xf]
    %v2858 = vld [vmem:[%s2837 + $0x78] sm:$0xff]
    %v2859 = vld [vmem:[%s2837 + $0x80] sm:$0xf]
    %v2860 = vld [vmem:[%s2837 + $0x84] sm:$0xff]
    %v2861 = vld [vmem:[%s2837 + $0x8c] sm:$0xf]
    %v2862 = vld [vmem:[%s2837 + $0x90] sm:$0xff]
    %v2863 = vld [vmem:[%s2837 + $0x98] sm:$0xf]
    %v2864 = vld [vmem:[%s2837 + $0x9c] sm:$0xff]
    %v2865 = vld [vmem:[%s2837 + $0xa4] sm:$0xf]
    %v2866 = vld [vmem:[%s2837 + $0xa8] sm:$0xff]
    %v2867 = vld [vmem:[%s2837 + $0xb0] sm:$0xf]
    %v2868 = vld [vmem:[%s2837 + $0xb4] sm:$0xff]
    %v2869 = vld [vmem:[%s2837 + $0xbc] sm:$0xf]
    %v2870 = vld [vmem:[%s2837 + $0xc0] sm:$0xff]
    %v2871 = vld [vmem:[%s2837 + $0xc8] sm:$0xf]
    %v2872 = vld [vmem:[%s2837 + $0xcc] sm:$0xff]
    %v2873 = vld [vmem:[%s2837 + $0xd4] sm:$0xf]
    %v2874 = vld [vmem:[%s2837 + $0xd8] sm:$0xff]
    %v2875 = vld [vmem:[%s2837 + $0xe0] sm:$0xf]
    %v2876 = vld [vmem:[%s2837 + $0xe4] sm:$0xff]
    %v2877 = vld [vmem:[%s2837 + $0xec] sm:$0xf]
    %v2878 = vld [vmem:[%s2837 + $0xf0] sm:$0xff]
    %v2879 = vld [vmem:[%s2837 + $0xf8] sm:$0xf]
    %v2880 = vld [vmem:[%s2837 + $0xfc] sm:$0xff]
    %v2881 = vld [vmem:[%s2837 + $0x104] sm:$0xf]
    %v2882 = vld [vmem:[%s2837 + $0x108] sm:$0xff]
    %v2883 = vld [vmem:[%s2837 + $0x110] sm:$0xf]
    %v2884 = vld [vmem:[%s2837 + $0x114] sm:$0xff]
    %v2885 = vld [vmem:[%s2837 + $0x11c] sm:$0xf]
    %v2886 = vld [vmem:[%s2837 + $0x120] sm:$0xff]
    %v2887 = vld [vmem:[%s2837 + $0x128] sm:$0xf]
    %v2888 = vld [vmem:[%s2837 + $0x12c] sm:$0xff]
    %v2889 = vld [vmem:[%s2837 + $0x134] sm:$0xf]
    %v2890 = vld [vmem:[%s2837 + $0x138] sm:$0xff]
    %v2891 = vld [vmem:[%s2837 + $0x140] sm:$0xf]
    %v2892 = vld [vmem:[%s2837 + $0x144] sm:$0xff]
    %v2893 = vld [vmem:[%s2837 + $0x14c] sm:$0xf]
    %v2894 = vld [vmem:[%s2837 + $0x150] sm:$0xff]
    %v2895 = vld [vmem:[%s2837 + $0x158] sm:$0xf]
    %v2896 = vld [vmem:[%s2837 + $0x15c] sm:$0xff]
    %v2897 = vld [vmem:[%s2837 + $0x164] sm:$0xf]
    %v2898 = vld [vmem:[%s2837 + $0x168] sm:$0xff]
    %v2899 = vld [vmem:[%s2837 + $0x170] sm:$0xf]
    %v2900 = vld [vmem:[%s2837 + $0x174] sm:$0xff]
    %v2901 = vld [vmem:[%s2837 + $0x17c] sm:$0xf]
    %v2902 = vld [vmem:[%s2837 + $0x180] sm:$0xff]
    %v2903 = vld [vmem:[%s2837 + $0x188] sm:$0xf]
    %v2904 = vld [vmem:[%s2837 + $0x18c] sm:$0xff]
    %v2905 = vld [vmem:[%s2837 + $0x194] sm:$0xf]
    %v2906 = vld [vmem:[%s2837 + $0x198] sm:$0xff]
    %v2907 = vld [vmem:[%s2837 + $0x1a0] sm:$0xf]
    %v2908 = vld [vmem:[%s2837 + $0x1a4] sm:$0xff]
    %v2909 = vld [vmem:[%s2837 + $0x1ac] sm:$0xf]
    %v2910 = vld [vmem:[%s2837 + $0x1b0] sm:$0xff]
    %v2911 = vld [vmem:[%s2837 + $0x1b8] sm:$0xf]
    %v2912 = vld [vmem:[%s2837 + $0x1bc] sm:$0xff]
    %v2913 = vld [vmem:[%s2837 + $0x1c4] sm:$0xf]
    %v2914 = vld [vmem:[%s2837 + $0x1c8] sm:$0xff]
    %v2915 = vld [vmem:[%s2837 + $0x1d0] sm:$0xf]
    %v2916 = vld [vmem:[%s2837 + $0x1d4] sm:$0xff]
    %v2917 = vld [vmem:[%s2837 + $0x1dc] sm:$0xf]
    %v2918 = vld [vmem:[%s2837 + $0x1e0] sm:$0xff]
    %v2919 = vld [vmem:[%s2837 + $0x1e8] sm:$0xf]
    %v2920 = vld [vmem:[%s2837 + $0x1ec] sm:$0xff]
    %v2921 = vld [vmem:[%s2837 + $0x1f4] sm:$0xf]
    %v2922 = vld [vmem:[%s2837 + $0x1f8] sm:$0xff]
    %v2923 = vld [vmem:[%s2837 + $0x200] sm:$0xf]
    %v2924 = vld [vmem:[%s2837 + $0x204] sm:$0xff]
    %v2925 = vld [vmem:[%s2837 + $0x20c] sm:$0xf]
    %v2926 = vld [vmem:[%s2837 + $0x210] sm:$0xff]
    %v2927 = vld [vmem:[%s2837 + $0x218] sm:$0xf]
    %v2928 = vld [vmem:[%s2837 + $0x21c] sm:$0xff]
    %v2929 = vld [vmem:[%s2837 + $0x224] sm:$0xf]
    %v2930 = vld [vmem:[%s2837 + $0x228] sm:$0xff]
    %v2931 = vld [vmem:[%s2837 + $0x230] sm:$0xf]
    %v2932 = vld [vmem:[%s2837 + $0x234] sm:$0xff]
    %v2933 = vld [vmem:[%s2837 + $0x23c] sm:$0xf]
    %v2935 = vlaneseq
    %v2936 = vshrl.u32 %v2935, 7
    %v2937 = vsub.s32 0, %v2936
    %v2938 = vrot.slane %v45, %v2937
    %v2939 = vlaneseq
    %v2940 = vshrl.u32 %v2939, 7
    %v2941 = vsub.s32 1, %v2940
    %v2942 = vrot.slane %v45, %v2941
    %v2943 = vlaneseq
    %v2944 = vshrl.u32 %v2943, 7
    %v2945 = vsub.s32 2, %v2944
    %v2946 = vrot.slane %v45, %v2945
    %v3046 = vunpack.c.l.b16 %v2838
    %v3047 = vunpack.c.h.b16 %v2838
    %v3048 = vunpack.c.l.b16 %v2839
    %v3049 = vunpack.c.l.b16 %v2840
    %v3050 = vunpack.c.h.b16 %v2840
    %v3051 = vunpack.c.l.b16 %v2841
    %v3052 = vunpack.c.l.b16 %v2842
    %v3053 = vunpack.c.h.b16 %v2842
    %v3054 = vunpack.c.l.b16 %v2843
    %v3055 = vunpack.c.l.b16 %v2844
    %v3056 = vunpack.c.h.b16 %v2844
    %v3057 = vunpack.c.l.b16 %v2845
    %v3058 = vunpack.c.l.b16 %v2846
    %v3059 = vunpack.c.h.b16 %v2846
    %v3060 = vunpack.c.l.b16 %v2847
    %v3061 = vunpack.c.l.b16 %v2848
    %v3062 = vunpack.c.h.b16 %v2848
    %v3063 = vunpack.c.l.b16 %v2849
    %v3064 = vunpack.c.l.b16 %v2850
    %v3065 = vunpack.c.h.b16 %v2850
    %v3066 = vunpack.c.l.b16 %v2851
    %v3067 = vunpack.c.l.b16 %v2852
    %v3068 = vunpack.c.h.b16 %v2852
    %v3069 = vunpack.c.l.b16 %v2853
    %v3070 = vunpack.c.l.b16 %v2854
    %v3071 = vunpack.c.h.b16 %v2854
    %v3072 = vunpack.c.l.b16 %v2855
    %v3073 = vunpack.c.l.b16 %v2856
    %v3074 = vunpack.c.h.b16 %v2856
    %v3075 = vunpack.c.l.b16 %v2857
    %v3076 = vunpack.c.l.b16 %v2858
    %v3077 = vunpack.c.h.b16 %v2858
    %v3078 = vunpack.c.l.b16 %v2859
    %v3079 = vunpack.c.l.b16 %v2860
    %v3080 = vunpack.c.h.b16 %v2860
    %v3081 = vunpack.c.l.b16 %v2861
    %v3082 = vunpack.c.l.b16 %v2862
    %v3083 = vunpack.c.h.b16 %v2862
    %v3084 = vunpack.c.l.b16 %v2863
    %v3085 = vunpack.c.l.b16 %v2864
    %v3086 = vunpack.c.h.b16 %v2864
    %v3087 = vunpack.c.l.b16 %v2865
    %v3088 = vunpack.c.l.b16 %v2866
    %v3089 = vunpack.c.h.b16 %v2866
    %v3090 = vunpack.c.l.b16 %v2867
    %v3091 = vunpack.c.l.b16 %v2868
    %v3092 = vunpack.c.h.b16 %v2868
    %v3093 = vunpack.c.l.b16 %v2869
    %v3094 = vunpack.c.l.b16 %v2870
    %v3095 = vunpack.c.h.b16 %v2870
    %v3096 = vunpack.c.l.b16 %v2871
    %v3097 = vunpack.c.l.b16 %v2872
    %v3098 = vunpack.c.h.b16 %v2872
    %v3099 = vunpack.c.l.b16 %v2873
    %v3100 = vunpack.c.l.b16 %v2874
    %v3101 = vunpack.c.h.b16 %v2874
    %v3102 = vunpack.c.l.b16 %v2875
    %v3103 = vunpack.c.l.b16 %v2876
    %v3104 = vunpack.c.h.b16 %v2876
    %v3105 = vunpack.c.l.b16 %v2877
    %v3106 = vunpack.c.l.b16 %v2878
    %v3107 = vunpack.c.h.b16 %v2878
    %v3108 = vunpack.c.l.b16 %v2879
    %v3109 = vunpack.c.l.b16 %v2880
    %v3110 = vunpack.c.h.b16 %v2880
    %v3111 = vunpack.c.l.b16 %v2881
    %v3112 = vunpack.c.l.b16 %v2882
    %v3113 = vunpack.c.h.b16 %v2882
    %v3114 = vunpack.c.l.b16 %v2883
    %v3115 = vunpack.c.l.b16 %v2884
    %v3116 = vunpack.c.h.b16 %v2884
    %v3117 = vunpack.c.l.b16 %v2885
    %v3118 = vunpack.c.l.b16 %v2886
    %v3119 = vunpack.c.h.b16 %v2886
    %v3120 = vunpack.c.l.b16 %v2887
    %v3121 = vunpack.c.l.b16 %v2888
    %v3122 = vunpack.c.h.b16 %v2888
    %v3123 = vunpack.c.l.b16 %v2889
    %v3124 = vunpack.c.l.b16 %v2890
    %v3125 = vunpack.c.h.b16 %v2890
    %v3126 = vunpack.c.l.b16 %v2891
    %v3127 = vunpack.c.l.b16 %v2892
    %v3128 = vunpack.c.h.b16 %v2892
    %v3129 = vunpack.c.l.b16 %v2893
    %v3130 = vunpack.c.l.b16 %v2894
    %v3131 = vunpack.c.h.b16 %v2894
    %v3132 = vunpack.c.l.b16 %v2895
    %v3133 = vunpack.c.l.b16 %v2896
    %v3134 = vunpack.c.h.b16 %v2896
    %v3135 = vunpack.c.l.b16 %v2897
    %v3136 = vunpack.c.l.b16 %v2898
    %v3137 = vunpack.c.h.b16 %v2898
    %v3138 = vunpack.c.l.b16 %v2899
    %v3139 = vunpack.c.l.b16 %v2900
    %v3140 = vunpack.c.h.b16 %v2900
    %v3141 = vunpack.c.l.b16 %v2901
    %v3142 = vunpack.c.l.b16 %v2902
    %v3143 = vunpack.c.h.b16 %v2902
    %v3144 = vunpack.c.l.b16 %v2903
    %v3145 = vunpack.c.l.b16 %v2904
    %v3146 = vunpack.c.h.b16 %v2904
    %v3147 = vunpack.c.l.b16 %v2905
    %v3148 = vunpack.c.l.b16 %v2906
    %v3149 = vunpack.c.h.b16 %v2906
    %v3150 = vunpack.c.l.b16 %v2907
    %v3151 = vunpack.c.l.b16 %v2908
    %v3152 = vunpack.c.h.b16 %v2908
    %v3153 = vunpack.c.l.b16 %v2909
    %v3154 = vunpack.c.l.b16 %v2910
    %v3155 = vunpack.c.h.b16 %v2910
    %v3156 = vunpack.c.l.b16 %v2911
    %v3157 = vunpack.c.l.b16 %v2912
    %v3158 = vunpack.c.h.b16 %v2912
    %v3159 = vunpack.c.l.b16 %v2913
    %v3160 = vunpack.c.l.b16 %v2914
    %v3161 = vunpack.c.h.b16 %v2914
    %v3162 = vunpack.c.l.b16 %v2915
    %v3163 = vunpack.c.l.b16 %v2916
    %v3164 = vunpack.c.h.b16 %v2916
    %v3165 = vunpack.c.l.b16 %v2917
    %v3166 = vunpack.c.l.b16 %v2918
    %v3167 = vunpack.c.h.b16 %v2918
    %v3168 = vunpack.c.l.b16 %v2919
    %v3169 = vunpack.c.l.b16 %v2920
    %v3170 = vunpack.c.h.b16 %v2920
    %v3171 = vunpack.c.l.b16 %v2921
    %v3172 = vunpack.c.l.b16 %v2922
    %v3173 = vunpack.c.h.b16 %v2922
    %v3174 = vunpack.c.l.b16 %v2923
    %v3175 = vunpack.c.l.b16 %v2924
    %v3176 = vunpack.c.h.b16 %v2924
    %v3177 = vunpack.c.l.b16 %v2925
    %v3178 = vunpack.c.l.b16 %v2926
    %v3179 = vunpack.c.h.b16 %v2926
    %v3180 = vunpack.c.l.b16 %v2927
    %v3181 = vunpack.c.l.b16 %v2928
    %v3182 = vunpack.c.h.b16 %v2928
    %v3183 = vunpack.c.l.b16 %v2929
    %v3184 = vunpack.c.l.b16 %v2930
    %v3185 = vunpack.c.h.b16 %v2930
    %v3186 = vunpack.c.l.b16 %v2931
    %v3187 = vunpack.c.l.b16 %v2932
    %v3188 = vunpack.c.h.b16 %v2932
    %v3189 = vunpack.c.l.b16 %v2933
    %v3190 = vpack.c.b16 %v3049, %v3046
    %v3191 = vpack.c.b16 %v3050, %v3047
    %v3192 = vpack.c.b16 %v3051, %v3048
    %v3193 = vpack.c.b16 %v3055, %v3052
    %v3194 = vpack.c.b16 %v3056, %v3053
    %v3195 = vpack.c.b16 %v3057, %v3054
    %v3196 = vpack.c.b16 %v3061, %v3058
    %v3197 = vpack.c.b16 %v3062, %v3059
    %v3198 = vpack.c.b16 %v3063, %v3060
    %v3199 = vpack.c.b16 %v3067, %v3064
    %v3200 = vpack.c.b16 %v3068, %v3065
    %v3201 = vpack.c.b16 %v3069, %v3066
    %v3202 = vpack.c.b16 %v3073, %v3070
    %v3203 = vpack.c.b16 %v3074, %v3071
    %v3204 = vpack.c.b16 %v3075, %v3072
    %v3205 = vpack.c.b16 %v3079, %v3076
    %v3206 = vpack.c.b16 %v3080, %v3077
    %v3207 = vpack.c.b16 %v3081, %v3078
    %v3208 = vpack.c.b16 %v3085, %v3082
    %v3209 = vpack.c.b16 %v3086, %v3083
    %v3210 = vpack.c.b16 %v3087, %v3084
    %v3211 = vpack.c.b16 %v3091, %v3088
    %v3212 = vpack.c.b16 %v3092, %v3089
    %v3213 = vpack.c.b16 %v3093, %v3090
    %v3214 = vpack.c.b16 %v3097, %v3094
    %v3215 = vpack.c.b16 %v3098, %v3095
    %v3216 = vpack.c.b16 %v3099, %v3096
    %v3217 = vpack.c.b16 %v3103, %v3100
    %v3218 = vpack.c.b16 %v3104, %v3101
    %v3219 = vpack.c.b16 %v3105, %v3102
    %v3220 = vpack.c.b16 %v3109, %v3106
    %v3221 = vpack.c.b16 %v3110, %v3107
    %v3222 = vpack.c.b16 %v3111, %v3108
    %v3223 = vpack.c.b16 %v3115, %v3112
    %v3224 = vpack.c.b16 %v3116, %v3113
    %v3225 = vpack.c.b16 %v3117, %v3114
    %v3226 = vpack.c.b16 %v3121, %v3118
    %v3227 = vpack.c.b16 %v3122, %v3119
    %v3228 = vpack.c.b16 %v3123, %v3120
    %v3229 = vpack.c.b16 %v3127, %v3124
    %v3230 = vpack.c.b16 %v3128, %v3125
    %v3231 = vpack.c.b16 %v3129, %v3126
    %v3232 = vpack.c.b16 %v3133, %v3130
    %v3233 = vpack.c.b16 %v3134, %v3131
    %v3234 = vpack.c.b16 %v3135, %v3132
    %v3235 = vpack.c.b16 %v3139, %v3136
    %v3236 = vpack.c.b16 %v3140, %v3137
    %v3237 = vpack.c.b16 %v3141, %v3138
    %v3238 = vpack.c.b16 %v3145, %v3142
    %v3239 = vpack.c.b16 %v3146, %v3143
    %v3240 = vpack.c.b16 %v3147, %v3144
    %v3241 = vpack.c.b16 %v3151, %v3148
    %v3242 = vpack.c.b16 %v3152, %v3149
    %v3243 = vpack.c.b16 %v3153, %v3150
    %v3244 = vpack.c.b16 %v3157, %v3154
    %v3245 = vpack.c.b16 %v3158, %v3155
    %v3246 = vpack.c.b16 %v3159, %v3156
    %v3247 = vpack.c.b16 %v3163, %v3160
    %v3248 = vpack.c.b16 %v3164, %v3161
    %v3249 = vpack.c.b16 %v3165, %v3162
    %v3250 = vpack.c.b16 %v3169, %v3166
    %v3251 = vpack.c.b16 %v3170, %v3167
    %v3252 = vpack.c.b16 %v3171, %v3168
    %v3253 = vpack.c.b16 %v3175, %v3172
    %v3254 = vpack.c.b16 %v3176, %v3173
    %v3255 = vpack.c.b16 %v3177, %v3174
    %v3256 = vpack.c.b16 %v3181, %v3178
    %v3257 = vpack.c.b16 %v3182, %v3179
    %v3258 = vpack.c.b16 %v3183, %v3180
    %v3259 = vpack.c.b16 %v3187, %v3184
    %v3260 = vpack.c.b16 %v3188, %v3185
    %v3261 = vpack.c.b16 %v3189, %v3186
    %3334 = vmatprep.subr.bf16.mxu0 %v3212
    %3335 = vmatpush1.bf16.msra.mxu0 %v3211
    %3336 = vmatprep.subr.bf16.mxu0 %v3209
    %3337 = vmatpush1.bf16.msra.mxu0 %v3208
    %3338 = vmatprep.subr.bf16.mxu0 %v3206
    %3339 = vmatpush1.bf16.msra.mxu0 %v3205
    %3340 = vmatprep.subr.bf16.mxu0 %v3203
    %3341 = vmatpush1.bf16.msra.mxu0 %v3202
    %3342 = vmatprep.subr.bf16.mxu0 %v3200
    %3343 = vmatpush1.bf16.msra.mxu0 %v3199
    %3344 = vmatprep.subr.bf16.mxu0 %v3197
    %3345 = vmatpush1.bf16.msra.mxu0 %v3196
    %3346 = vmatprep.subr.bf16.mxu0 %v3194
    %3347 = vmatpush1.bf16.msra.mxu0 %v3193
    %3348 = vmatprep.subr.bf16.mxu0 %v3191
    %3349 = vmatpush1.bf16.msra.mxu0 %v3190
    %3350 = vmatprep.subr.bf16.mxu0 %v3236
    %3351 = vmatpush2.bf16.msra.mxu0 %v3235
    %3352 = vmatprep.subr.bf16.mxu0 %v3233
    %3353 = vmatpush2.bf16.msra.mxu0 %v3232
    %3354 = vmatprep.subr.bf16.mxu0 %v3230
    %3355 = vmatpush2.bf16.msra.mxu0 %v3229
    %3356 = vmatprep.subr.bf16.mxu0 %v3227
    %3357 = vmatpush2.bf16.msra.mxu0 %v3226
    %3358 = vmatprep.subr.bf16.mxu0 %v3224
    %3359 = vmatpush2.bf16.msra.mxu0 %v3223
    %3360 = vmatprep.subr.bf16.mxu0 %v3221
    %3361 = vmatpush2.bf16.msra.mxu0 %v3220
    %3362 = vmatprep.subr.bf16.mxu0 %v3218
    %3363 = vmatpush2.bf16.msra.mxu0 %v3217
    %3364 = vmatprep.subr.bf16.mxu0 %v3215
    %3365 = vmatpush2.bf16.msra.mxu0 %v3214
    %3366 = vmatprep.mubr.bf16.mxu0 %v2835
    %3367 = vmatmul.mubr.bf16.gmra.mxu0 %v2834
    %v3368 = vpop.f32.mrf.mxu0
    %v3369 = vadd.f32 %v2938, %v3368
    %v3370 = vpop.f32.mrf.mxu0
    %v3371 = vadd.f32 %v2942, %v3370
    %v3372 = vpop.f32.mrf.mxu0
    %v3373 = vpop.f32.mrf.mxu0
    %3374 = vdwg.mxu0
    %3375 = vmatprep.subr.bf16.mxu0 %v3260
    %3376 = vmatpush1.bf16.msra.mxu0 %v3259
    %3377 = vmatprep.subr.bf16.mxu0 %v3257
    %3378 = vmatpush1.bf16.msra.mxu0 %v3256
    %3379 = vmatprep.subr.bf16.mxu0 %v3254
    %3380 = vmatpush1.bf16.msra.mxu0 %v3253
    %3381 = vmatprep.subr.bf16.mxu0 %v3251
    %3382 = vmatpush1.bf16.msra.mxu0 %v3250
    %3383 = vmatprep.subr.bf16.mxu0 %v3248
    %3384 = vmatpush1.bf16.msra.mxu0 %v3247
    %3385 = vmatprep.subr.bf16.mxu0 %v3245
    %3386 = vmatpush1.bf16.msra.mxu0 %v3244
    %3387 = vmatprep.subr.bf16.mxu0 %v3242
    %3388 = vmatpush1.bf16.msra.mxu0 %v3241
    %3389 = vmatprep.subr.bf16.mxu0 %v3239
    %3390 = vmatpush1.bf16.msra.mxu0 %v3238
    %3391 = vmatprep.subr.bf16.mxu0 0
    %3392 = vmatpush2.bf16.msra.mxu0 0
    %3393 = vmatprep.subr.bf16.mxu0 0
    %3394 = vmatpush2.bf16.msra.mxu0 0
    %3395 = vmatprep.subr.bf16.mxu0 0
    %3396 = vmatpush2.bf16.msra.mxu0 0
    %3397 = vmatprep.subr.bf16.mxu0 0
    %3398 = vmatpush2.bf16.msra.mxu0 0
    %3399 = vmatprep.subr.bf16.mxu0 0
    %3400 = vmatpush2.bf16.msra.mxu0 0
    %3401 = vmatprep.subr.bf16.mxu0 0
    %3402 = vmatpush2.bf16.msra.mxu0 0
    %3403 = vmatprep.subr.bf16.mxu0 0
    %3404 = vmatpush2.bf16.msra.mxu0 0
    %3405 = vmatprep.subr.bf16.mxu0 0
    %3406 = vmatpush2.bf16.msra.mxu0 0
    %3407 = vmatprep.mubr.bf16.mxu0 0
    %3408 = vmatmul.mubr.bf16.gmra.mxu0 %v2836
    %v3409 = vpop.f32.mrf.mxu0
    %v3410 = vadd.f32 %v3369, %v3409
    %v3411 = vpop.f32.mrf.mxu0
    %v3412 = vadd.f32 %v3371, %v3411
    %v3413 = vpop.f32.mrf.mxu0
    %v3414 = vpop.f32.mrf.mxu0
    %3415 = vdwg.mxu0
    %3416 = vmatprep.subr.bf16.mxu0 0
    %3417 = vmatpush1.bf16.msra.mxu0 %v3213
    %3418 = vmatprep.subr.bf16.mxu0 0
    %3419 = vmatpush1.bf16.msra.mxu0 %v3210
    %3420 = vmatprep.subr.bf16.mxu0 0
    %3421 = vmatpush1.bf16.msra.mxu0 %v3207
    %3422 = vmatprep.subr.bf16.mxu0 0
    %3423 = vmatpush1.bf16.msra.mxu0 %v3204
    %3424 = vmatprep.subr.bf16.mxu0 0
    %3425 = vmatpush1.bf16.msra.mxu0 %v3201
    %3426 = vmatprep.subr.bf16.mxu0 0
    %3427 = vmatpush1.bf16.msra.mxu0 %v3198
    %3428 = vmatprep.subr.bf16.mxu0 0
    %3429 = vmatpush1.bf16.msra.mxu0 %v3195
    %3430 = vmatprep.subr.bf16.mxu0 0
    %3431 = vmatpush1.bf16.msra.mxu0 %v3192
    %3432 = vmatprep.subr.bf16.mxu0 0
    %3433 = vmatpush2.bf16.msra.mxu0 %v3237
    %3434 = vmatprep.subr.bf16.mxu0 0
    %3435 = vmatpush2.bf16.msra.mxu0 %v3234
    %3436 = vmatprep.subr.bf16.mxu0 0
    %3437 = vmatpush2.bf16.msra.mxu0 %v3231
    %3438 = vmatprep.subr.bf16.mxu0 0
    %3439 = vmatpush2.bf16.msra.mxu0 %v3228
    %3440 = vmatprep.subr.bf16.mxu0 0
    %3441 = vmatpush2.bf16.msra.mxu0 %v3225
    %3442 = vmatprep.subr.bf16.mxu0 0
    %3443 = vmatpush2.bf16.msra.mxu0 %v3222
    %3444 = vmatprep.subr.bf16.mxu0 0
    %3445 = vmatpush2.bf16.msra.mxu0 %v3219
    %3446 = vmatprep.subr.bf16.mxu0 0
    %3447 = vmatpush2.bf16.msra.mxu0 %v3216
    %3448 = vmatprep.mubr.bf16.mxu0 %v2835
    %3449 = vmatmul.mubr.bf16.gmra.mxu0 %v2834
    %v3450 = vpop.f32.mrf.mxu0
    %v3451 = vadd.f32 %v2946, %v3450
    %v3452 = vpop.f32.mrf.mxu0
    %v3453 = vpop.f32.mrf.mxu0
    %v3454 = vpop.f32.mrf.mxu0
    %3455 = vdwg.mxu0
    %3456 = vmatprep.subr.bf16.mxu0 0
    %3457 = vmatpush1.bf16.msra.mxu0 %v3261
    %3458 = vmatprep.subr.bf16.mxu0 0
    %3459 = vmatpush1.bf16.msra.mxu0 %v3258
    %3460 = vmatprep.subr.bf16.mxu0 0
    %3461 = vmatpush1.bf16.msra.mxu0 %v3255
    %3462 = vmatprep.subr.bf16.mxu0 0
    %3463 = vmatpush1.bf16.msra.mxu0 %v3252
    %3464 = vmatprep.subr.bf16.mxu0 0
    %3465 = vmatpush1.bf16.msra.mxu0 %v3249
    %3466 = vmatprep.subr.bf16.mxu0 0
    %3467 = vmatpush1.bf16.msra.mxu0 %v3246
    %3468 = vmatprep.subr.bf16.mxu0 0
    %3469 = vmatpush1.bf16.msra.mxu0 %v3243
    %3470 = vmatprep.subr.bf16.mxu0 0
    %3471 = vmatpush1.bf16.msra.mxu0 %v3240
    %3472 = vmatprep.subr.bf16.mxu0 0
    %3473 = vmatpush2.bf16.msra.mxu0 0
    %3474 = vmatprep.subr.bf16.mxu0 0
    %3475 = vmatpush2.bf16.msra.mxu0 0
    %3476 = vmatprep.subr.bf16.mxu0 0
    %3477 = vmatpush2.bf16.msra.mxu0 0
    %3478 = vmatprep.subr.bf16.mxu0 0
    %3479 = vmatpush2.bf16.msra.mxu0 0
    %3480 = vmatprep.subr.bf16.mxu0 0
    %3481 = vmatpush2.bf16.msra.mxu0 0
    %3482 = vmatprep.subr.bf16.mxu0 0
    %3483 = vmatpush2.bf16.msra.mxu0 0
    %3484 = vmatprep.subr.bf16.mxu0 0
    %3485 = vmatpush2.bf16.msra.mxu0 0
    %3486 = vmatprep.subr.bf16.mxu0 0
    %3487 = vmatpush2.bf16.msra.mxu0 0
    %3488 = vmatprep.mubr.bf16.mxu0 0
    %3489 = vmatmul.mubr.bf16.gmra.mxu0 %v2836
    %v3490 = vpop.f32.mrf.mxu0
    %v3491 = vadd.f32 %v3451, %v3490
    %v3492 = vpop.f32.mrf.mxu0
    %v3493 = vpop.f32.mrf.mxu0
    %v3494 = vpop.f32.mrf.mxu0
    %3495 = vdwg.mxu0
    %v3496 = vxor.u32 %v3410, 2147483648
    %v3497 = vxor.u32 %v3412, 2147483648
    %v3498 = vxor.u32 %v3491, 2147483648
    %v3499 = vmul.f32 %v3496, 1.442695
    %v3500 = vpow.pop %v3499
    %v3501 = vmul.f32 %v3497, 1.442695
    %v3502 = vpow.pop %v3501
    %v3503 = vmul.f32 %v3498, 1.442695
    %v3504 = vpow.pop %v3503
    %v3505 = vadd.f32 %v3500, 1.0
    %v3506 = vadd.f32 %v3502, 1.0
    %v3507 = vadd.f32 %v3504, 1.0
    %v3508 = vrcp.pop %v3505
    %v3509 = vmul.f32 1.0, %v3508
    %v3510 = vrcp.pop %v3506
    %v3511 = vmul.f32 1.0, %v3510
    %v3512 = vrcp.pop %v3507
    %v3513 = vmul.f32 1.0, %v3512
    %v3514 = vmul.f32 %v3410, %v3509
    %v3515 = vmul.f32 %v3412, %v3511
    %v3516 = vmul.f32 %v3491, %v3513
    %v3517 = vpack.c.bf16 %v3514, %v3514
    %v3518 = vpack.c.bf16 %v3515, %v3515
    %v3519 = vpack.c.bf16 %v3516, %v3516
    %v3520 = vld [vmem:[%s6] sm:$0xff]
    %v3521 = vld [vmem:[%s6 + $0x8] sm:$0xff]
    %v3522 = vld [vmem:[%s6 + $0x10] sm:$0xff]
    %v3523 = vld [vmem:[%s6 + $0x18] sm:$0xff]
    %v3524 = vld [vmem:[%s6 + $0x20] sm:$0xff]
    %v3525 = vld [vmem:[%s6 + $0x28] sm:$0xff]
    %v3526 = vld [vmem:[%s6 + $0x30] sm:$0xff]
    %v3527 = vld [vmem:[%s6 + $0x38] sm:$0xff]
    %v3528 = vld [vmem:[%s6 + $0x40] sm:$0xff]
    %v3529 = vld [vmem:[%s6 + $0x48] sm:$0xff]
    %v3530 = vld [vmem:[%s6 + $0x50] sm:$0xff]
    %v3531 = vld [vmem:[%s6 + $0x58] sm:$0xff]
    %v3532 = vld [vmem:[%s6 + $0x60] sm:$0xff]
    %v3533 = vld [vmem:[%s6 + $0x68] sm:$0xff]
    %v3534 = vld [vmem:[%s6 + $0x70] sm:$0xff]
    %v3535 = vld [vmem:[%s6 + $0x78] sm:$0xff]
    %v3536 = vld [vmem:[%s6 + $0x80] sm:$0xff]
    %v3537 = vld [vmem:[%s6 + $0x88] sm:$0xff]
    %v3538 = vld [vmem:[%s6 + $0x90] sm:$0xff]
    %v3539 = vld [vmem:[%s6 + $0x98] sm:$0xff]
    %v3540 = vld [vmem:[%s6 + $0xa0] sm:$0xff]
    %v3541 = vld [vmem:[%s6 + $0xa8] sm:$0xff]
    %v3542 = vld [vmem:[%s6 + $0xb0] sm:$0xff]
    %v3543 = vld [vmem:[%s6 + $0xb8] sm:$0xff]
    %v3544 = vld [vmem:[%s6 + $0xc0] sm:$0xff]
    %v3545 = vld [vmem:[%s6 + $0xc8] sm:$0xff]
    %v3546 = vld [vmem:[%s6 + $0xd0] sm:$0xff]
    %v3547 = vld [vmem:[%s6 + $0xd8] sm:$0xff]
    %v3548 = vld [vmem:[%s6 + $0xe0] sm:$0xff]
    %v3549 = vld [vmem:[%s6 + $0xe8] sm:$0xff]
    %v3550 = vld [vmem:[%s6 + $0xf0] sm:$0xff]
    %v3551 = vld [vmem:[%s6 + $0xf8] sm:$0xff]
    %v3552 = vld [vmem:[%s6 + $0x100] sm:$0xff]
    %v3553 = vld [vmem:[%s6 + $0x108] sm:$0xff]
    %v3554 = vld [vmem:[%s6 + $0x110] sm:$0xff]
    %v3555 = vld [vmem:[%s6 + $0x118] sm:$0xff]
    %v3556 = vld [vmem:[%s6 + $0x120] sm:$0xff]
    %v3557 = vld [vmem:[%s6 + $0x128] sm:$0xff]
    %v3558 = vld [vmem:[%s6 + $0x130] sm:$0xff]
    %v3559 = vld [vmem:[%s6 + $0x138] sm:$0xff]
    %v3560 = vld [vmem:[%s6 + $0x140] sm:$0xff]
    %v3561 = vld [vmem:[%s6 + $0x148] sm:$0xff]
    %v3562 = vld [vmem:[%s6 + $0x150] sm:$0xff]
    %v3563 = vld [vmem:[%s6 + $0x158] sm:$0xff]
    %v3564 = vld [vmem:[%s6 + $0x160] sm:$0xff]
    %v3565 = vld [vmem:[%s6 + $0x168] sm:$0xff]
    %v3566 = vld [vmem:[%s6 + $0x170] sm:$0xff]
    %v3567 = vld [vmem:[%s6 + $0x178] sm:$0xff]
    %v3569 = vlaneseq
    %v3570 = vshrl.u32 %v3569, 7
    %v3571 = vsub.s32 0, %v3570
    %v3572 = vrot.slane %v47, %v3571
    %v3573 = vlaneseq
    %v3574 = vshrl.u32 %v3573, 7
    %v3575 = vsub.s32 1, %v3574
    %v3576 = vrot.slane %v47, %v3575
    %v3627 = vunpack.c.l.b16 %v3520
    %v3628 = vunpack.c.h.b16 %v3520
    %v3629 = vunpack.c.l.b16 %v3521
    %v3630 = vunpack.c.h.b16 %v3521
    %v3631 = vunpack.c.l.b16 %v3522
    %v3632 = vunpack.c.h.b16 %v3522
    %v3633 = vunpack.c.l.b16 %v3523
    %v3634 = vunpack.c.h.b16 %v3523
    %v3635 = vunpack.c.l.b16 %v3524
    %v3636 = vunpack.c.h.b16 %v3524
    %v3637 = vunpack.c.l.b16 %v3525
    %v3638 = vunpack.c.h.b16 %v3525
    %v3639 = vunpack.c.l.b16 %v3526
    %v3640 = vunpack.c.h.b16 %v3526
    %v3641 = vunpack.c.l.b16 %v3527
    %v3642 = vunpack.c.h.b16 %v3527
    %v3643 = vunpack.c.l.b16 %v3528
    %v3644 = vunpack.c.h.b16 %v3528
    %v3645 = vunpack.c.l.b16 %v3529
    %v3646 = vunpack.c.h.b16 %v3529
    %v3647 = vunpack.c.l.b16 %v3530
    %v3648 = vunpack.c.h.b16 %v3530
    %v3649 = vunpack.c.l.b16 %v3531
    %v3650 = vunpack.c.h.b16 %v3531
    %v3651 = vunpack.c.l.b16 %v3532
    %v3652 = vunpack.c.h.b16 %v3532
    %v3653 = vunpack.c.l.b16 %v3533
    %v3654 = vunpack.c.h.b16 %v3533
    %v3655 = vunpack.c.l.b16 %v3534
    %v3656 = vunpack.c.h.b16 %v3534
    %v3657 = vunpack.c.l.b16 %v3535
    %v3658 = vunpack.c.h.b16 %v3535
    %v3659 = vunpack.c.l.b16 %v3536
    %v3660 = vunpack.c.h.b16 %v3536
    %v3661 = vunpack.c.l.b16 %v3537
    %v3662 = vunpack.c.h.b16 %v3537
    %v3663 = vunpack.c.l.b16 %v3538
    %v3664 = vunpack.c.h.b16 %v3538
    %v3665 = vunpack.c.l.b16 %v3539
    %v3666 = vunpack.c.h.b16 %v3539
    %v3667 = vunpack.c.l.b16 %v3540
    %v3668 = vunpack.c.h.b16 %v3540
    %v3669 = vunpack.c.l.b16 %v3541
    %v3670 = vunpack.c.h.b16 %v3541
    %v3671 = vunpack.c.l.b16 %v3542
    %v3672 = vunpack.c.h.b16 %v3542
    %v3673 = vunpack.c.l.b16 %v3543
    %v3674 = vunpack.c.h.b16 %v3543
    %v3675 = vunpack.c.l.b16 %v3544
    %v3676 = vunpack.c.h.b16 %v3544
    %v3677 = vunpack.c.l.b16 %v3545
    %v3678 = vunpack.c.h.b16 %v3545
    %v3679 = vunpack.c.l.b16 %v3546
    %v3680 = vunpack.c.h.b16 %v3546
    %v3681 = vunpack.c.l.b16 %v3547
    %v3682 = vunpack.c.h.b16 %v3547
    %v3683 = vunpack.c.l.b16 %v3548
    %v3684 = vunpack.c.h.b16 %v3548
    %v3685 = vunpack.c.l.b16 %v3549
    %v3686 = vunpack.c.h.b16 %v3549
    %v3687 = vunpack.c.l.b16 %v3550
    %v3688 = vunpack.c.h.b16 %v3550
    %v3689 = vunpack.c.l.b16 %v3551
    %v3690 = vunpack.c.h.b16 %v3551
    %v3691 = vunpack.c.l.b16 %v3552
    %v3692 = vunpack.c.h.b16 %v3552
    %v3693 = vunpack.c.l.b16 %v3553
    %v3694 = vunpack.c.h.b16 %v3553
    %v3695 = vunpack.c.l.b16 %v3554
    %v3696 = vunpack.c.h.b16 %v3554
    %v3697 = vunpack.c.l.b16 %v3555
    %v3698 = vunpack.c.h.b16 %v3555
    %v3699 = vunpack.c.l.b16 %v3556
    %v3700 = vunpack.c.h.b16 %v3556
    %v3701 = vunpack.c.l.b16 %v3557
    %v3702 = vunpack.c.h.b16 %v3557
    %v3703 = vunpack.c.l.b16 %v3558
    %v3704 = vunpack.c.h.b16 %v3558
    %v3705 = vunpack.c.l.b16 %v3559
    %v3706 = vunpack.c.h.b16 %v3559
    %v3707 = vunpack.c.l.b16 %v3560
    %v3708 = vunpack.c.h.b16 %v3560
    %v3709 = vunpack.c.l.b16 %v3561
    %v3710 = vunpack.c.h.b16 %v3561
    %v3711 = vunpack.c.l.b16 %v3562
    %v3712 = vunpack.c.h.b16 %v3562
    %v3713 = vunpack.c.l.b16 %v3563
    %v3714 = vunpack.c.h.b16 %v3563
    %v3715 = vunpack.c.l.b16 %v3564
    %v3716 = vunpack.c.h.b16 %v3564
    %v3717 = vunpack.c.l.b16 %v3565
    %v3718 = vunpack.c.h.b16 %v3565
    %v3719 = vunpack.c.l.b16 %v3566
    %v3720 = vunpack.c.h.b16 %v3566
    %v3721 = vunpack.c.l.b16 %v3567
    %v3722 = vunpack.c.h.b16 %v3567
    %v3723 = vpack.c.b16 %v3629, %v3627
    %v3724 = vpack.c.b16 %v3630, %v3628
    %v3725 = vpack.c.b16 %v3633, %v3631
    %v3726 = vpack.c.b16 %v3634, %v3632
    %v3727 = vpack.c.b16 %v3637, %v3635
    %v3728 = vpack.c.b16 %v3638, %v3636
    %v3729 = vpack.c.b16 %v3641, %v3639
    %v3730 = vpack.c.b16 %v3642, %v3640
    %v3731 = vpack.c.b16 %v3645, %v3643
    %v3732 = vpack.c.b16 %v3646, %v3644
    %v3733 = vpack.c.b16 %v3649, %v3647
    %v3734 = vpack.c.b16 %v3650, %v3648
    %v3735 = vpack.c.b16 %v3653, %v3651
    %v3736 = vpack.c.b16 %v3654, %v3652
    %v3737 = vpack.c.b16 %v3657, %v3655
    %v3738 = vpack.c.b16 %v3658, %v3656
    %v3739 = vpack.c.b16 %v3661, %v3659
    %v3740 = vpack.c.b16 %v3662, %v3660
    %v3741 = vpack.c.b16 %v3665, %v3663
    %v3742 = vpack.c.b16 %v3666, %v3664
    %v3743 = vpack.c.b16 %v3669, %v3667
    %v3744 = vpack.c.b16 %v3670, %v3668
    %v3745 = vpack.c.b16 %v3673, %v3671
    %v3746 = vpack.c.b16 %v3674, %v3672
    %v3747 = vpack.c.b16 %v3677, %v3675
    %v3748 = vpack.c.b16 %v3678, %v3676
    %v3749 = vpack.c.b16 %v3681, %v3679
    %v3750 = vpack.c.b16 %v3682, %v3680
    %v3751 = vpack.c.b16 %v3685, %v3683
    %v3752 = vpack.c.b16 %v3686, %v3684
    %v3753 = vpack.c.b16 %v3689, %v3687
    %v3754 = vpack.c.b16 %v3690, %v3688
    %v3755 = vpack.c.b16 %v3693, %v3691
    %v3756 = vpack.c.b16 %v3694, %v3692
    %v3757 = vpack.c.b16 %v3697, %v3695
    %v3758 = vpack.c.b16 %v3698, %v3696
    %v3759 = vpack.c.b16 %v3701, %v3699
    %v3760 = vpack.c.b16 %v3702, %v3700
    %v3761 = vpack.c.b16 %v3705, %v3703
    %v3762 = vpack.c.b16 %v3706, %v3704
    %v3763 = vpack.c.b16 %v3709, %v3707
    %v3764 = vpack.c.b16 %v3710, %v3708
    %v3765 = vpack.c.b16 %v3713, %v3711
    %v3766 = vpack.c.b16 %v3714, %v3712
    %v3767 = vpack.c.b16 %v3717, %v3715
    %v3768 = vpack.c.b16 %v3718, %v3716
    %v3769 = vpack.c.b16 %v3721, %v3719
    %v3770 = vpack.c.b16 %v3722, %v3720
    %3819 = vmatprep.subr.bf16.mxu0 %v3738
    %3820 = vmatpush1.bf16.msra.mxu0 %v3737
    %3821 = vmatprep.subr.bf16.mxu0 %v3736
    %3822 = vmatpush1.bf16.msra.mxu0 %v3735
    %3823 = vmatprep.subr.bf16.mxu0 %v3734
    %3824 = vmatpush1.bf16.msra.mxu0 %v3733
    %3825 = vmatprep.subr.bf16.mxu0 %v3732
    %3826 = vmatpush1.bf16.msra.mxu0 %v3731
    %3827 = vmatprep.subr.bf16.mxu0 %v3730
    %3828 = vmatpush1.bf16.msra.mxu0 %v3729
    %3829 = vmatprep.subr.bf16.mxu0 %v3728
    %3830 = vmatpush1.bf16.msra.mxu0 %v3727
    %3831 = vmatprep.subr.bf16.mxu0 %v3726
    %3832 = vmatpush1.bf16.msra.mxu0 %v3725
    %3833 = vmatprep.subr.bf16.mxu0 %v3724
    %3834 = vmatpush1.bf16.msra.mxu0 %v3723
    %3835 = vmatprep.subr.bf16.mxu0 %v3754
    %3836 = vmatpush2.bf16.msra.mxu0 %v3753
    %3837 = vmatprep.subr.bf16.mxu0 %v3752
    %3838 = vmatpush2.bf16.msra.mxu0 %v3751
    %3839 = vmatprep.subr.bf16.mxu0 %v3750
    %3840 = vmatpush2.bf16.msra.mxu0 %v3749
    %3841 = vmatprep.subr.bf16.mxu0 %v3748
    %3842 = vmatpush2.bf16.msra.mxu0 %v3747
    %3843 = vmatprep.subr.bf16.mxu0 %v3746
    %3844 = vmatpush2.bf16.msra.mxu0 %v3745
    %3845 = vmatprep.subr.bf16.mxu0 %v3744
    %3846 = vmatpush2.bf16.msra.mxu0 %v3743
    %3847 = vmatprep.subr.bf16.mxu0 %v3742
    %3848 = vmatpush2.bf16.msra.mxu0 %v3741
    %3849 = vmatprep.subr.bf16.mxu0 %v3740
    %3850 = vmatpush2.bf16.msra.mxu0 %v3739
    %3851 = vmatprep.mubr.bf16.mxu0 %v3518
    %3852 = vmatmul.mubr.bf16.gmra.mxu0 %v3517
    %v3853 = vpop.f32.mrf.mxu0
    %v3854 = vadd.f32 %v3572, %v3853
    %v3855 = vpop.f32.mrf.mxu0
    %v3856 = vadd.f32 %v3576, %v3855
    %v3857 = vpop.f32.mrf.mxu0
    %v3858 = vpop.f32.mrf.mxu0
    %3859 = vdwg.mxu0
    %3860 = vmatprep.subr.bf16.mxu0 %v3770
    %3861 = vmatpush1.bf16.msra.mxu0 %v3769
    %3862 = vmatprep.subr.bf16.mxu0 %v3768
    %3863 = vmatpush1.bf16.msra.mxu0 %v3767
    %3864 = vmatprep.subr.bf16.mxu0 %v3766
    %3865 = vmatpush1.bf16.msra.mxu0 %v3765
    %3866 = vmatprep.subr.bf16.mxu0 %v3764
    %3867 = vmatpush1.bf16.msra.mxu0 %v3763
    %3868 = vmatprep.subr.bf16.mxu0 %v3762
    %3869 = vmatpush1.bf16.msra.mxu0 %v3761
    %3870 = vmatprep.subr.bf16.mxu0 %v3760
    %3871 = vmatpush1.bf16.msra.mxu0 %v3759
    %3872 = vmatprep.subr.bf16.mxu0 %v3758
    %3873 = vmatpush1.bf16.msra.mxu0 %v3757
    %3874 = vmatprep.subr.bf16.mxu0 %v3756
    %3875 = vmatpush1.bf16.msra.mxu0 %v3755
    %3876 = vmatprep.subr.bf16.mxu0 0
    %3877 = vmatpush2.bf16.msra.mxu0 0
    %3878 = vmatprep.subr.bf16.mxu0 0
    %3879 = vmatpush2.bf16.msra.mxu0 0
    %3880 = vmatprep.subr.bf16.mxu0 0
    %3881 = vmatpush2.bf16.msra.mxu0 0
    %3882 = vmatprep.subr.bf16.mxu0 0
    %3883 = vmatpush2.bf16.msra.mxu0 0
    %3884 = vmatprep.subr.bf16.mxu0 0
    %3885 = vmatpush2.bf16.msra.mxu0 0
    %3886 = vmatprep.subr.bf16.mxu0 0
    %3887 = vmatpush2.bf16.msra.mxu0 0
    %3888 = vmatprep.subr.bf16.mxu0 0
    %3889 = vmatpush2.bf16.msra.mxu0 0
    %3890 = vmatprep.subr.bf16.mxu0 0
    %3891 = vmatpush2.bf16.msra.mxu0 0
    %3892 = vmatprep.mubr.bf16.mxu0 0
    %3893 = vmatmul.mubr.bf16.gmra.mxu0 %v3519
    %v3894 = vpop.f32.mrf.mxu0
    %v3895 = vadd.f32 %v3854, %v3894
    %v3896 = vpop.f32.mrf.mxu0
    %v3897 = vadd.f32 %v3856, %v3896
    %v3898 = vpop.f32.mrf.mxu0
    %v3899 = vpop.f32.mrf.mxu0
    %3900 = vdwg.mxu0
    %v3901 = vxor.u32 %v3895, 2147483648
    %v3902 = vxor.u32 %v3897, 2147483648
    %v3903 = vmul.f32 %v3901, 1.442695
    %v3904 = vpow.pop %v3903
    %v3905 = vmul.f32 %v3902, 1.442695
    %v3906 = vpow.pop %v3905
    %v3907 = vadd.f32 %v3904, 1.0
    %v3908 = vadd.f32 %v3906, 1.0
    %v3909 = vrcp.pop %v3907
    %v3910 = vmul.f32 1.0, %v3909
    %v3911 = vrcp.pop %v3908
    %v3912 = vmul.f32 1.0, %v3911
    %v3913 = vmul.f32 %v3895, %v3910
    %v3914 = vmul.f32 %v3897, %v3912
    %v3915 = vpack.c.bf16 %v3913, %v3913
    %v3916 = vpack.c.bf16 %v3914, %v3914
    %v3917 = vld [vmem:[%s7] sm:$0xf]
    %v3918 = vld [vmem:[%s7 + $0x4] sm:$0xf]
    %v3919 = vld [vmem:[%s7 + $0x8] sm:$0xf]
    %v3920 = vld [vmem:[%s7 + $0xc] sm:$0xf]
    %v3921 = vld [vmem:[%s7 + $0x10] sm:$0xf]
    %v3922 = vld [vmem:[%s7 + $0x14] sm:$0xf]
    %v3923 = vld [vmem:[%s7 + $0x18] sm:$0xf]
    %v3924 = vld [vmem:[%s7 + $0x1c] sm:$0xf]
    %v3925 = vld [vmem:[%s7 + $0x20] sm:$0xf]
    %v3926 = vld [vmem:[%s7 + $0x24] sm:$0xf]
    %v3927 = vld [vmem:[%s7 + $0x28] sm:$0xf]
    %v3928 = vld [vmem:[%s7 + $0x2c] sm:$0xf]
    %v3929 = vld [vmem:[%s7 + $0x30] sm:$0xf]
    %v3930 = vld [vmem:[%s7 + $0x34] sm:$0xf]
    %v3931 = vld [vmem:[%s7 + $0x38] sm:$0xf]
    %v3932 = vld [vmem:[%s7 + $0x3c] sm:$0xf]
    %v3933 = vld [vmem:[%s7 + $0x40] sm:$0xf]
    %v3934 = vld [vmem:[%s7 + $0x44] sm:$0xf]
    %v3935 = vld [vmem:[%s7 + $0x48] sm:$0xf]
    %v3936 = vld [vmem:[%s7 + $0x4c] sm:$0xf]
    %v3937 = vld [vmem:[%s7 + $0x50] sm:$0xf]
    %v3938 = vld [vmem:[%s7 + $0x54] sm:$0xf]
    %v3939 = vld [vmem:[%s7 + $0x58] sm:$0xf]
    %v3940 = vld [vmem:[%s7 + $0x5c] sm:$0xf]
    %v3941 = vld [vmem:[%s7 + $0x60] sm:$0xf]
    %v3942 = vld [vmem:[%s7 + $0x64] sm:$0xf]
    %v3943 = vld [vmem:[%s7 + $0x68] sm:$0xf]
    %v3944 = vld [vmem:[%s7 + $0x6c] sm:$0xf]
    %v3945 = vld [vmem:[%s7 + $0x70] sm:$0xf]
    %v3946 = vld [vmem:[%s7 + $0x74] sm:$0xf]
    %v3947 = vld [vmem:[%s7 + $0x78] sm:$0xf]
    %v3948 = vld [vmem:[%s7 + $0x7c] sm:$0xf]
    %v3981 = vunpack.c.l.b16 %v3917
    %v3982 = vunpack.c.l.b16 %v3918
    %v3983 = vunpack.c.l.b16 %v3919
    %v3984 = vunpack.c.l.b16 %v3920
    %v3985 = vunpack.c.l.b16 %v3921
    %v3986 = vunpack.c.l.b16 %v3922
    %v3987 = vunpack.c.l.b16 %v3923
    %v3988 = vunpack.c.l.b16 %v3924
    %v3989 = vunpack.c.l.b16 %v3925
    %v3990 = vunpack.c.l.b16 %v3926
    %v3991 = vunpack.c.l.b16 %v3927
    %v3992 = vunpack.c.l.b16 %v3928
    %v3993 = vunpack.c.l.b16 %v3929
    %v3994 = vunpack.c.l.b16 %v3930
    %v3995 = vunpack.c.l.b16 %v3931
    %v3996 = vunpack.c.l.b16 %v3932
    %v3997 = vunpack.c.l.b16 %v3933
    %v3998 = vunpack.c.l.b16 %v3934
    %v3999 = vunpack.c.l.b16 %v3935
    %v4000 = vunpack.c.l.b16 %v3936
    %v4001 = vunpack.c.l.b16 %v3937
    %v4002 = vunpack.c.l.b16 %v3938
    %v4003 = vunpack.c.l.b16 %v3939
    %v4004 = vunpack.c.l.b16 %v3940
    %v4005 = vunpack.c.l.b16 %v3941
    %v4006 = vunpack.c.l.b16 %v3942
    %v4007 = vunpack.c.l.b16 %v3943
    %v4008 = vunpack.c.l.b16 %v3944
    %v4009 = vunpack.c.l.b16 %v3945
    %v4010 = vunpack.c.l.b16 %v3946
    %v4011 = vunpack.c.l.b16 %v3947
    %v4012 = vunpack.c.l.b16 %v3948
    %v4013 = vpack.c.b16 %v3982, %v3981
    %v4014 = vpack.c.b16 %v3984, %v3983
    %v4015 = vpack.c.b16 %v3986, %v3985
    %v4016 = vpack.c.b16 %v3988, %v3987
    %v4017 = vpack.c.b16 %v3990, %v3989
    %v4018 = vpack.c.b16 %v3992, %v3991
    %v4019 = vpack.c.b16 %v3994, %v3993
    %v4020 = vpack.c.b16 %v3996, %v3995
    %v4021 = vpack.c.b16 %v3998, %v3997
    %v4022 = vpack.c.b16 %v4000, %v3999
    %v4023 = vpack.c.b16 %v4002, %v4001
    %v4024 = vpack.c.b16 %v4004, %v4003
    %v4025 = vpack.c.b16 %v4006, %v4005
    %v4026 = vpack.c.b16 %v4008, %v4007
    %v4027 = vpack.c.b16 %v4010, %v4009
    %v4028 = vpack.c.b16 %v4012, %v4011
    %4045 = vmatprep.subr.bf16.mxu0 0
    %4046 = vmatpush1.bf16.msra.mxu0 %v4020
    %4047 = vmatprep.subr.bf16.mxu0 0
    %4048 = vmatpush1.bf16.msra.mxu0 %v4019
    %4049 = vmatprep.subr.bf16.mxu0 0
    %4050 = vmatpush1.bf16.msra.mxu0 %v4018
    %4051 = vmatprep.subr.bf16.mxu0 0
    %4052 = vmatpush1.bf16.msra.mxu0 %v4017
    %4053 = vmatprep.subr.bf16.mxu0 0
    %4054 = vmatpush1.bf16.msra.mxu0 %v4016
    %4055 = vmatprep.subr.bf16.mxu0 0
    %4056 = vmatpush1.bf16.msra.mxu0 %v4015
    %4057 = vmatprep.subr.bf16.mxu0 0
    %4058 = vmatpush1.bf16.msra.mxu0 %v4014
    %4059 = vmatprep.subr.bf16.mxu0 0
    %4060 = vmatpush1.bf16.msra.mxu0 %v4013
    %4061 = vmatprep.subr.bf16.mxu0 0
    %4062 = vmatpush2.bf16.msra.mxu0 %v4028
    %4063 = vmatprep.subr.bf16.mxu0 0
    %4064 = vmatpush2.bf16.msra.mxu0 %v4027
    %4065 = vmatprep.subr.bf16.mxu0 0
    %4066 = vmatpush2.bf16.msra.mxu0 %v4026
    %4067 = vmatprep.subr.bf16.mxu0 0
    %4068 = vmatpush2.bf16.msra.mxu0 %v4025
    %4069 = vmatprep.subr.bf16.mxu0 0
    %4070 = vmatpush2.bf16.msra.mxu0 %v4024
    %4071 = vmatprep.subr.bf16.mxu0 0
    %4072 = vmatpush2.bf16.msra.mxu0 %v4023
    %4073 = vmatprep.subr.bf16.mxu0 0
    %4074 = vmatpush2.bf16.msra.mxu0 %v4022
    %4075 = vmatprep.subr.bf16.mxu0 0
    %4076 = vmatpush2.bf16.msra.mxu0 %v4021
    %4077 = vmatprep.mubr.bf16.mxu0 %v3916
    %4078 = vmatmul.mubr.bf16.gmra.mxu0 %v3915
    %v4079 = vpop.f32.mrf.mxu0
    %v4080 = vadd.f32 %v48, %v4079
    %v4081 = vpop.f32.mrf.mxu0
    %v4082 = vpop.f32.mrf.mxu0
    %v4083 = vpop.f32.mrf.mxu0
    %4084 = vdwg.mxu0
    %4085 = vst [vmem:[#allocation3] sm:$0xff] %v4080
    // Predicated region
    $region34: #{noise_predictor_forward.1} parent=1 // pred_check
      _
    $region35: #{noise_predictor_forward.1} parent=1 // pred_check_branch
      %4087 = sbr.rel (0) target = $region37
    $region36: #{noise_predictor_forward.1} parent=1 // pred_region
      %s4089 = ssub.s32 128, 128
      %4090 = vsyncadd [#allocation4], %s4089
      %s4092 = sshll.u32 [#allocation3], 4
      %s4093 = int_to_ptr.vmem [resolvable:$true] %s4092
      %4095 = dma.vmem_to_hbm [thread:$0]  %s4093, 128, %s8, [#allocation4]
    $region37: #{noise_predictor_forward.1} parent=1 // pred_fallthru
      _
    // Predicated region
    $region38: #{noise_predictor_forward.1} parent=1 // pred_check
      _
    $region39: #{noise_predictor_forward.1} parent=1 // pred_check_branch
      %4097 = sbr.rel (0) target = $region41
    $region40: #{noise_predictor_forward.1} parent=1 // pred_region
      %4098 = dma.done [#allocation4], 128
    $region41: #{noise_predictor_forward.1} parent=1 // pred_fallthru
      _
    %4099 = vsyncpa [#allocation4], 1

</llo_original>
